<compile_context>
chip_gen: v5e
topology: v5e:2x2
jax: 0.10.0
libtpu: 0.0.40
codegen_flags: <defaults>
</compile_context>

<pallas_src>
import jax
import jax.numpy as jnp
from jax import lax
from jax.experimental import pallas as pl
from jax.experimental.pallas import tpu as pltpu

# ----- small, self-consistent config (scaled-down bert-base + LSTM + head) -----
B = 2            # batch
S = 8            # sequence length
VOCAB = 100      # vocab size
HID = 32         # hidden size   (bert-base: 768)
NHEAD = 4        # attention heads
DHEAD = HID // NHEAD
INTER = 64       # FFN intermediate (bert-base: 3072)
NLAYER = 2       # encoder layers (bert-base: 12)
LSTM_H = 16      # LSTM hidden per direction (original: 256)
H4 = 4 * LSTM_H
NCLASS = 39      # classifier output (original: 39)
LN_EPS = 1e-12   # BERT layernorm eps
ATT_SCALE = 1.0 / float(DHEAD) ** 0.5

# packed per-layer param block: (NPROWS, PW) — one field per sublane row, lanes [0:width]
PW = 3 * HID                       # 96 lanes -> every field fits within one vreg lane span
(ROW_BQKV, ROW_BO, ROW_LN1G, ROW_LN1B,
 ROW_B1, ROW_B2, ROW_LN2G, ROW_LN2B) = range(8)
NPROWS = 8

# packed LSTM/head bias block: (3, H4) — rows: b_fwd, b_bwd, b_cls(padded)
NBROWS = 3


# --------------------------- in-kernel helpers --------------------------------
def _layernorm(x, g, b, eps):
    mu = jnp.mean(x, axis=-1, keepdims=True)
    var = jnp.mean(jnp.square(x - mu), axis=-1, keepdims=True)
    return (x - mu) * lax.rsqrt(var + eps) * g + b


# --------------------- single fully-fused forward kernel ----------------------
def _fused_kernel(emb_ref, mask_ref, embln_ref, wqkv_ref, wo_ref, w1_ref, w2_ref,
                  pv_ref, wihf_ref, whhf_ref, wihb_ref, whhb_ref, wcls_ref, lb_ref,
                  o_ref):
    # ---- embedding LayerNorm ----
    x = _layernorm(emb_ref[...], embln_ref[0:1, :], embln_ref[1:2, :], LN_EPS)  # (B*S, HID)
    mask = mask_ref[...]                                         # (B, S) additive bias

    # ---- encoder layers (statically unrolled; weights indexed by layer) ----
    for l in range(NLAYER):
        wqkv = wqkv_ref[l]                                       # (HID, 3*HID)
        wo = wo_ref[l]                                           # (HID, HID)
        w1 = w1_ref[l]                                           # (HID, INTER)
        w2 = w2_ref[l]                                           # (INTER, HID)
        pv = pv_ref[l]                                           # (8, 96) packed params
        bqkv = pv[ROW_BQKV:ROW_BQKV + 1, :]
        bo   = pv[ROW_BO:ROW_BO + 1, 0:HID]
        ln1g = pv[ROW_LN1G:ROW_LN1G + 1, 0:HID]
        ln1b = pv[ROW_LN1B:ROW_LN1B + 1, 0:HID]
        b1   = pv[ROW_B1:ROW_B1 + 1, 0:INTER]
        b2   = pv[ROW_B2:ROW_B2 + 1, 0:HID]
        ln2g = pv[ROW_LN2G:ROW_LN2G + 1, 0:HID]
        ln2b = pv[ROW_LN2B:ROW_LN2B + 1, 0:HID]

        # fused Q/K/V projection: one MXU matmul
        qkv = jnp.dot(x, wqkv, preferred_element_type=jnp.float32) + bqkv   # (B*S, 3*HID)

        # multi-head scaled-dot-product attention, contexts kept in vregs (no scratch)
        ctx_rows = []
        for b in range(B):
            r0 = b * S
            bias = mask[b:b + 1, :]                              # (1, S)
            head_ctx = []
            for h in range(NHEAD):
                c0 = h * DHEAD
                qh = qkv[r0:r0 + S, c0:c0 + DHEAD]
                kh = qkv[r0:r0 + S, HID + c0:HID + c0 + DHEAD]
                vh = qkv[r0:r0 + S, 2 * HID + c0:2 * HID + c0 + DHEAD]
                s = lax.dot_general(qh, kh, (((1,), (1,)), ((), ())),
                                    preferred_element_type=jnp.float32) * ATT_SCALE
                s = s + bias
                s = s - jnp.max(s, axis=-1, keepdims=True)
                p = jnp.exp(s)
                p = p * pl.reciprocal(jnp.sum(p, axis=-1, keepdims=True), approx=True)
                head_ctx.append(jnp.dot(p, vh, preferred_element_type=jnp.float32))
            ctx_rows.append(jnp.concatenate(head_ctx, axis=1))   # (S, HID)
        ctx = jnp.concatenate(ctx_rows, axis=0)                  # (B*S, HID)

        attn = jnp.dot(ctx, wo, preferred_element_type=jnp.float32) + bo
        h1 = _layernorm(x + attn, ln1g, ln1b, LN_EPS)

        # FFN
        # TODO(synk): HuggingFace BERT uses exact erf-GELU; tanh approximation kept here.
        f = jax.nn.gelu(jnp.dot(h1, w1, preferred_element_type=jnp.float32) + b1,
                        approximate=True)
        f = jnp.dot(f, w2, preferred_element_type=jnp.float32) + b2
        x = _layernorm(h1 + f, ln2g, ln2b, LN_EPS)               # last_hidden_state (B*S, HID)

    # ---- BiLSTM + Flatten + classifier, fully folded into the recurrence ----
    lb = lb_ref[...]                                             # (3, H4)
    b_f = lb[0:1, :]
    b_b = lb[1:2, :]
    b_cls = lb[2:3, 0:NCLASS]

    # in-register time-major shuffle (replaces the old host-side transpose + HBM roundtrip)
    x_tm = jnp.concatenate(
        [x[b * S + t:b * S + t + 1, :] for t in range(S) for b in range(B)], axis=0)

    # hoisted input projections: one MXU matmul per direction instead of S tiny ones
    gx_f = jnp.dot(x_tm, wihf_ref[...], preferred_element_type=jnp.float32) + b_f  # (S*B, 4H)
    gx_b = jnp.dot(x_tm, wihb_ref[...], preferred_element_type=jnp.float32) + b_b
    whh_f = whhf_ref[...]
    whh_b = whhb_ref[...]

    def cell(gx_t, hh, cc, whh):
        gates = gx_t + jnp.dot(hh, whh, preferred_element_type=jnp.float32)  # (B, 4H)
        i_g = jax.nn.sigmoid(gates[:, 0 * LSTM_H:1 * LSTM_H])   # PyTorch gate order i,f,g,o
        f_g = jax.nn.sigmoid(gates[:, 1 * LSTM_H:2 * LSTM_H])
        g_g = jnp.tanh(gates[:, 2 * LSTM_H:3 * LSTM_H])
        o_g = jax.nn.sigmoid(gates[:, 3 * LSTM_H:4 * LSTM_H])
        c_new = f_g * cc + i_g * g_g
        h_new = o_g * jnp.tanh(c_new)
        return h_new, c_new

    zeros = jnp.zeros((B, LSTM_H), jnp.float32)
    logits = jnp.zeros((B, NCLASS), jnp.float32)

    # forward direction; classifier columns for position t are Wcls rows [t*2H : t*2H+H]
    h, c = zeros, zeros
    for t in range(S):
        h, c = cell(gx_f[t * B:(t + 1) * B, :], h, c, whh_f)
        r0 = t * 2 * LSTM_H
        logits = logits + jnp.dot(h, wcls_ref[r0:r0 + LSTM_H, :],
                                  preferred_element_type=jnp.float32)

    # backward direction; Wcls rows [t*2H+H : (t+1)*2H]
    h, c = zeros, zeros
    for t in range(S - 1, -1, -1):
        h, c = cell(gx_b[t * B:(t + 1) * B, :], h, c, whh_b)
        r0 = t * 2 * LSTM_H + LSTM_H
        logits = logits + jnp.dot(h, wcls_ref[r0:r0 + LSTM_H, :],
                                  preferred_element_type=jnp.float32)

    o_ref[...] = logits + b_cls


def fused_forward_pallas(emb2d, mask_bias, p):
    def full_spec(shape):
        nd = len(shape)
        return pl.BlockSpec(shape, lambda i, _nd=nd: (0,) * _nd)

    return pl.pallas_call(
        _fused_kernel,
        out_shape=jax.ShapeDtypeStruct((B, NCLASS), jnp.float32),
        grid=(1,),
        in_specs=[
            full_spec((B * S, HID)),                 # embeddings (pre-LN)
            full_spec((B, S)),                       # additive attention mask
            full_spec((2, HID)),                     # emb LN gamma/beta
            full_spec((NLAYER, HID, 3 * HID)),       # stacked Wqkv
            full_spec((NLAYER, HID, HID)),           # stacked Wo
            full_spec((NLAYER, HID, INTER)),         # stacked W1
            full_spec((NLAYER, INTER, HID)),         # stacked W2
            full_spec((NLAYER, NPROWS, PW)),         # stacked packed per-layer params
            full_spec((HID, H4)),                    # W_ih fwd
            full_spec((LSTM_H, H4)),                 # W_hh fwd
            full_spec((HID, H4)),                    # W_ih bwd
            full_spec((LSTM_H, H4)),                 # W_hh bwd
            full_spec((S * 2 * LSTM_H, NCLASS)),     # classifier weight
            full_spec((NBROWS, H4)),                 # packed LSTM/head biases
        ],
        out_specs=full_spec((B, NCLASS)),
        compiler_params=pltpu.CompilerParams(dimension_semantics=("arbitrary",)),
    )(emb2d, mask_bias, p["emb_ln"], p["wqkv"], p["wo"], p["w1"], p["w2"],
      p["pvec"], p["wih_f"], p["whh_f"], p["wih_b"], p["whh_b"], p["w_cls"], p["lb"])


# ------------------------------ params / glue ----------------------------------
def init_params(key):
    # TODO(synk): pretrained 'bert-base-uncased' weights cannot be loaded here;
    # deterministic synthetic init with matching (scaled-down) shapes instead.
    keys = iter(jax.random.split(key, 64))

    def normal(shape, scale=0.02):
        return scale * jax.random.normal(next(keys), shape, jnp.float32)

    ones = lambda n: jnp.ones((n,), jnp.float32)
    zeros = lambda n: jnp.zeros((n,), jnp.float32)
    pad = lambda v: jnp.pad(v, (0, PW - v.shape[0]))

    p = {
        "word_emb": normal((VOCAB, HID)),
        "pos_emb": normal((S, HID)),
        "type_emb": normal((2, HID)),
        "emb_ln": jnp.stack([ones(HID), zeros(HID)], axis=0),          # (2, HID)
    }

    wqkv, wo, w1, w2, pvec = [], [], [], [], []
    for _ in range(NLAYER):
        wqkv.append(normal((HID, 3 * HID)))        # fused Wq | Wk | Wv
        wo.append(normal((HID, HID)))
        w1.append(normal((HID, INTER)))
        w2.append(normal((INTER, HID)))
        pvec.append(jnp.stack([
            zeros(PW),          # bqkv (bq|bk|bv)
            pad(zeros(HID)),    # bo
            pad(ones(HID)),     # ln1 gamma
            pad(zeros(HID)),    # ln1 beta
            pad(zeros(INTER)),  # b1
            pad(zeros(HID)),    # b2
            pad(ones(HID)),     # ln2 gamma
            pad(zeros(HID)),    # ln2 beta
        ], axis=0))                                                      # (8, 96)
    p["wqkv"] = jnp.stack(wqkv)                    # (NLAYER, HID, 3*HID)
    p["wo"] = jnp.stack(wo)
    p["w1"] = jnp.stack(w1)
    p["w2"] = jnp.stack(w2)
    p["pvec"] = jnp.stack(pvec)                    # (NLAYER, 8, 96)

    # bidirectional LSTM (PyTorch gate order i,f,g,o; b = b_ih + b_hh folded together)
    p["wih_f"] = normal((HID, H4), 0.1)
    p["whh_f"] = normal((LSTM_H, H4), 0.1)
    p["wih_b"] = normal((HID, H4), 0.1)
    p["whh_b"] = normal((LSTM_H, H4), 0.1)
    # classifier head: in = seq * 2*LSTM_H (flatten of bi-LSTM output)
    p["w_cls"] = normal((S * 2 * LSTM_H, NCLASS), 0.1)
    p["lb"] = jnp.stack([zeros(H4), zeros(H4),
                         jnp.pad(zeros(NCLASS), (0, H4 - NCLASS))], axis=0)  # (3, H4)
    return p


def custom_bert_forward(params, texts, attn_mask):
    # BERT additive attention mask: 0 where attended, -1e9 where masked.
    # (A fully-masked query row would yield a uniform attention distribution.)
    mask_bias = (1.0 - attn_mask.astype(jnp.float32)) * -1e9            # (B, S)

    # embeddings (gather + adds in plain XLA); everything else is ONE fused Pallas kernel
    we = params["word_emb"][texts]                                       # (B, S, HID)
    pe = params["pos_emb"][None, :, :]
    te = params["type_emb"][0][None, None, :]                            # token_type_ids == 0
    emb = (we + pe + te).reshape(B * S, HID)

    logits = fused_forward_pallas(emb, mask_bias, params)                # (B, 39)
    return logits


if __name__ == "__main__":
    key = jax.random.PRNGKey(0)
    k_param, k_ids = jax.random.split(key)
    params = init_params(k_param)

    texts = jax.random.randint(k_ids, (B, S), 0, VOCAB, dtype=jnp.int32)
    attn_mask = jnp.ones((B, S), jnp.int32).at[1, S - 2:].set(0)   # pad tail of batch 1

    fwd = jax.jit(custom_bert_forward)
    logits = fwd(params, texts, attn_mask)
    jax.block_until_ready(logits)
    assert logits.shape == (B, NCLASS) and logits.dtype == jnp.float32
    print("KERNEL_OK")
</pallas_src>

<mosaic_0001>
module attributes {stable_mosaic.version = 11 : i64} {
  func.func @_fused_kernel(%arg0: i32, %arg1: memref<16x32xf32, #tpu.memory_space<vmem>>, %arg2: memref<2x8xf32, #tpu.memory_space<vmem>>, %arg3: memref<2x32xf32, #tpu.memory_space<vmem>>, %arg4: memref<2x32x96xf32, #tpu.memory_space<vmem>>, %arg5: memref<2x32x32xf32, #tpu.memory_space<vmem>>, %arg6: memref<2x32x64xf32, #tpu.memory_space<vmem>>, %arg7: memref<2x64x32xf32, #tpu.memory_space<vmem>>, %arg8: memref<2x8x96xf32, #tpu.memory_space<vmem>>, %arg9: memref<32x64xf32, #tpu.memory_space<vmem>>, %arg10: memref<16x64xf32, #tpu.memory_space<vmem>>, %arg11: memref<32x64xf32, #tpu.memory_space<vmem>>, %arg12: memref<16x64xf32, #tpu.memory_space<vmem>>, %arg13: memref<256x39xf32, #tpu.memory_space<vmem>>, %arg14: memref<3x64xf32, #tpu.memory_space<vmem>>, %arg15: memref<2x39xf32, #tpu.memory_space<vmem>>) attributes {dimension_semantics = [#tpu.dimension_semantics<arbitrary>], iteration_bounds = array<i64: 1>, scalar_prefetch = 0 : i64, scratch_operands = 0 : i64, tpu.core_type = #tpu.core_type<tc>, window_params = [{pipeline_mode = #tpu.pipeline_mode<synchronous>, transform_indices = @transform_0, window_bounds = array<i64: 16, 32>}, {pipeline_mode = #tpu.pipeline_mode<synchronous>, transform_indices = @transform_1, window_bounds = array<i64: 2, 8>}, {pipeline_mode = #tpu.pipeline_mode<synchronous>, transform_indices = @transform_2, window_bounds = array<i64: 2, 32>}, {pipeline_mode = #tpu.pipeline_mode<synchronous>, transform_indices = @transform_3, window_bounds = array<i64: 2, 32, 96>}, {pipeline_mode = #tpu.pipeline_mode<synchronous>, transform_indices = @transform_4, window_bounds = array<i64: 2, 32, 32>}, {pipeline_mode = #tpu.pipeline_mode<synchronous>, transform_indices = @transform_5, window_bounds = array<i64: 2, 32, 64>}, {pipeline_mode = #tpu.pipeline_mode<synchronous>, transform_indices = @transform_6, window_bounds = array<i64: 2, 64, 32>}, {pipeline_mode = #tpu.pipeline_mode<synchronous>, transform_indices = @transform_7, window_bounds = array<i64: 2, 8, 96>}, {pipeline_mode = #tpu.pipeline_mode<synchronous>, transform_indices = @transform_8, window_bounds = array<i64: 32, 64>}, {pipeline_mode = #tpu.pipeline_mode<synchronous>, transform_indices = @transform_9, window_bounds = array<i64: 16, 64>}, {pipeline_mode = #tpu.pipeline_mode<synchronous>, transform_indices = @transform_10, window_bounds = array<i64: 32, 64>}, {pipeline_mode = #tpu.pipeline_mode<synchronous>, transform_indices = @transform_11, window_bounds = array<i64: 16, 64>}, {pipeline_mode = #tpu.pipeline_mode<synchronous>, transform_indices = @transform_12, window_bounds = array<i64: 256, 39>}, {pipeline_mode = #tpu.pipeline_mode<synchronous>, transform_indices = @transform_13, window_bounds = array<i64: 3, 64>}, {pipeline_mode = #tpu.pipeline_mode<synchronous>, transform_indices = @transform_14, window_bounds = array<i64: 2, 39>}]} {
    %c0 = arith.constant 0 : index
    %c0_0 = arith.constant 0 : index
    %0 = vector.load %arg1[%c0, %c0_0] : memref<16x32xf32, #tpu.memory_space<vmem>>, vector<16x32xf32>
    %c0_1 = arith.constant 0 : index
    %c0_2 = arith.constant 0 : index
    %1 = vector.load %arg3[%c0_1, %c0_2] : memref<2x32xf32, #tpu.memory_space<vmem>>, vector<1x32xf32>
    %c1 = arith.constant 1 : index
    %c0_3 = arith.constant 0 : index
    %2 = vector.load %arg3[%c1, %c0_3] : memref<2x32xf32, #tpu.memory_space<vmem>>, vector<1x32xf32>
    %cst = arith.constant dense<0.000000e+00> : vector<16xf32>
    %3 = vector.multi_reduction <add>, %0, %cst [1] : vector<16x32xf32> to vector<16xf32>
    %4 = vector.shape_cast %3 : vector<16xf32> to vector<16x1xf32>
    %cst_4 = arith.constant 3.200000e+01 : f32
    %5 = vector.broadcast %cst_4 : f32 to vector<16x1xf32>
    %6 = arith.divf %4, %5 : vector<16x1xf32>
    %7 = vector.broadcast %6 : vector<16x1xf32> to vector<16x32xf32>
    %8 = arith.subf %0, %7 : vector<16x32xf32>
    %9 = arith.mulf %8, %8 : vector<16x32xf32>
    %cst_5 = arith.constant dense<0.000000e+00> : vector<16xf32>
    %10 = vector.multi_reduction <add>, %9, %cst_5 [1] : vector<16x32xf32> to vector<16xf32>
    %11 = vector.shape_cast %10 : vector<16xf32> to vector<16x1xf32>
    %cst_6 = arith.constant 3.200000e+01 : f32
    %12 = vector.broadcast %cst_6 : f32 to vector<16x1xf32>
    %13 = arith.divf %11, %12 : vector<16x1xf32>
    %14 = vector.broadcast %6 : vector<16x1xf32> to vector<16x32xf32>
    %15 = arith.subf %0, %14 : vector<16x32xf32>
    %cst_7 = arith.constant 9.99999996E-13 : f32
    %16 = vector.broadcast %cst_7 : f32 to vector<16x1xf32>
    %17 = arith.addf %13, %16 : vector<16x1xf32>
    %18 = math.rsqrt %17 : vector<16x1xf32>
    %19 = vector.broadcast %18 : vector<16x1xf32> to vector<16x32xf32>
    %20 = arith.mulf %15, %19 : vector<16x32xf32>
    %21 = vector.broadcast %1 : vector<1x32xf32> to vector<16x32xf32>
    %22 = arith.mulf %20, %21 : vector<16x32xf32>
    %23 = vector.broadcast %2 : vector<1x32xf32> to vector<16x32xf32>
    %24 = arith.addf %22, %23 : vector<16x32xf32>
    %c0_8 = arith.constant 0 : index
    %c0_9 = arith.constant 0 : index
    %25 = vector.load %arg2[%c0_8, %c0_9] : memref<2x8xf32, #tpu.memory_space<vmem>>, vector<2x8xf32>
    %c0_10 = arith.constant 0 : index
    %c0_11 = arith.constant 0 : index
    %c0_12 = arith.constant 0 : index
    %26 = vector.load %arg4[%c0_10, %c0_11, %c0_12] : memref<2x32x96xf32, #tpu.memory_space<vmem>>, vector<1x32x96xf32>
    %27 = vector.shape_cast %26 : vector<1x32x96xf32> to vector<32x96xf32>
    %c0_13 = arith.constant 0 : index
    %c0_14 = arith.constant 0 : index
    %c0_15 = arith.constant 0 : index
    %28 = vector.load %arg5[%c0_13, %c0_14, %c0_15] : memref<2x32x32xf32, #tpu.memory_space<vmem>>, vector<1x32x32xf32>
    %29 = vector.shape_cast %28 : vector<1x32x32xf32> to vector<32x32xf32>
    %c0_16 = arith.constant 0 : index
    %c0_17 = arith.constant 0 : index
    %c0_18 = arith.constant 0 : index
    %30 = vector.load %arg6[%c0_16, %c0_17, %c0_18] : memref<2x32x64xf32, #tpu.memory_space<vmem>>, vector<1x32x64xf32>
    %31 = vector.shape_cast %30 : vector<1x32x64xf32> to vector<32x64xf32>
    %c0_19 = arith.constant 0 : index
    %c0_20 = arith.constant 0 : index
    %c0_21 = arith.constant 0 : index
    %32 = vector.load %arg7[%c0_19, %c0_20, %c0_21] : memref<2x64x32xf32, #tpu.memory_space<vmem>>, vector<1x64x32xf32>
    %33 = vector.shape_cast %32 : vector<1x64x32xf32> to vector<64x32xf32>
    %c0_22 = arith.constant 0 : index
    %c0_23 = arith.constant 0 : index
    %c0_24 = arith.constant 0 : index
    %34 = vector.load %arg8[%c0_22, %c0_23, %c0_24] : memref<2x8x96xf32, #tpu.memory_space<vmem>>, vector<1x8x96xf32>
    %35 = vector.shape_cast %34 : vector<1x8x96xf32> to vector<8x96xf32>
    %36 = vector.extract_strided_slice %35 {offsets = [0, 0], sizes = [1, 96], strides = [1, 1]} : vector<8x96xf32> to vector<1x96xf32>
    %37 = vector.extract_strided_slice %35 {offsets = [1, 0], sizes = [1, 32], strides = [1, 1]} : vector<8x96xf32> to vector<1x32xf32>
    %38 = vector.extract_strided_slice %35 {offsets = [2, 0], sizes = [1, 32], strides = [1, 1]} : vector<8x96xf32> to vector<1x32xf32>
    %39 = vector.extract_strided_slice %35 {offsets = [3, 0], sizes = [1, 32], strides = [1, 1]} : vector<8x96xf32> to vector<1x32xf32>
    %40 = vector.extract_strided_slice %35 {offsets = [4, 0], sizes = [1, 64], strides = [1, 1]} : vector<8x96xf32> to vector<1x64xf32>
    %41 = vector.extract_strided_slice %35 {offsets = [5, 0], sizes = [1, 32], strides = [1, 1]} : vector<8x96xf32> to vector<1x32xf32>
    %42 = vector.extract_strided_slice %35 {offsets = [6, 0], sizes = [1, 32], strides = [1, 1]} : vector<8x96xf32> to vector<1x32xf32>
    %43 = vector.extract_strided_slice %35 {offsets = [7, 0], sizes = [1, 32], strides = [1, 1]} : vector<8x96xf32> to vector<1x32xf32>
    %cst_25 = arith.constant dense<0.000000e+00> : vector<16x96xf32>
    %44 = tpu.matmul %24, %27, %cst_25 {dimension_numbers = #tpu.dot_dimension_numbers<[1], [0], [0], [1], [0, 0, 1, 1], [], []>} : vector<16x32xf32>, vector<32x96xf32>, vector<16x96xf32> -> vector<16x96xf32>
    %45 = vector.broadcast %36 : vector<1x96xf32> to vector<16x96xf32>
    %46 = arith.addf %44, %45 : vector<16x96xf32>
    %47 = vector.extract_strided_slice %25 {offsets = [0, 0], sizes = [1, 8], strides = [1, 1]} : vector<2x8xf32> to vector<1x8xf32>
    %48 = vector.extract_strided_slice %46 {offsets = [0, 0], sizes = [8, 8], strides = [1, 1]} : vector<16x96xf32> to vector<8x8xf32>
    %49 = vector.extract_strided_slice %46 {offsets = [0, 32], sizes = [8, 8], strides = [1, 1]} : vector<16x96xf32> to vector<8x8xf32>
    %50 = vector.extract_strided_slice %46 {offsets = [0, 64], sizes = [8, 8], strides = [1, 1]} : vector<16x96xf32> to vector<8x8xf32>
    %cst_26 = arith.constant dense<0.000000e+00> : vector<8x8xf32>
    %51 = tpu.matmul %48, %49, %cst_26 {dimension_numbers = #tpu.dot_dimension_numbers<[1], [1], [0], [0], [0, 0, 1, 0], [], []>} : vector<8x8xf32>, vector<8x8xf32>, vector<8x8xf32> -> vector<8x8xf32>
    %cst_27 = arith.constant 0.353553385 : f32
    %52 = vector.broadcast %cst_27 : f32 to vector<8x8xf32>
    %53 = arith.mulf %51, %52 : vector<8x8xf32>
    %54 = vector.broadcast %47 : vector<1x8xf32> to vector<8x8xf32>
    %55 = arith.addf %53, %54 : vector<8x8xf32>
    %cst_28 = arith.constant dense<0xFF800000> : vector<8xf32>
    %56 = vector.multi_reduction <maximumf>, %55, %cst_28 [1] : vector<8x8xf32> to vector<8xf32>
    %57 = vector.shape_cast %56 : vector<8xf32> to vector<8x1xf32>
    %58 = vector.broadcast %57 : vector<8x1xf32> to vector<8x8xf32>
    %59 = arith.subf %55, %58 : vector<8x8xf32>
    %60 = math.exp %59 : vector<8x8xf32>
    %cst_29 = arith.constant dense<0.000000e+00> : vector<8xf32>
    %61 = vector.multi_reduction <add>, %60, %cst_29 [1] : vector<8x8xf32> to vector<8xf32>
    %62 = vector.shape_cast %61 : vector<8xf32> to vector<8x1xf32>
    %63 = tpu.reciprocal %62 {approx = true} : vector<8x1xf32> -> vector<8x1xf32>
    %64 = vector.broadcast %63 : vector<8x1xf32> to vector<8x8xf32>
    %65 = arith.mulf %60, %64 : vector<8x8xf32>
    %cst_30 = arith.constant dense<0.000000e+00> : vector<8x8xf32>
    %66 = tpu.matmul %65, %50, %cst_30 {dimension_numbers = #tpu.dot_dimension_numbers<[1], [0], [0], [1], [0, 0, 1, 1], [], []>} : vector<8x8xf32>, vector<8x8xf32>, vector<8x8xf32> -> vector<8x8xf32>
    %67 = vector.extract_strided_slice %46 {offsets = [0, 8], sizes = [8, 8], strides = [1, 1]} : vector<16x96xf32> to vector<8x8xf32>
    %68 = vector.extract_strided_slice %46 {offsets = [0, 40], sizes = [8, 8], strides = [1, 1]} : vector<16x96xf32> to vector<8x8xf32>
    %69 = vector.extract_strided_slice %46 {offsets = [0, 72], sizes = [8, 8], strides = [1, 1]} : vector<16x96xf32> to vector<8x8xf32>
    %cst_31 = arith.constant dense<0.000000e+00> : vector<8x8xf32>
    %70 = tpu.matmul %67, %68, %cst_31 {dimension_numbers = #tpu.dot_dimension_numbers<[1], [1], [0], [0], [0, 0, 1, 0], [], []>} : vector<8x8xf32>, vector<8x8xf32>, vector<8x8xf32> -> vector<8x8xf32>
    %cst_32 = arith.constant 0.353553385 : f32
    %71 = vector.broadcast %cst_32 : f32 to vector<8x8xf32>
    %72 = arith.mulf %70, %71 : vector<8x8xf32>
    %73 = vector.broadcast %47 : vector<1x8xf32> to vector<8x8xf32>
    %74 = arith.addf %72, %73 : vector<8x8xf32>
    %cst_33 = arith.constant dense<0xFF800000> : vector<8xf32>
    %75 = vector.multi_reduction <maximumf>, %74, %cst_33 [1] : vector<8x8xf32> to vector<8xf32>
    %76 = vector.shape_cast %75 : vector<8xf32> to vector<8x1xf32>
    %77 = vector.broadcast %76 : vector<8x1xf32> to vector<8x8xf32>
    %78 = arith.subf %74, %77 : vector<8x8xf32>
    %79 = math.exp %78 : vector<8x8xf32>
    %cst_34 = arith.constant dense<0.000000e+00> : vector<8xf32>
    %80 = vector.multi_reduction <add>, %79, %cst_34 [1] : vector<8x8xf32> to vector<8xf32>
    %81 = vector.shape_cast %80 : vector<8xf32> to vector<8x1xf32>
    %82 = tpu.reciprocal %81 {approx = true} : vector<8x1xf32> -> vector<8x1xf32>
    %83 = vector.broadcast %82 : vector<8x1xf32> to vector<8x8xf32>
    %84 = arith.mulf %79, %83 : vector<8x8xf32>
    %cst_35 = arith.constant dense<0.000000e+00> : vector<8x8xf32>
    %85 = tpu.matmul %84, %69, %cst_35 {dimension_numbers = #tpu.dot_dimension_numbers<[1], [0], [0], [1], [0, 0, 1, 1], [], []>} : vector<8x8xf32>, vector<8x8xf32>, vector<8x8xf32> -> vector<8x8xf32>
    %86 = vector.extract_strided_slice %46 {offsets = [0, 16], sizes = [8, 8], strides = [1, 1]} : vector<16x96xf32> to vector<8x8xf32>
    %87 = vector.extract_strided_slice %46 {offsets = [0, 48], sizes = [8, 8], strides = [1, 1]} : vector<16x96xf32> to vector<8x8xf32>
    %88 = vector.extract_strided_slice %46 {offsets = [0, 80], sizes = [8, 8], strides = [1, 1]} : vector<16x96xf32> to vector<8x8xf32>
    %cst_36 = arith.constant dense<0.000000e+00> : vector<8x8xf32>
    %89 = tpu.matmul %86, %87, %cst_36 {dimension_numbers = #tpu.dot_dimension_numbers<[1], [1], [0], [0], [0, 0, 1, 0], [], []>} : vector<8x8xf32>, vector<8x8xf32>, vector<8x8xf32> -> vector<8x8xf32>
    %cst_37 = arith.constant 0.353553385 : f32
    %90 = vector.broadcast %cst_37 : f32 to vector<8x8xf32>
    %91 = arith.mulf %89, %90 : vector<8x8xf32>
    %92 = vector.broadcast %47 : vector<1x8xf32> to vector<8x8xf32>
    %93 = arith.addf %91, %92 : vector<8x8xf32>
    %cst_38 = arith.constant dense<0xFF800000> : vector<8xf32>
    %94 = vector.multi_reduction <maximumf>, %93, %cst_38 [1] : vector<8x8xf32> to vector<8xf32>
    %95 = vector.shape_cast %94 : vector<8xf32> to vector<8x1xf32>
    %96 = vector.broadcast %95 : vector<8x1xf32> to vector<8x8xf32>
    %97 = arith.subf %93, %96 : vector<8x8xf32>
    %98 = math.exp %97 : vector<8x8xf32>
    %cst_39 = arith.constant dense<0.000000e+00> : vector<8xf32>
    %99 = vector.multi_reduction <add>, %98, %cst_39 [1] : vector<8x8xf32> to vector<8xf32>
    %100 = vector.shape_cast %99 : vector<8xf32> to vector<8x1xf32>
    %101 = tpu.reciprocal %100 {approx = true} : vector<8x1xf32> -> vector<8x1xf32>
    %102 = vector.broadcast %101 : vector<8x1xf32> to vector<8x8xf32>
    %103 = arith.mulf %98, %102 : vector<8x8xf32>
    %cst_40 = arith.constant dense<0.000000e+00> : vector<8x8xf32>
    %104 = tpu.matmul %103, %88, %cst_40 {dimension_numbers = #tpu.dot_dimension_numbers<[1], [0], [0], [1], [0, 0, 1, 1], [], []>} : vector<8x8xf32>, vector<8x8xf32>, vector<8x8xf32> -> vector<8x8xf32>
    %105 = vector.extract_strided_slice %46 {offsets = [0, 24], sizes = [8, 8], strides = [1, 1]} : vector<16x96xf32> to vector<8x8xf32>
    %106 = vector.extract_strided_slice %46 {offsets = [0, 56], sizes = [8, 8], strides = [1, 1]} : vector<16x96xf32> to vector<8x8xf32>
    %107 = vector.extract_strided_slice %46 {offsets = [0, 88], sizes = [8, 8], strides = [1, 1]} : vector<16x96xf32> to vector<8x8xf32>
    %cst_41 = arith.constant dense<0.000000e+00> : vector<8x8xf32>
    %108 = tpu.matmul %105, %106, %cst_41 {dimension_numbers = #tpu.dot_dimension_numbers<[1], [1], [0], [0], [0, 0, 1, 0], [], []>} : vector<8x8xf32>, vector<8x8xf32>, vector<8x8xf32> -> vector<8x8xf32>
    %cst_42 = arith.constant 0.353553385 : f32
    %109 = vector.broadcast %cst_42 : f32 to vector<8x8xf32>
    %110 = arith.mulf %108, %109 : vector<8x8xf32>
    %111 = vector.broadcast %47 : vector<1x8xf32> to vector<8x8xf32>
    %112 = arith.addf %110, %111 : vector<8x8xf32>
    %cst_43 = arith.constant dense<0xFF800000> : vector<8xf32>
    %113 = vector.multi_reduction <maximumf>, %112, %cst_43 [1] : vector<8x8xf32> to vector<8xf32>
    %114 = vector.shape_cast %113 : vector<8xf32> to vector<8x1xf32>
    %115 = vector.broadcast %114 : vector<8x1xf32> to vector<8x8xf32>
    %116 = arith.subf %112, %115 : vector<8x8xf32>
    %117 = math.exp %116 : vector<8x8xf32>
    %cst_44 = arith.constant dense<0.000000e+00> : vector<8xf32>
    %118 = vector.multi_reduction <add>, %117, %cst_44 [1] : vector<8x8xf32> to vector<8xf32>
    %119 = vector.shape_cast %118 : vector<8xf32> to vector<8x1xf32>
    %120 = tpu.reciprocal %119 {approx = true} : vector<8x1xf32> -> vector<8x1xf32>
    %121 = vector.broadcast %120 : vector<8x1xf32> to vector<8x8xf32>
    %122 = arith.mulf %117, %121 : vector<8x8xf32>
    %cst_45 = arith.constant dense<0.000000e+00> : vector<8x8xf32>
    %123 = tpu.matmul %122, %107, %cst_45 {dimension_numbers = #tpu.dot_dimension_numbers<[1], [0], [0], [1], [0, 0, 1, 1], [], []>} : vector<8x8xf32>, vector<8x8xf32>, vector<8x8xf32> -> vector<8x8xf32>
    %124 = tpu.concatenate %66, %85, %104, %123 in 1 : vector<8x8xf32>, vector<8x8xf32>, vector<8x8xf32>, vector<8x8xf32> -> vector<8x32xf32>
    %125 = vector.extract_strided_slice %25 {offsets = [1, 0], sizes = [1, 8], strides = [1, 1]} : vector<2x8xf32> to vector<1x8xf32>
    %126 = vector.extract_strided_slice %46 {offsets = [8, 0], sizes = [8, 8], strides = [1, 1]} : vector<16x96xf32> to vector<8x8xf32>
    %127 = vector.extract_strided_slice %46 {offsets = [8, 32], sizes = [8, 8], strides = [1, 1]} : vector<16x96xf32> to vector<8x8xf32>
    %128 = vector.extract_strided_slice %46 {offsets = [8, 64], sizes = [8, 8], strides = [1, 1]} : vector<16x96xf32> to vector<8x8xf32>
    %cst_46 = arith.constant dense<0.000000e+00> : vector<8x8xf32>
    %129 = tpu.matmul %126, %127, %cst_46 {dimension_numbers = #tpu.dot_dimension_numbers<[1], [1], [0], [0], [0, 0, 1, 0], [], []>} : vector<8x8xf32>, vector<8x8xf32>, vector<8x8xf32> -> vector<8x8xf32>
    %cst_47 = arith.constant 0.353553385 : f32
    %130 = vector.broadcast %cst_47 : f32 to vector<8x8xf32>
    %131 = arith.mulf %129, %130 : vector<8x8xf32>
    %132 = vector.broadcast %125 : vector<1x8xf32> to vector<8x8xf32>
    %133 = arith.addf %131, %132 : vector<8x8xf32>
    %cst_48 = arith.constant dense<0xFF800000> : vector<8xf32>
    %134 = vector.multi_reduction <maximumf>, %133, %cst_48 [1] : vector<8x8xf32> to vector<8xf32>
    %135 = vector.shape_cast %134 : vector<8xf32> to vector<8x1xf32>
    %136 = vector.broadcast %135 : vector<8x1xf32> to vector<8x8xf32>
    %137 = arith.subf %133, %136 : vector<8x8xf32>
    %138 = math.exp %137 : vector<8x8xf32>
    %cst_49 = arith.constant dense<0.000000e+00> : vector<8xf32>
    %139 = vector.multi_reduction <add>, %138, %cst_49 [1] : vector<8x8xf32> to vector<8xf32>
    %140 = vector.shape_cast %139 : vector<8xf32> to vector<8x1xf32>
    %141 = tpu.reciprocal %140 {approx = true} : vector<8x1xf32> -> vector<8x1xf32>
    %142 = vector.broadcast %141 : vector<8x1xf32> to vector<8x8xf32>
    %143 = arith.mulf %138, %142 : vector<8x8xf32>
    %cst_50 = arith.constant dense<0.000000e+00> : vector<8x8xf32>
    %144 = tpu.matmul %143, %128, %cst_50 {dimension_numbers = #tpu.dot_dimension_numbers<[1], [0], [0], [1], [0, 0, 1, 1], [], []>} : vector<8x8xf32>, vector<8x8xf32>, vector<8x8xf32> -> vector<8x8xf32>
    %145 = vector.extract_strided_slice %46 {offsets = [8, 8], sizes = [8, 8], strides = [1, 1]} : vector<16x96xf32> to vector<8x8xf32>
    %146 = vector.extract_strided_slice %46 {offsets = [8, 40], sizes = [8, 8], strides = [1, 1]} : vector<16x96xf32> to vector<8x8xf32>
    %147 = vector.extract_strided_slice %46 {offsets = [8, 72], sizes = [8, 8], strides = [1, 1]} : vector<16x96xf32> to vector<8x8xf32>
    %cst_51 = arith.constant dense<0.000000e+00> : vector<8x8xf32>
    %148 = tpu.matmul %145, %146, %cst_51 {dimension_numbers = #tpu.dot_dimension_numbers<[1], [1], [0], [0], [0, 0, 1, 0], [], []>} : vector<8x8xf32>, vector<8x8xf32>, vector<8x8xf32> -> vector<8x8xf32>
    %cst_52 = arith.constant 0.353553385 : f32
    %149 = vector.broadcast %cst_52 : f32 to vector<8x8xf32>
    %150 = arith.mulf %148, %149 : vector<8x8xf32>
    %151 = vector.broadcast %125 : vector<1x8xf32> to vector<8x8xf32>
    %152 = arith.addf %150, %151 : vector<8x8xf32>
    %cst_53 = arith.constant dense<0xFF800000> : vector<8xf32>
    %153 = vector.multi_reduction <maximumf>, %152, %cst_53 [1] : vector<8x8xf32> to vector<8xf32>
    %154 = vector.shape_cast %153 : vector<8xf32> to vector<8x1xf32>
    %155 = vector.broadcast %154 : vector<8x1xf32> to vector<8x8xf32>
    %156 = arith.subf %152, %155 : vector<8x8xf32>
    %157 = math.exp %156 : vector<8x8xf32>
    %cst_54 = arith.constant dense<0.000000e+00> : vector<8xf32>
    %158 = vector.multi_reduction <add>, %157, %cst_54 [1] : vector<8x8xf32> to vector<8xf32>
    %159 = vector.shape_cast %158 : vector<8xf32> to vector<8x1xf32>
    %160 = tpu.reciprocal %159 {approx = true} : vector<8x1xf32> -> vector<8x1xf32>
    %161 = vector.broadcast %160 : vector<8x1xf32> to vector<8x8xf32>
    %162 = arith.mulf %157, %161 : vector<8x8xf32>
    %cst_55 = arith.constant dense<0.000000e+00> : vector<8x8xf32>
    %163 = tpu.matmul %162, %147, %cst_55 {dimension_numbers = #tpu.dot_dimension_numbers<[1], [0], [0], [1], [0, 0, 1, 1], [], []>} : vector<8x8xf32>, vector<8x8xf32>, vector<8x8xf32> -> vector<8x8xf32>
    %164 = vector.extract_strided_slice %46 {offsets = [8, 16], sizes = [8, 8], strides = [1, 1]} : vector<16x96xf32> to vector<8x8xf32>
    %165 = vector.extract_strided_slice %46 {offsets = [8, 48], sizes = [8, 8], strides = [1, 1]} : vector<16x96xf32> to vector<8x8xf32>
    %166 = vector.extract_strided_slice %46 {offsets = [8, 80], sizes = [8, 8], strides = [1, 1]} : vector<16x96xf32> to vector<8x8xf32>
    %cst_56 = arith.constant dense<0.000000e+00> : vector<8x8xf32>
    %167 = tpu.matmul %164, %165, %cst_56 {dimension_numbers = #tpu.dot_dimension_numbers<[1], [1], [0], [0], [0, 0, 1, 0], [], []>} : vector<8x8xf32>, vector<8x8xf32>, vector<8x8xf32> -> vector<8x8xf32>
    %cst_57 = arith.constant 0.353553385 : f32
    %168 = vector.broadcast %cst_57 : f32 to vector<8x8xf32>
    %169 = arith.mulf %167, %168 : vector<8x8xf32>
    %170 = vector.broadcast %125 : vector<1x8xf32> to vector<8x8xf32>
    %171 = arith.addf %169, %170 : vector<8x8xf32>
    %cst_58 = arith.constant dense<0xFF800000> : vector<8xf32>
    %172 = vector.multi_reduction <maximumf>, %171, %cst_58 [1] : vector<8x8xf32> to vector<8xf32>
    %173 = vector.shape_cast %172 : vector<8xf32> to vector<8x1xf32>
    %174 = vector.broadcast %173 : vector<8x1xf32> to vector<8x8xf32>
    %175 = arith.subf %171, %174 : vector<8x8xf32>
    %176 = math.exp %175 : vector<8x8xf32>
    %cst_59 = arith.constant dense<0.000000e+00> : vector<8xf32>
    %177 = vector.multi_reduction <add>, %176, %cst_59 [1] : vector<8x8xf32> to vector<8xf32>
    %178 = vector.shape_cast %177 : vector<8xf32> to vector<8x1xf32>
    %179 = tpu.reciprocal %178 {approx = true} : vector<8x1xf32> -> vector<8x1xf32>
    %180 = vector.broadcast %179 : vector<8x1xf32> to vector<8x8xf32>
    %181 = arith.mulf %176, %180 : vector<8x8xf32>
    %cst_60 = arith.constant dense<0.000000e+00> : vector<8x8xf32>
    %182 = tpu.matmul %181, %166, %cst_60 {dimension_numbers = #tpu.dot_dimension_numbers<[1], [0], [0], [1], [0, 0, 1, 1], [], []>} : vector<8x8xf32>, vector<8x8xf32>, vector<8x8xf32> -> vector<8x8xf32>
    %183 = vector.extract_strided_slice %46 {offsets = [8, 24], sizes = [8, 8], strides = [1, 1]} : vector<16x96xf32> to vector<8x8xf32>
    %184 = vector.extract_strided_slice %46 {offsets = [8, 56], sizes = [8, 8], strides = [1, 1]} : vector<16x96xf32> to vector<8x8xf32>
    %185 = vector.extract_strided_slice %46 {offsets = [8, 88], sizes = [8, 8], strides = [1, 1]} : vector<16x96xf32> to vector<8x8xf32>
    %cst_61 = arith.constant dense<0.000000e+00> : vector<8x8xf32>
    %186 = tpu.matmul %183, %184, %cst_61 {dimension_numbers = #tpu.dot_dimension_numbers<[1], [1], [0], [0], [0, 0, 1, 0], [], []>} : vector<8x8xf32>, vector<8x8xf32>, vector<8x8xf32> -> vector<8x8xf32>
    %cst_62 = arith.constant 0.353553385 : f32
    %187 = vector.broadcast %cst_62 : f32 to vector<8x8xf32>
    %188 = arith.mulf %186, %187 : vector<8x8xf32>
    %189 = vector.broadcast %125 : vector<1x8xf32> to vector<8x8xf32>
    %190 = arith.addf %188, %189 : vector<8x8xf32>
    %cst_63 = arith.constant dense<0xFF800000> : vector<8xf32>
    %191 = vector.multi_reduction <maximumf>, %190, %cst_63 [1] : vector<8x8xf32> to vector<8xf32>
    %192 = vector.shape_cast %191 : vector<8xf32> to vector<8x1xf32>
    %193 = vector.broadcast %192 : vector<8x1xf32> to vector<8x8xf32>
    %194 = arith.subf %190, %193 : vector<8x8xf32>
    %195 = math.exp %194 : vector<8x8xf32>
    %cst_64 = arith.constant dense<0.000000e+00> : vector<8xf32>
    %196 = vector.multi_reduction <add>, %195, %cst_64 [1] : vector<8x8xf32> to vector<8xf32>
    %197 = vector.shape_cast %196 : vector<8xf32> to vector<8x1xf32>
    %198 = tpu.reciprocal %197 {approx = true} : vector<8x1xf32> -> vector<8x1xf32>
    %199 = vector.broadcast %198 : vector<8x1xf32> to vector<8x8xf32>
    %200 = arith.mulf %195, %199 : vector<8x8xf32>
    %cst_65 = arith.constant dense<0.000000e+00> : vector<8x8xf32>
    %201 = tpu.matmul %200, %185, %cst_65 {dimension_numbers = #tpu.dot_dimension_numbers<[1], [0], [0], [1], [0, 0, 1, 1], [], []>} : vector<8x8xf32>, vector<8x8xf32>, vector<8x8xf32> -> vector<8x8xf32>
    %202 = tpu.concatenate %144, %163, %182, %201 in 1 : vector<8x8xf32>, vector<8x8xf32>, vector<8x8xf32>, vector<8x8xf32> -> vector<8x32xf32>
    %203 = tpu.concatenate %124, %202 in 0 : vector<8x32xf32>, vector<8x32xf32> -> vector<16x32xf32>
    %cst_66 = arith.constant dense<0.000000e+00> : vector<16x32xf32>
    %204 = tpu.matmul %203, %29, %cst_66 {dimension_numbers = #tpu.dot_dimension_numbers<[1], [0], [0], [1], [0, 0, 1, 1], [], []>} : vector<16x32xf32>, vector<32x32xf32>, vector<16x32xf32> -> vector<16x32xf32>
    %205 = vector.broadcast %37 : vector<1x32xf32> to vector<16x32xf32>
    %206 = arith.addf %204, %205 : vector<16x32xf32>
    %207 = arith.addf %24, %206 : vector<16x32xf32>
    %cst_67 = arith.constant dense<0.000000e+00> : vector<16xf32>
    %208 = vector.multi_reduction <add>, %207, %cst_67 [1] : vector<16x32xf32> to vector<16xf32>
    %209 = vector.shape_cast %208 : vector<16xf32> to vector<16x1xf32>
    %cst_68 = arith.constant 3.200000e+01 : f32
    %210 = vector.broadcast %cst_68 : f32 to vector<16x1xf32>
    %211 = arith.divf %209, %210 : vector<16x1xf32>
    %212 = vector.broadcast %211 : vector<16x1xf32> to vector<16x32xf32>
    %213 = arith.subf %207, %212 : vector<16x32xf32>
    %214 = arith.mulf %213, %213 : vector<16x32xf32>
    %cst_69 = arith.constant dense<0.000000e+00> : vector<16xf32>
    %215 = vector.multi_reduction <add>, %214, %cst_69 [1] : vector<16x32xf32> to vector<16xf32>
    %216 = vector.shape_cast %215 : vector<16xf32> to vector<16x1xf32>
    %cst_70 = arith.constant 3.200000e+01 : f32
    %217 = vector.broadcast %cst_70 : f32 to vector<16x1xf32>
    %218 = arith.divf %216, %217 : vector<16x1xf32>
    %219 = vector.broadcast %211 : vector<16x1xf32> to vector<16x32xf32>
    %220 = arith.subf %207, %219 : vector<16x32xf32>
    %cst_71 = arith.constant 9.99999996E-13 : f32
    %221 = vector.broadcast %cst_71 : f32 to vector<16x1xf32>
    %222 = arith.addf %218, %221 : vector<16x1xf32>
    %223 = math.rsqrt %222 : vector<16x1xf32>
    %224 = vector.broadcast %223 : vector<16x1xf32> to vector<16x32xf32>
    %225 = arith.mulf %220, %224 : vector<16x32xf32>
    %226 = vector.broadcast %38 : vector<1x32xf32> to vector<16x32xf32>
    %227 = arith.mulf %225, %226 : vector<16x32xf32>
    %228 = vector.broadcast %39 : vector<1x32xf32> to vector<16x32xf32>
    %229 = arith.addf %227, %228 : vector<16x32xf32>
    %cst_72 = arith.constant dense<0.000000e+00> : vector<16x64xf32>
    %230 = tpu.matmul %229, %31, %cst_72 {dimension_numbers = #tpu.dot_dimension_numbers<[1], [0], [0], [1], [0, 0, 1, 1], [], []>} : vector<16x32xf32>, vector<32x64xf32>, vector<16x64xf32> -> vector<16x64xf32>
    %231 = vector.broadcast %40 : vector<1x64xf32> to vector<16x64xf32>
    %232 = arith.addf %230, %231 : vector<16x64xf32>
    %233 = arith.mulf %232, %232 : vector<16x64xf32>
    %234 = arith.mulf %232, %233 : vector<16x64xf32>
    %cst_73 = arith.constant 4.471500e-02 : f32
    %235 = vector.broadcast %cst_73 : f32 to vector<16x64xf32>
    %236 = arith.mulf %235, %234 : vector<16x64xf32>
    %237 = arith.addf %232, %236 : vector<16x64xf32>
    %cst_74 = arith.constant 0.797884583 : f32
    %238 = vector.broadcast %cst_74 : f32 to vector<16x64xf32>
    %239 = arith.mulf %238, %237 : vector<16x64xf32>
    %240 = math.tanh %239 : vector<16x64xf32>
    %cst_75 = arith.constant 1.000000e+00 : f32
    %241 = vector.broadcast %cst_75 : f32 to vector<16x64xf32>
    %242 = arith.addf %241, %240 : vector<16x64xf32>
    %cst_76 = arith.constant 5.000000e-01 : f32
    %243 = vector.broadcast %cst_76 : f32 to vector<16x64xf32>
    %244 = arith.mulf %243, %242 : vector<16x64xf32>
    %245 = arith.mulf %232, %244 : vector<16x64xf32>
    %cst_77 = arith.constant dense<0.000000e+00> : vector<16x32xf32>
    %246 = tpu.matmul %245, %33, %cst_77 {dimension_numbers = #tpu.dot_dimension_numbers<[1], [0], [0], [1], [0, 0, 1, 1], [], []>} : vector<16x64xf32>, vector<64x32xf32>, vector<16x32xf32> -> vector<16x32xf32>
    %247 = vector.broadcast %41 : vector<1x32xf32> to vector<16x32xf32>
    %248 = arith.addf %246, %247 : vector<16x32xf32>
    %249 = arith.addf %229, %248 : vector<16x32xf32>
    %cst_78 = arith.constant dense<0.000000e+00> : vector<16xf32>
    %250 = vector.multi_reduction <add>, %249, %cst_78 [1] : vector<16x32xf32> to vector<16xf32>
    %251 = vector.shape_cast %250 : vector<16xf32> to vector<16x1xf32>
    %cst_79 = arith.constant 3.200000e+01 : f32
    %252 = vector.broadcast %cst_79 : f32 to vector<16x1xf32>
    %253 = arith.divf %251, %252 : vector<16x1xf32>
    %254 = vector.broadcast %253 : vector<16x1xf32> to vector<16x32xf32>
    %255 = arith.subf %249, %254 : vector<16x32xf32>
    %256 = arith.mulf %255, %255 : vector<16x32xf32>
    %cst_80 = arith.constant dense<0.000000e+00> : vector<16xf32>
    %257 = vector.multi_reduction <add>, %256, %cst_80 [1] : vector<16x32xf32> to vector<16xf32>
    %258 = vector.shape_cast %257 : vector<16xf32> to vector<16x1xf32>
    %cst_81 = arith.constant 3.200000e+01 : f32
    %259 = vector.broadcast %cst_81 : f32 to vector<16x1xf32>
    %260 = arith.divf %258, %259 : vector<16x1xf32>
    %261 = vector.broadcast %253 : vector<16x1xf32> to vector<16x32xf32>
    %262 = arith.subf %249, %261 : vector<16x32xf32>
    %cst_82 = arith.constant 9.99999996E-13 : f32
    %263 = vector.broadcast %cst_82 : f32 to vector<16x1xf32>
    %264 = arith.addf %260, %263 : vector<16x1xf32>
    %265 = math.rsqrt %264 : vector<16x1xf32>
    %266 = vector.broadcast %265 : vector<16x1xf32> to vector<16x32xf32>
    %267 = arith.mulf %262, %266 : vector<16x32xf32>
    %268 = vector.broadcast %42 : vector<1x32xf32> to vector<16x32xf32>
    %269 = arith.mulf %267, %268 : vector<16x32xf32>
    %270 = vector.broadcast %43 : vector<1x32xf32> to vector<16x32xf32>
    %271 = arith.addf %269, %270 : vector<16x32xf32>
    %c1_83 = arith.constant 1 : index
    %c0_84 = arith.constant 0 : index
    %c0_85 = arith.constant 0 : index
    %272 = vector.load %arg4[%c1_83, %c0_84, %c0_85] : memref<2x32x96xf32, #tpu.memory_space<vmem>>, vector<1x32x96xf32>
    %273 = vector.shape_cast %272 : vector<1x32x96xf32> to vector<32x96xf32>
    %c1_86 = arith.constant 1 : index
    %c0_87 = arith.constant 0 : index
    %c0_88 = arith.constant 0 : index
    %274 = vector.load %arg5[%c1_86, %c0_87, %c0_88] : memref<2x32x32xf32, #tpu.memory_space<vmem>>, vector<1x32x32xf32>
    %275 = vector.shape_cast %274 : vector<1x32x32xf32> to vector<32x32xf32>
    %c1_89 = arith.constant 1 : index
    %c0_90 = arith.constant 0 : index
    %c0_91 = arith.constant 0 : index
    %276 = vector.load %arg6[%c1_89, %c0_90, %c0_91] : memref<2x32x64xf32, #tpu.memory_space<vmem>>, vector<1x32x64xf32>
    %277 = vector.shape_cast %276 : vector<1x32x64xf32> to vector<32x64xf32>
    %c1_92 = arith.constant 1 : index
    %c0_93 = arith.constant 0 : index
    %c0_94 = arith.constant 0 : index
    %278 = vector.load %arg7[%c1_92, %c0_93, %c0_94] : memref<2x64x32xf32, #tpu.memory_space<vmem>>, vector<1x64x32xf32>
    %279 = vector.shape_cast %278 : vector<1x64x32xf32> to vector<64x32xf32>
    %c1_95 = arith.constant 1 : index
    %c0_96 = arith.constant 0 : index
    %c0_97 = arith.constant 0 : index
    %280 = vector.load %arg8[%c1_95, %c0_96, %c0_97] : memref<2x8x96xf32, #tpu.memory_space<vmem>>, vector<1x8x96xf32>
    %281 = vector.shape_cast %280 : vector<1x8x96xf32> to vector<8x96xf32>
    %282 = vector.extract_strided_slice %281 {offsets = [0, 0], sizes = [1, 96], strides = [1, 1]} : vector<8x96xf32> to vector<1x96xf32>
    %283 = vector.extract_strided_slice %281 {offsets = [1, 0], sizes = [1, 32], strides = [1, 1]} : vector<8x96xf32> to vector<1x32xf32>
    %284 = vector.extract_strided_slice %281 {offsets = [2, 0], sizes = [1, 32], strides = [1, 1]} : vector<8x96xf32> to vector<1x32xf32>
    %285 = vector.extract_strided_slice %281 {offsets = [3, 0], sizes = [1, 32], strides = [1, 1]} : vector<8x96xf32> to vector<1x32xf32>
    %286 = vector.extract_strided_slice %281 {offsets = [4, 0], sizes = [1, 64], strides = [1, 1]} : vector<8x96xf32> to vector<1x64xf32>
    %287 = vector.extract_strided_slice %281 {offsets = [5, 0], sizes = [1, 32], strides = [1, 1]} : vector<8x96xf32> to vector<1x32xf32>
    %288 = vector.extract_strided_slice %281 {offsets = [6, 0], sizes = [1, 32], strides = [1, 1]} : vector<8x96xf32> to vector<1x32xf32>
    %289 = vector.extract_strided_slice %281 {offsets = [7, 0], sizes = [1, 32], strides = [1, 1]} : vector<8x96xf32> to vector<1x32xf32>
    %cst_98 = arith.constant dense<0.000000e+00> : vector<16x96xf32>
    %290 = tpu.matmul %271, %273, %cst_98 {dimension_numbers = #tpu.dot_dimension_numbers<[1], [0], [0], [1], [0, 0, 1, 1], [], []>} : vector<16x32xf32>, vector<32x96xf32>, vector<16x96xf32> -> vector<16x96xf32>
    %291 = vector.broadcast %282 : vector<1x96xf32> to vector<16x96xf32>
    %292 = arith.addf %290, %291 : vector<16x96xf32>
    %293 = vector.extract_strided_slice %25 {offsets = [0, 0], sizes = [1, 8], strides = [1, 1]} : vector<2x8xf32> to vector<1x8xf32>
    %294 = vector.extract_strided_slice %292 {offsets = [0, 0], sizes = [8, 8], strides = [1, 1]} : vector<16x96xf32> to vector<8x8xf32>
    %295 = vector.extract_strided_slice %292 {offsets = [0, 32], sizes = [8, 8], strides = [1, 1]} : vector<16x96xf32> to vector<8x8xf32>
    %296 = vector.extract_strided_slice %292 {offsets = [0, 64], sizes = [8, 8], strides = [1, 1]} : vector<16x96xf32> to vector<8x8xf32>
    %cst_99 = arith.constant dense<0.000000e+00> : vector<8x8xf32>
    %297 = tpu.matmul %294, %295, %cst_99 {dimension_numbers = #tpu.dot_dimension_numbers<[1], [1], [0], [0], [0, 0, 1, 0], [], []>} : vector<8x8xf32>, vector<8x8xf32>, vector<8x8xf32> -> vector<8x8xf32>
    %cst_100 = arith.constant 0.353553385 : f32
    %298 = vector.broadcast %cst_100 : f32 to vector<8x8xf32>
    %299 = arith.mulf %297, %298 : vector<8x8xf32>
    %300 = vector.broadcast %293 : vector<1x8xf32> to vector<8x8xf32>
    %301 = arith.addf %299, %300 : vector<8x8xf32>
    %cst_101 = arith.constant dense<0xFF800000> : vector<8xf32>
    %302 = vector.multi_reduction <maximumf>, %301, %cst_101 [1] : vector<8x8xf32> to vector<8xf32>
    %303 = vector.shape_cast %302 : vector<8xf32> to vector<8x1xf32>
    %304 = vector.broadcast %303 : vector<8x1xf32> to vector<8x8xf32>
    %305 = arith.subf %301, %304 : vector<8x8xf32>
    %306 = math.exp %305 : vector<8x8xf32>
    %cst_102 = arith.constant dense<0.000000e+00> : vector<8xf32>
    %307 = vector.multi_reduction <add>, %306, %cst_102 [1] : vector<8x8xf32> to vector<8xf32>
    %308 = vector.shape_cast %307 : vector<8xf32> to vector<8x1xf32>
    %309 = tpu.reciprocal %308 {approx = true} : vector<8x1xf32> -> vector<8x1xf32>
    %310 = vector.broadcast %309 : vector<8x1xf32> to vector<8x8xf32>
    %311 = arith.mulf %306, %310 : vector<8x8xf32>
    %cst_103 = arith.constant dense<0.000000e+00> : vector<8x8xf32>
    %312 = tpu.matmul %311, %296, %cst_103 {dimension_numbers = #tpu.dot_dimension_numbers<[1], [0], [0], [1], [0, 0, 1, 1], [], []>} : vector<8x8xf32>, vector<8x8xf32>, vector<8x8xf32> -> vector<8x8xf32>
    %313 = vector.extract_strided_slice %292 {offsets = [0, 8], sizes = [8, 8], strides = [1, 1]} : vector<16x96xf32> to vector<8x8xf32>
    %314 = vector.extract_strided_slice %292 {offsets = [0, 40], sizes = [8, 8], strides = [1, 1]} : vector<16x96xf32> to vector<8x8xf32>
    %315 = vector.extract_strided_slice %292 {offsets = [0, 72], sizes = [8, 8], strides = [1, 1]} : vector<16x96xf32> to vector<8x8xf32>
    %cst_104 = arith.constant dense<0.000000e+00> : vector<8x8xf32>
    %316 = tpu.matmul %313, %314, %cst_104 {dimension_numbers = #tpu.dot_dimension_numbers<[1], [1], [0], [0], [0, 0, 1, 0], [], []>} : vector<8x8xf32>, vector<8x8xf32>, vector<8x8xf32> -> vector<8x8xf32>
    %cst_105 = arith.constant 0.353553385 : f32
    %317 = vector.broadcast %cst_105 : f32 to vector<8x8xf32>
    %318 = arith.mulf %316, %317 : vector<8x8xf32>
    %319 = vector.broadcast %293 : vector<1x8xf32> to vector<8x8xf32>
    %320 = arith.addf %318, %319 : vector<8x8xf32>
    %cst_106 = arith.constant dense<0xFF800000> : vector<8xf32>
    %321 = vector.multi_reduction <maximumf>, %320, %cst_106 [1] : vector<8x8xf32> to vector<8xf32>
    %322 = vector.shape_cast %321 : vector<8xf32> to vector<8x1xf32>
    %323 = vector.broadcast %322 : vector<8x1xf32> to vector<8x8xf32>
    %324 = arith.subf %320, %323 : vector<8x8xf32>
    %325 = math.exp %324 : vector<8x8xf32>
    %cst_107 = arith.constant dense<0.000000e+00> : vector<8xf32>
    %326 = vector.multi_reduction <add>, %325, %cst_107 [1] : vector<8x8xf32> to vector<8xf32>
    %327 = vector.shape_cast %326 : vector<8xf32> to vector<8x1xf32>
    %328 = tpu.reciprocal %327 {approx = true} : vector<8x1xf32> -> vector<8x1xf32>
    %329 = vector.broadcast %328 : vector<8x1xf32> to vector<8x8xf32>
    %330 = arith.mulf %325, %329 : vector<8x8xf32>
    %cst_108 = arith.constant dense<0.000000e+00> : vector<8x8xf32>
    %331 = tpu.matmul %330, %315, %cst_108 {dimension_numbers = #tpu.dot_dimension_numbers<[1], [0], [0], [1], [0, 0, 1, 1], [], []>} : vector<8x8xf32>, vector<8x8xf32>, vector<8x8xf32> -> vector<8x8xf32>
    %332 = vector.extract_strided_slice %292 {offsets = [0, 16], sizes = [8, 8], strides = [1, 1]} : vector<16x96xf32> to vector<8x8xf32>
    %333 = vector.extract_strided_slice %292 {offsets = [0, 48], sizes = [8, 8], strides = [1, 1]} : vector<16x96xf32> to vector<8x8xf32>
    %334 = vector.extract_strided_slice %292 {offsets = [0, 80], sizes = [8, 8], strides = [1, 1]} : vector<16x96xf32> to vector<8x8xf32>
    %cst_109 = arith.constant dense<0.000000e+00> : vector<8x8xf32>
    %335 = tpu.matmul %332, %333, %cst_109 {dimension_numbers = #tpu.dot_dimension_numbers<[1], [1], [0], [0], [0, 0, 1, 0], [], []>} : vector<8x8xf32>, vector<8x8xf32>, vector<8x8xf32> -> vector<8x8xf32>
    %cst_110 = arith.constant 0.353553385 : f32
    %336 = vector.broadcast %cst_110 : f32 to vector<8x8xf32>
    %337 = arith.mulf %335, %336 : vector<8x8xf32>
    %338 = vector.broadcast %293 : vector<1x8xf32> to vector<8x8xf32>
    %339 = arith.addf %337, %338 : vector<8x8xf32>
    %cst_111 = arith.constant dense<0xFF800000> : vector<8xf32>
    %340 = vector.multi_reduction <maximumf>, %339, %cst_111 [1] : vector<8x8xf32> to vector<8xf32>
    %341 = vector.shape_cast %340 : vector<8xf32> to vector<8x1xf32>
    %342 = vector.broadcast %341 : vector<8x1xf32> to vector<8x8xf32>
    %343 = arith.subf %339, %342 : vector<8x8xf32>
    %344 = math.exp %343 : vector<8x8xf32>
    %cst_112 = arith.constant dense<0.000000e+00> : vector<8xf32>
    %345 = vector.multi_reduction <add>, %344, %cst_112 [1] : vector<8x8xf32> to vector<8xf32>
    %346 = vector.shape_cast %345 : vector<8xf32> to vector<8x1xf32>
    %347 = tpu.reciprocal %346 {approx = true} : vector<8x1xf32> -> vector<8x1xf32>
    %348 = vector.broadcast %347 : vector<8x1xf32> to vector<8x8xf32>
    %349 = arith.mulf %344, %348 : vector<8x8xf32>
    %cst_113 = arith.constant dense<0.000000e+00> : vector<8x8xf32>
    %350 = tpu.matmul %349, %334, %cst_113 {dimension_numbers = #tpu.dot_dimension_numbers<[1], [0], [0], [1], [0, 0, 1, 1], [], []>} : vector<8x8xf32>, vector<8x8xf32>, vector<8x8xf32> -> vector<8x8xf32>
    %351 = vector.extract_strided_slice %292 {offsets = [0, 24], sizes = [8, 8], strides = [1, 1]} : vector<16x96xf32> to vector<8x8xf32>
    %352 = vector.extract_strided_slice %292 {offsets = [0, 56], sizes = [8, 8], strides = [1, 1]} : vector<16x96xf32> to vector<8x8xf32>
    %353 = vector.extract_strided_slice %292 {offsets = [0, 88], sizes = [8, 8], strides = [1, 1]} : vector<16x96xf32> to vector<8x8xf32>
    %cst_114 = arith.constant dense<0.000000e+00> : vector<8x8xf32>
    %354 = tpu.matmul %351, %352, %cst_114 {dimension_numbers = #tpu.dot_dimension_numbers<[1], [1], [0], [0], [0, 0, 1, 0], [], []>} : vector<8x8xf32>, vector<8x8xf32>, vector<8x8xf32> -> vector<8x8xf32>
    %cst_115 = arith.constant 0.353553385 : f32
    %355 = vector.broadcast %cst_115 : f32 to vector<8x8xf32>
    %356 = arith.mulf %354, %355 : vector<8x8xf32>
    %357 = vector.broadcast %293 : vector<1x8xf32> to vector<8x8xf32>
    %358 = arith.addf %356, %357 : vector<8x8xf32>
    %cst_116 = arith.constant dense<0xFF800000> : vector<8xf32>
    %359 = vector.multi_reduction <maximumf>, %358, %cst_116 [1] : vector<8x8xf32> to vector<8xf32>
    %360 = vector.shape_cast %359 : vector<8xf32> to vector<8x1xf32>
    %361 = vector.broadcast %360 : vector<8x1xf32> to vector<8x8xf32>
    %362 = arith.subf %358, %361 : vector<8x8xf32>
    %363 = math.exp %362 : vector<8x8xf32>
    %cst_117 = arith.constant dense<0.000000e+00> : vector<8xf32>
    %364 = vector.multi_reduction <add>, %363, %cst_117 [1] : vector<8x8xf32> to vector<8xf32>
    %365 = vector.shape_cast %364 : vector<8xf32> to vector<8x1xf32>
    %366 = tpu.reciprocal %365 {approx = true} : vector<8x1xf32> -> vector<8x1xf32>
    %367 = vector.broadcast %366 : vector<8x1xf32> to vector<8x8xf32>
    %368 = arith.mulf %363, %367 : vector<8x8xf32>
    %cst_118 = arith.constant dense<0.000000e+00> : vector<8x8xf32>
    %369 = tpu.matmul %368, %353, %cst_118 {dimension_numbers = #tpu.dot_dimension_numbers<[1], [0], [0], [1], [0, 0, 1, 1], [], []>} : vector<8x8xf32>, vector<8x8xf32>, vector<8x8xf32> -> vector<8x8xf32>
    %370 = tpu.concatenate %312, %331, %350, %369 in 1 : vector<8x8xf32>, vector<8x8xf32>, vector<8x8xf32>, vector<8x8xf32> -> vector<8x32xf32>
    %371 = vector.extract_strided_slice %25 {offsets = [1, 0], sizes = [1, 8], strides = [1, 1]} : vector<2x8xf32> to vector<1x8xf32>
    %372 = vector.extract_strided_slice %292 {offsets = [8, 0], sizes = [8, 8], strides = [1, 1]} : vector<16x96xf32> to vector<8x8xf32>
    %373 = vector.extract_strided_slice %292 {offsets = [8, 32], sizes = [8, 8], strides = [1, 1]} : vector<16x96xf32> to vector<8x8xf32>
    %374 = vector.extract_strided_slice %292 {offsets = [8, 64], sizes = [8, 8], strides = [1, 1]} : vector<16x96xf32> to vector<8x8xf32>
    %cst_119 = arith.constant dense<0.000000e+00> : vector<8x8xf32>
    %375 = tpu.matmul %372, %373, %cst_119 {dimension_numbers = #tpu.dot_dimension_numbers<[1], [1], [0], [0], [0, 0, 1, 0], [], []>} : vector<8x8xf32>, vector<8x8xf32>, vector<8x8xf32> -> vector<8x8xf32>
    %cst_120 = arith.constant 0.353553385 : f32
    %376 = vector.broadcast %cst_120 : f32 to vector<8x8xf32>
    %377 = arith.mulf %375, %376 : vector<8x8xf32>
    %378 = vector.broadcast %371 : vector<1x8xf32> to vector<8x8xf32>
    %379 = arith.addf %377, %378 : vector<8x8xf32>
    %cst_121 = arith.constant dense<0xFF800000> : vector<8xf32>
    %380 = vector.multi_reduction <maximumf>, %379, %cst_121 [1] : vector<8x8xf32> to vector<8xf32>
    %381 = vector.shape_cast %380 : vector<8xf32> to vector<8x1xf32>
    %382 = vector.broadcast %381 : vector<8x1xf32> to vector<8x8xf32>
    %383 = arith.subf %379, %382 : vector<8x8xf32>
    %384 = math.exp %383 : vector<8x8xf32>
    %cst_122 = arith.constant dense<0.000000e+00> : vector<8xf32>
    %385 = vector.multi_reduction <add>, %384, %cst_122 [1] : vector<8x8xf32> to vector<8xf32>
    %386 = vector.shape_cast %385 : vector<8xf32> to vector<8x1xf32>
    %387 = tpu.reciprocal %386 {approx = true} : vector<8x1xf32> -> vector<8x1xf32>
    %388 = vector.broadcast %387 : vector<8x1xf32> to vector<8x8xf32>
    %389 = arith.mulf %384, %388 : vector<8x8xf32>
    %cst_123 = arith.constant dense<0.000000e+00> : vector<8x8xf32>
    %390 = tpu.matmul %389, %374, %cst_123 {dimension_numbers = #tpu.dot_dimension_numbers<[1], [0], [0], [1], [0, 0, 1, 1], [], []>} : vector<8x8xf32>, vector<8x8xf32>, vector<8x8xf32> -> vector<8x8xf32>
    %391 = vector.extract_strided_slice %292 {offsets = [8, 8], sizes = [8, 8], strides = [1, 1]} : vector<16x96xf32> to vector<8x8xf32>
    %392 = vector.extract_strided_slice %292 {offsets = [8, 40], sizes = [8, 8], strides = [1, 1]} : vector<16x96xf32> to vector<8x8xf32>
    %393 = vector.extract_strided_slice %292 {offsets = [8, 72], sizes = [8, 8], strides = [1, 1]} : vector<16x96xf32> to vector<8x8xf32>
    %cst_124 = arith.constant dense<0.000000e+00> : vector<8x8xf32>
    %394 = tpu.matmul %391, %392, %cst_124 {dimension_numbers = #tpu.dot_dimension_numbers<[1], [1], [0], [0], [0, 0, 1, 0], [], []>} : vector<8x8xf32>, vector<8x8xf32>, vector<8x8xf32> -> vector<8x8xf32>
    %cst_125 = arith.constant 0.353553385 : f32
    %395 = vector.broadcast %cst_125 : f32 to vector<8x8xf32>
    %396 = arith.mulf %394, %395 : vector<8x8xf32>
    %397 = vector.broadcast %371 : vector<1x8xf32> to vector<8x8xf32>
    %398 = arith.addf %396, %397 : vector<8x8xf32>
    %cst_126 = arith.constant dense<0xFF800000> : vector<8xf32>
    %399 = vector.multi_reduction <maximumf>, %398, %cst_126 [1] : vector<8x8xf32> to vector<8xf32>
    %400 = vector.shape_cast %399 : vector<8xf32> to vector<8x1xf32>
    %401 = vector.broadcast %400 : vector<8x1xf32> to vector<8x8xf32>
    %402 = arith.subf %398, %401 : vector<8x8xf32>
    %403 = math.exp %402 : vector<8x8xf32>
    %cst_127 = arith.constant dense<0.000000e+00> : vector<8xf32>
    %404 = vector.multi_reduction <add>, %403, %cst_127 [1] : vector<8x8xf32> to vector<8xf32>
    %405 = vector.shape_cast %404 : vector<8xf32> to vector<8x1xf32>
    %406 = tpu.reciprocal %405 {approx = true} : vector<8x1xf32> -> vector<8x1xf32>
    %407 = vector.broadcast %406 : vector<8x1xf32> to vector<8x8xf32>
    %408 = arith.mulf %403, %407 : vector<8x8xf32>
    %cst_128 = arith.constant dense<0.000000e+00> : vector<8x8xf32>
    %409 = tpu.matmul %408, %393, %cst_128 {dimension_numbers = #tpu.dot_dimension_numbers<[1], [0], [0], [1], [0, 0, 1, 1], [], []>} : vector<8x8xf32>, vector<8x8xf32>, vector<8x8xf32> -> vector<8x8xf32>
    %410 = vector.extract_strided_slice %292 {offsets = [8, 16], sizes = [8, 8], strides = [1, 1]} : vector<16x96xf32> to vector<8x8xf32>
    %411 = vector.extract_strided_slice %292 {offsets = [8, 48], sizes = [8, 8], strides = [1, 1]} : vector<16x96xf32> to vector<8x8xf32>
    %412 = vector.extract_strided_slice %292 {offsets = [8, 80], sizes = [8, 8], strides = [1, 1]} : vector<16x96xf32> to vector<8x8xf32>
    %cst_129 = arith.constant dense<0.000000e+00> : vector<8x8xf32>
    %413 = tpu.matmul %410, %411, %cst_129 {dimension_numbers = #tpu.dot_dimension_numbers<[1], [1], [0], [0], [0, 0, 1, 0], [], []>} : vector<8x8xf32>, vector<8x8xf32>, vector<8x8xf32> -> vector<8x8xf32>
    %cst_130 = arith.constant 0.353553385 : f32
    %414 = vector.broadcast %cst_130 : f32 to vector<8x8xf32>
    %415 = arith.mulf %413, %414 : vector<8x8xf32>
    %416 = vector.broadcast %371 : vector<1x8xf32> to vector<8x8xf32>
    %417 = arith.addf %415, %416 : vector<8x8xf32>
    %cst_131 = arith.constant dense<0xFF800000> : vector<8xf32>
    %418 = vector.multi_reduction <maximumf>, %417, %cst_131 [1] : vector<8x8xf32> to vector<8xf32>
    %419 = vector.shape_cast %418 : vector<8xf32> to vector<8x1xf32>
    %420 = vector.broadcast %419 : vector<8x1xf32> to vector<8x8xf32>
    %421 = arith.subf %417, %420 : vector<8x8xf32>
    %422 = math.exp %421 : vector<8x8xf32>
    %cst_132 = arith.constant dense<0.000000e+00> : vector<8xf32>
    %423 = vector.multi_reduction <add>, %422, %cst_132 [1] : vector<8x8xf32> to vector<8xf32>
    %424 = vector.shape_cast %423 : vector<8xf32> to vector<8x1xf32>
    %425 = tpu.reciprocal %424 {approx = true} : vector<8x1xf32> -> vector<8x1xf32>
    %426 = vector.broadcast %425 : vector<8x1xf32> to vector<8x8xf32>
    %427 = arith.mulf %422, %426 : vector<8x8xf32>
    %cst_133 = arith.constant dense<0.000000e+00> : vector<8x8xf32>
    %428 = tpu.matmul %427, %412, %cst_133 {dimension_numbers = #tpu.dot_dimension_numbers<[1], [0], [0], [1], [0, 0, 1, 1], [], []>} : vector<8x8xf32>, vector<8x8xf32>, vector<8x8xf32> -> vector<8x8xf32>
    %429 = vector.extract_strided_slice %292 {offsets = [8, 24], sizes = [8, 8], strides = [1, 1]} : vector<16x96xf32> to vector<8x8xf32>
    %430 = vector.extract_strided_slice %292 {offsets = [8, 56], sizes = [8, 8], strides = [1, 1]} : vector<16x96xf32> to vector<8x8xf32>
    %431 = vector.extract_strided_slice %292 {offsets = [8, 88], sizes = [8, 8], strides = [1, 1]} : vector<16x96xf32> to vector<8x8xf32>
    %cst_134 = arith.constant dense<0.000000e+00> : vector<8x8xf32>
    %432 = tpu.matmul %429, %430, %cst_134 {dimension_numbers = #tpu.dot_dimension_numbers<[1], [1], [0], [0], [0, 0, 1, 0], [], []>} : vector<8x8xf32>, vector<8x8xf32>, vector<8x8xf32> -> vector<8x8xf32>
    %cst_135 = arith.constant 0.353553385 : f32
    %433 = vector.broadcast %cst_135 : f32 to vector<8x8xf32>
    %434 = arith.mulf %432, %433 : vector<8x8xf32>
    %435 = vector.broadcast %371 : vector<1x8xf32> to vector<8x8xf32>
    %436 = arith.addf %434, %435 : vector<8x8xf32>
    %cst_136 = arith.constant dense<0xFF800000> : vector<8xf32>
    %437 = vector.multi_reduction <maximumf>, %436, %cst_136 [1] : vector<8x8xf32> to vector<8xf32>
    %438 = vector.shape_cast %437 : vector<8xf32> to vector<8x1xf32>
    %439 = vector.broadcast %438 : vector<8x1xf32> to vector<8x8xf32>
    %440 = arith.subf %436, %439 : vector<8x8xf32>
    %441 = math.exp %440 : vector<8x8xf32>
    %cst_137 = arith.constant dense<0.000000e+00> : vector<8xf32>
    %442 = vector.multi_reduction <add>, %441, %cst_137 [1] : vector<8x8xf32> to vector<8xf32>
    %443 = vector.shape_cast %442 : vector<8xf32> to vector<8x1xf32>
    %444 = tpu.reciprocal %443 {approx = true} : vector<8x1xf32> -> vector<8x1xf32>
    %445 = vector.broadcast %444 : vector<8x1xf32> to vector<8x8xf32>
    %446 = arith.mulf %441, %445 : vector<8x8xf32>
    %cst_138 = arith.constant dense<0.000000e+00> : vector<8x8xf32>
    %447 = tpu.matmul %446, %431, %cst_138 {dimension_numbers = #tpu.dot_dimension_numbers<[1], [0], [0], [1], [0, 0, 1, 1], [], []>} : vector<8x8xf32>, vector<8x8xf32>, vector<8x8xf32> -> vector<8x8xf32>
    %448 = tpu.concatenate %390, %409, %428, %447 in 1 : vector<8x8xf32>, vector<8x8xf32>, vector<8x8xf32>, vector<8x8xf32> -> vector<8x32xf32>
    %449 = tpu.concatenate %370, %448 in 0 : vector<8x32xf32>, vector<8x32xf32> -> vector<16x32xf32>
    %cst_139 = arith.constant dense<0.000000e+00> : vector<16x32xf32>
    %450 = tpu.matmul %449, %275, %cst_139 {dimension_numbers = #tpu.dot_dimension_numbers<[1], [0], [0], [1], [0, 0, 1, 1], [], []>} : vector<16x32xf32>, vector<32x32xf32>, vector<16x32xf32> -> vector<16x32xf32>
    %451 = vector.broadcast %283 : vector<1x32xf32> to vector<16x32xf32>
    %452 = arith.addf %450, %451 : vector<16x32xf32>
    %453 = arith.addf %271, %452 : vector<16x32xf32>
    %cst_140 = arith.constant dense<0.000000e+00> : vector<16xf32>
    %454 = vector.multi_reduction <add>, %453, %cst_140 [1] : vector<16x32xf32> to vector<16xf32>
    %455 = vector.shape_cast %454 : vector<16xf32> to vector<16x1xf32>
    %cst_141 = arith.constant 3.200000e+01 : f32
    %456 = vector.broadcast %cst_141 : f32 to vector<16x1xf32>
    %457 = arith.divf %455, %456 : vector<16x1xf32>
    %458 = vector.broadcast %457 : vector<16x1xf32> to vector<16x32xf32>
    %459 = arith.subf %453, %458 : vector<16x32xf32>
    %460 = arith.mulf %459, %459 : vector<16x32xf32>
    %cst_142 = arith.constant dense<0.000000e+00> : vector<16xf32>
    %461 = vector.multi_reduction <add>, %460, %cst_142 [1] : vector<16x32xf32> to vector<16xf32>
    %462 = vector.shape_cast %461 : vector<16xf32> to vector<16x1xf32>
    %cst_143 = arith.constant 3.200000e+01 : f32
    %463 = vector.broadcast %cst_143 : f32 to vector<16x1xf32>
    %464 = arith.divf %462, %463 : vector<16x1xf32>
    %465 = vector.broadcast %457 : vector<16x1xf32> to vector<16x32xf32>
    %466 = arith.subf %453, %465 : vector<16x32xf32>
    %cst_144 = arith.constant 9.99999996E-13 : f32
    %467 = vector.broadcast %cst_144 : f32 to vector<16x1xf32>
    %468 = arith.addf %464, %467 : vector<16x1xf32>
    %469 = math.rsqrt %468 : vector<16x1xf32>
    %470 = vector.broadcast %469 : vector<16x1xf32> to vector<16x32xf32>
    %471 = arith.mulf %466, %470 : vector<16x32xf32>
    %472 = vector.broadcast %284 : vector<1x32xf32> to vector<16x32xf32>
    %473 = arith.mulf %471, %472 : vector<16x32xf32>
    %474 = vector.broadcast %285 : vector<1x32xf32> to vector<16x32xf32>
    %475 = arith.addf %473, %474 : vector<16x32xf32>
    %cst_145 = arith.constant dense<0.000000e+00> : vector<16x64xf32>
    %476 = tpu.matmul %475, %277, %cst_145 {dimension_numbers = #tpu.dot_dimension_numbers<[1], [0], [0], [1], [0, 0, 1, 1], [], []>} : vector<16x32xf32>, vector<32x64xf32>, vector<16x64xf32> -> vector<16x64xf32>
    %477 = vector.broadcast %286 : vector<1x64xf32> to vector<16x64xf32>
    %478 = arith.addf %476, %477 : vector<16x64xf32>
    %479 = arith.mulf %478, %478 : vector<16x64xf32>
    %480 = arith.mulf %478, %479 : vector<16x64xf32>
    %cst_146 = arith.constant 4.471500e-02 : f32
    %481 = vector.broadcast %cst_146 : f32 to vector<16x64xf32>
    %482 = arith.mulf %481, %480 : vector<16x64xf32>
    %483 = arith.addf %478, %482 : vector<16x64xf32>
    %cst_147 = arith.constant 0.797884583 : f32
    %484 = vector.broadcast %cst_147 : f32 to vector<16x64xf32>
    %485 = arith.mulf %484, %483 : vector<16x64xf32>
    %486 = math.tanh %485 : vector<16x64xf32>
    %cst_148 = arith.constant 1.000000e+00 : f32
    %487 = vector.broadcast %cst_148 : f32 to vector<16x64xf32>
    %488 = arith.addf %487, %486 : vector<16x64xf32>
    %cst_149 = arith.constant 5.000000e-01 : f32
    %489 = vector.broadcast %cst_149 : f32 to vector<16x64xf32>
    %490 = arith.mulf %489, %488 : vector<16x64xf32>
    %491 = arith.mulf %478, %490 : vector<16x64xf32>
    %cst_150 = arith.constant dense<0.000000e+00> : vector<16x32xf32>
    %492 = tpu.matmul %491, %279, %cst_150 {dimension_numbers = #tpu.dot_dimension_numbers<[1], [0], [0], [1], [0, 0, 1, 1], [], []>} : vector<16x64xf32>, vector<64x32xf32>, vector<16x32xf32> -> vector<16x32xf32>
    %493 = vector.broadcast %287 : vector<1x32xf32> to vector<16x32xf32>
    %494 = arith.addf %492, %493 : vector<16x32xf32>
    %495 = arith.addf %475, %494 : vector<16x32xf32>
    %cst_151 = arith.constant dense<0.000000e+00> : vector<16xf32>
    %496 = vector.multi_reduction <add>, %495, %cst_151 [1] : vector<16x32xf32> to vector<16xf32>
    %497 = vector.shape_cast %496 : vector<16xf32> to vector<16x1xf32>
    %cst_152 = arith.constant 3.200000e+01 : f32
    %498 = vector.broadcast %cst_152 : f32 to vector<16x1xf32>
    %499 = arith.divf %497, %498 : vector<16x1xf32>
    %500 = vector.broadcast %499 : vector<16x1xf32> to vector<16x32xf32>
    %501 = arith.subf %495, %500 : vector<16x32xf32>
    %502 = arith.mulf %501, %501 : vector<16x32xf32>
    %cst_153 = arith.constant dense<0.000000e+00> : vector<16xf32>
    %503 = vector.multi_reduction <add>, %502, %cst_153 [1] : vector<16x32xf32> to vector<16xf32>
    %504 = vector.shape_cast %503 : vector<16xf32> to vector<16x1xf32>
    %cst_154 = arith.constant 3.200000e+01 : f32
    %505 = vector.broadcast %cst_154 : f32 to vector<16x1xf32>
    %506 = arith.divf %504, %505 : vector<16x1xf32>
    %507 = vector.broadcast %499 : vector<16x1xf32> to vector<16x32xf32>
    %508 = arith.subf %495, %507 : vector<16x32xf32>
    %cst_155 = arith.constant 9.99999996E-13 : f32
    %509 = vector.broadcast %cst_155 : f32 to vector<16x1xf32>
    %510 = arith.addf %506, %509 : vector<16x1xf32>
    %511 = math.rsqrt %510 : vector<16x1xf32>
    %512 = vector.broadcast %511 : vector<16x1xf32> to vector<16x32xf32>
    %513 = arith.mulf %508, %512 : vector<16x32xf32>
    %514 = vector.broadcast %288 : vector<1x32xf32> to vector<16x32xf32>
    %515 = arith.mulf %513, %514 : vector<16x32xf32>
    %516 = vector.broadcast %289 : vector<1x32xf32> to vector<16x32xf32>
    %517 = arith.addf %515, %516 : vector<16x32xf32>
    %c0_156 = arith.constant 0 : index
    %c0_157 = arith.constant 0 : index
    %518 = vector.load %arg14[%c0_156, %c0_157] : memref<3x64xf32, #tpu.memory_space<vmem>>, vector<3x64xf32>
    %519 = vector.extract_strided_slice %518 {offsets = [0, 0], sizes = [1, 64], strides = [1, 1]} : vector<3x64xf32> to vector<1x64xf32>
    %520 = vector.extract_strided_slice %518 {offsets = [1, 0], sizes = [1, 64], strides = [1, 1]} : vector<3x64xf32> to vector<1x64xf32>
    %521 = vector.extract_strided_slice %518 {offsets = [2, 0], sizes = [1, 39], strides = [1, 1]} : vector<3x64xf32> to vector<1x39xf32>
    %522 = vector.extract_strided_slice %517 {offsets = [0, 0], sizes = [1, 32], strides = [1, 1]} : vector<16x32xf32> to vector<1x32xf32>
    %523 = vector.extract_strided_slice %517 {offsets = [8, 0], sizes = [1, 32], strides = [1, 1]} : vector<16x32xf32> to vector<1x32xf32>
    %524 = vector.extract_strided_slice %517 {offsets = [1, 0], sizes = [1, 32], strides = [1, 1]} : vector<16x32xf32> to vector<1x32xf32>
    %525 = vector.extract_strided_slice %517 {offsets = [9, 0], sizes = [1, 32], strides = [1, 1]} : vector<16x32xf32> to vector<1x32xf32>
    %526 = vector.extract_strided_slice %517 {offsets = [2, 0], sizes = [1, 32], strides = [1, 1]} : vector<16x32xf32> to vector<1x32xf32>
    %527 = vector.extract_strided_slice %517 {offsets = [10, 0], sizes = [1, 32], strides = [1, 1]} : vector<16x32xf32> to vector<1x32xf32>
    %528 = vector.extract_strided_slice %517 {offsets = [3, 0], sizes = [1, 32], strides = [1, 1]} : vector<16x32xf32> to vector<1x32xf32>
    %529 = vector.extract_strided_slice %517 {offsets = [11, 0], sizes = [1, 32], strides = [1, 1]} : vector<16x32xf32> to vector<1x32xf32>
    %530 = vector.extract_strided_slice %517 {offsets = [4, 0], sizes = [1, 32], strides = [1, 1]} : vector<16x32xf32> to vector<1x32xf32>
    %531 = vector.extract_strided_slice %517 {offsets = [12, 0], sizes = [1, 32], strides = [1, 1]} : vector<16x32xf32> to vector<1x32xf32>
    %532 = vector.extract_strided_slice %517 {offsets = [5, 0], sizes = [1, 32], strides = [1, 1]} : vector<16x32xf32> to vector<1x32xf32>
    %533 = vector.extract_strided_slice %517 {offsets = [13, 0], sizes = [1, 32], strides = [1, 1]} : vector<16x32xf32> to vector<1x32xf32>
    %534 = vector.extract_strided_slice %517 {offsets = [6, 0], sizes = [1, 32], strides = [1, 1]} : vector<16x32xf32> to vector<1x32xf32>
    %535 = vector.extract_strided_slice %517 {offsets = [14, 0], sizes = [1, 32], strides = [1, 1]} : vector<16x32xf32> to vector<1x32xf32>
    %536 = vector.extract_strided_slice %517 {offsets = [7, 0], sizes = [1, 32], strides = [1, 1]} : vector<16x32xf32> to vector<1x32xf32>
    %537 = vector.extract_strided_slice %517 {offsets = [15, 0], sizes = [1, 32], strides = [1, 1]} : vector<16x32xf32> to vector<1x32xf32>
    %538 = tpu.concatenate %522, %523, %524, %525, %526, %527, %528, %529, %530, %531, %532, %533, %534, %535, %536, %537 in 0 : vector<1x32xf32>, vector<1x32xf32>, vector<1x32xf32>, vector<1x32xf32>, vector<1x32xf32>, vector<1x32xf32>, vector<1x32xf32>, vector<1x32xf32>, vector<1x32xf32>, vector<1x32xf32>, vector<1x32xf32>, vector<1x32xf32>, vector<1x32xf32>, vector<1x32xf32>, vector<1x32xf32>, vector<1x32xf32> -> vector<16x32xf32>
    %c0_158 = arith.constant 0 : index
    %c0_159 = arith.constant 0 : index
    %539 = vector.load %arg9[%c0_158, %c0_159] : memref<32x64xf32, #tpu.memory_space<vmem>>, vector<32x64xf32>
    %cst_160 = arith.constant dense<0.000000e+00> : vector<16x64xf32>
    %540 = tpu.matmul %538, %539, %cst_160 {dimension_numbers = #tpu.dot_dimension_numbers<[1], [0], [0], [1], [0, 0, 1, 1], [], []>} : vector<16x32xf32>, vector<32x64xf32>, vector<16x64xf32> -> vector<16x64xf32>
    %541 = vector.broadcast %519 : vector<1x64xf32> to vector<16x64xf32>
    %542 = arith.addf %540, %541 : vector<16x64xf32>
    %c0_161 = arith.constant 0 : index
    %c0_162 = arith.constant 0 : index
    %543 = vector.load %arg11[%c0_161, %c0_162] : memref<32x64xf32, #tpu.memory_space<vmem>>, vector<32x64xf32>
    %cst_163 = arith.constant dense<0.000000e+00> : vector<16x64xf32>
    %544 = tpu.matmul %538, %543, %cst_163 {dimension_numbers = #tpu.dot_dimension_numbers<[1], [0], [0], [1], [0, 0, 1, 1], [], []>} : vector<16x32xf32>, vector<32x64xf32>, vector<16x64xf32> -> vector<16x64xf32>
    %545 = vector.broadcast %520 : vector<1x64xf32> to vector<16x64xf32>
    %546 = arith.addf %544, %545 : vector<16x64xf32>
    %c0_164 = arith.constant 0 : index
    %c0_165 = arith.constant 0 : index
    %547 = vector.load %arg10[%c0_164, %c0_165] : memref<16x64xf32, #tpu.memory_space<vmem>>, vector<16x64xf32>
    %c0_166 = arith.constant 0 : index
    %c0_167 = arith.constant 0 : index
    %548 = vector.load %arg12[%c0_166, %c0_167] : memref<16x64xf32, #tpu.memory_space<vmem>>, vector<16x64xf32>
    %cst_168 = arith.constant 0.000000e+00 : f32
    %549 = vector.broadcast %cst_168 : f32 to vector<2x16xf32>
    %cst_169 = arith.constant 0.000000e+00 : f32
    %550 = vector.broadcast %cst_169 : f32 to vector<2x39xf32>
    %551 = vector.extract_strided_slice %542 {offsets = [0, 0], sizes = [2, 64], strides = [1, 1]} : vector<16x64xf32> to vector<2x64xf32>
    %cst_170 = arith.constant dense<0.000000e+00> : vector<2x64xf32>
    %552 = tpu.matmul %549, %547, %cst_170 {dimension_numbers = #tpu.dot_dimension_numbers<[1], [0], [0], [1], [0, 0, 1, 1], [], []>} : vector<2x16xf32>, vector<16x64xf32>, vector<2x64xf32> -> vector<2x64xf32>
    %553 = arith.addf %551, %552 : vector<2x64xf32>
    %554 = vector.extract_strided_slice %553 {offsets = [0, 0], sizes = [2, 16], strides = [1, 1]} : vector<2x64xf32> to vector<2x16xf32>
    %555 = arith.negf %554 : vector<2x16xf32>
    %556 = math.exp %555 : vector<2x16xf32>
    %cst_171 = arith.constant 1.000000e+00 : f32
    %557 = vector.broadcast %cst_171 : f32 to vector<2x16xf32>
    %558 = arith.addf %557, %556 : vector<2x16xf32>
    %559 = arith.divf %557, %558 : vector<2x16xf32>
    %560 = vector.extract_strided_slice %553 {offsets = [0, 16], sizes = [2, 16], strides = [1, 1]} : vector<2x64xf32> to vector<2x16xf32>
    %561 = arith.negf %560 : vector<2x16xf32>
    %562 = math.exp %561 : vector<2x16xf32>
    %cst_172 = arith.constant 1.000000e+00 : f32
    %563 = vector.broadcast %cst_172 : f32 to vector<2x16xf32>
    %564 = arith.addf %563, %562 : vector<2x16xf32>
    %565 = arith.divf %563, %564 : vector<2x16xf32>
    %566 = vector.extract_strided_slice %553 {offsets = [0, 32], sizes = [2, 16], strides = [1, 1]} : vector<2x64xf32> to vector<2x16xf32>
    %567 = math.tanh %566 : vector<2x16xf32>
    %568 = vector.extract_strided_slice %553 {offsets = [0, 48], sizes = [2, 16], strides = [1, 1]} : vector<2x64xf32> to vector<2x16xf32>
    %569 = arith.negf %568 : vector<2x16xf32>
    %570 = math.exp %569 : vector<2x16xf32>
    %cst_173 = arith.constant 1.000000e+00 : f32
    %571 = vector.broadcast %cst_173 : f32 to vector<2x16xf32>
    %572 = arith.addf %571, %570 : vector<2x16xf32>
    %573 = arith.divf %571, %572 : vector<2x16xf32>
    %574 = arith.mulf %565, %549 : vector<2x16xf32>
    %575 = arith.mulf %559, %567 : vector<2x16xf32>
    %576 = arith.addf %574, %575 : vector<2x16xf32>
    %577 = math.tanh %576 : vector<2x16xf32>
    %578 = arith.mulf %573, %577 : vector<2x16xf32>
    %c0_174 = arith.constant 0 : index
    %c0_175 = arith.constant 0 : index
    %579 = vector.load %arg13[%c0_174, %c0_175] : memref<256x39xf32, #tpu.memory_space<vmem>>, vector<16x39xf32>
    %cst_176 = arith.constant dense<0.000000e+00> : vector<2x39xf32>
    %580 = tpu.matmul %578, %579, %cst_176 {dimension_numbers = #tpu.dot_dimension_numbers<[1], [0], [0], [1], [0, 0, 1, 1], [], []>} : vector<2x16xf32>, vector<16x39xf32>, vector<2x39xf32> -> vector<2x39xf32>
    %581 = arith.addf %550, %580 : vector<2x39xf32>
    %582 = vector.extract_strided_slice %542 {offsets = [2, 0], sizes = [2, 64], strides = [1, 1]} : vector<16x64xf32> to vector<2x64xf32>
    %cst_177 = arith.constant dense<0.000000e+00> : vector<2x64xf32>
    %583 = tpu.matmul %578, %547, %cst_177 {dimension_numbers = #tpu.dot_dimension_numbers<[1], [0], [0], [1], [0, 0, 1, 1], [], []>} : vector<2x16xf32>, vector<16x64xf32>, vector<2x64xf32> -> vector<2x64xf32>
    %584 = arith.addf %582, %583 : vector<2x64xf32>
    %585 = vector.extract_strided_slice %584 {offsets = [0, 0], sizes = [2, 16], strides = [1, 1]} : vector<2x64xf32> to vector<2x16xf32>
    %586 = arith.negf %585 : vector<2x16xf32>
    %587 = math.exp %586 : vector<2x16xf32>
    %cst_178 = arith.constant 1.000000e+00 : f32
    %588 = vector.broadcast %cst_178 : f32 to vector<2x16xf32>
    %589 = arith.addf %588, %587 : vector<2x16xf32>
    %590 = arith.divf %588, %589 : vector<2x16xf32>
    %591 = vector.extract_strided_slice %584 {offsets = [0, 16], sizes = [2, 16], strides = [1, 1]} : vector<2x64xf32> to vector<2x16xf32>
    %592 = arith.negf %591 : vector<2x16xf32>
    %593 = math.exp %592 : vector<2x16xf32>
    %cst_179 = arith.constant 1.000000e+00 : f32
    %594 = vector.broadcast %cst_179 : f32 to vector<2x16xf32>
    %595 = arith.addf %594, %593 : vector<2x16xf32>
    %596 = arith.divf %594, %595 : vector<2x16xf32>
    %597 = vector.extract_strided_slice %584 {offsets = [0, 32], sizes = [2, 16], strides = [1, 1]} : vector<2x64xf32> to vector<2x16xf32>
    %598 = math.tanh %597 : vector<2x16xf32>
    %599 = vector.extract_strided_slice %584 {offsets = [0, 48], sizes = [2, 16], strides = [1, 1]} : vector<2x64xf32> to vector<2x16xf32>
    %600 = arith.negf %599 : vector<2x16xf32>
    %601 = math.exp %600 : vector<2x16xf32>
    %cst_180 = arith.constant 1.000000e+00 : f32
    %602 = vector.broadcast %cst_180 : f32 to vector<2x16xf32>
    %603 = arith.addf %602, %601 : vector<2x16xf32>
    %604 = arith.divf %602, %603 : vector<2x16xf32>
    %605 = arith.mulf %596, %576 : vector<2x16xf32>
    %606 = arith.mulf %590, %598 : vector<2x16xf32>
    %607 = arith.addf %605, %606 : vector<2x16xf32>
    %608 = math.tanh %607 : vector<2x16xf32>
    %609 = arith.mulf %604, %608 : vector<2x16xf32>
    %c32 = arith.constant 32 : index
    %c0_181 = arith.constant 0 : index
    %610 = vector.load %arg13[%c32, %c0_181] : memref<256x39xf32, #tpu.memory_space<vmem>>, vector<16x39xf32>
    %cst_182 = arith.constant dense<0.000000e+00> : vector<2x39xf32>
    %611 = tpu.matmul %609, %610, %cst_182 {dimension_numbers = #tpu.dot_dimension_numbers<[1], [0], [0], [1], [0, 0, 1, 1], [], []>} : vector<2x16xf32>, vector<16x39xf32>, vector<2x39xf32> -> vector<2x39xf32>
    %612 = arith.addf %581, %611 : vector<2x39xf32>
    %613 = vector.extract_strided_slice %542 {offsets = [4, 0], sizes = [2, 64], strides = [1, 1]} : vector<16x64xf32> to vector<2x64xf32>
    %cst_183 = arith.constant dense<0.000000e+00> : vector<2x64xf32>
    %614 = tpu.matmul %609, %547, %cst_183 {dimension_numbers = #tpu.dot_dimension_numbers<[1], [0], [0], [1], [0, 0, 1, 1], [], []>} : vector<2x16xf32>, vector<16x64xf32>, vector<2x64xf32> -> vector<2x64xf32>
    %615 = arith.addf %613, %614 : vector<2x64xf32>
    %616 = vector.extract_strided_slice %615 {offsets = [0, 0], sizes = [2, 16], strides = [1, 1]} : vector<2x64xf32> to vector<2x16xf32>
    %617 = arith.negf %616 : vector<2x16xf32>
    %618 = math.exp %617 : vector<2x16xf32>
    %cst_184 = arith.constant 1.000000e+00 : f32
    %619 = vector.broadcast %cst_184 : f32 to vector<2x16xf32>
    %620 = arith.addf %619, %618 : vector<2x16xf32>
    %621 = arith.divf %619, %620 : vector<2x16xf32>
    %622 = vector.extract_strided_slice %615 {offsets = [0, 16], sizes = [2, 16], strides = [1, 1]} : vector<2x64xf32> to vector<2x16xf32>
    %623 = arith.negf %622 : vector<2x16xf32>
    %624 = math.exp %623 : vector<2x16xf32>
    %cst_185 = arith.constant 1.000000e+00 : f32
    %625 = vector.broadcast %cst_185 : f32 to vector<2x16xf32>
    %626 = arith.addf %625, %624 : vector<2x16xf32>
    %627 = arith.divf %625, %626 : vector<2x16xf32>
    %628 = vector.extract_strided_slice %615 {offsets = [0, 32], sizes = [2, 16], strides = [1, 1]} : vector<2x64xf32> to vector<2x16xf32>
    %629 = math.tanh %628 : vector<2x16xf32>
    %630 = vector.extract_strided_slice %615 {offsets = [0, 48], sizes = [2, 16], strides = [1, 1]} : vector<2x64xf32> to vector<2x16xf32>
    %631 = arith.negf %630 : vector<2x16xf32>
    %632 = math.exp %631 : vector<2x16xf32>
    %cst_186 = arith.constant 1.000000e+00 : f32
    %633 = vector.broadcast %cst_186 : f32 to vector<2x16xf32>
    %634 = arith.addf %633, %632 : vector<2x16xf32>
    %635 = arith.divf %633, %634 : vector<2x16xf32>
    %636 = arith.mulf %627, %607 : vector<2x16xf32>
    %637 = arith.mulf %621, %629 : vector<2x16xf32>
    %638 = arith.addf %636, %637 : vector<2x16xf32>
    %639 = math.tanh %638 : vector<2x16xf32>
    %640 = arith.mulf %635, %639 : vector<2x16xf32>
    %c64 = arith.constant 64 : index
    %c0_187 = arith.constant 0 : index
    %641 = vector.load %arg13[%c64, %c0_187] : memref<256x39xf32, #tpu.memory_space<vmem>>, vector<16x39xf32>
    %cst_188 = arith.constant dense<0.000000e+00> : vector<2x39xf32>
    %642 = tpu.matmul %640, %641, %cst_188 {dimension_numbers = #tpu.dot_dimension_numbers<[1], [0], [0], [1], [0, 0, 1, 1], [], []>} : vector<2x16xf32>, vector<16x39xf32>, vector<2x39xf32> -> vector<2x39xf32>
    %643 = arith.addf %612, %642 : vector<2x39xf32>
    %644 = vector.extract_strided_slice %542 {offsets = [6, 0], sizes = [2, 64], strides = [1, 1]} : vector<16x64xf32> to vector<2x64xf32>
    %cst_189 = arith.constant dense<0.000000e+00> : vector<2x64xf32>
    %645 = tpu.matmul %640, %547, %cst_189 {dimension_numbers = #tpu.dot_dimension_numbers<[1], [0], [0], [1], [0, 0, 1, 1], [], []>} : vector<2x16xf32>, vector<16x64xf32>, vector<2x64xf32> -> vector<2x64xf32>
    %646 = arith.addf %644, %645 : vector<2x64xf32>
    %647 = vector.extract_strided_slice %646 {offsets = [0, 0], sizes = [2, 16], strides = [1, 1]} : vector<2x64xf32> to vector<2x16xf32>
    %648 = arith.negf %647 : vector<2x16xf32>
    %649 = math.exp %648 : vector<2x16xf32>
    %cst_190 = arith.constant 1.000000e+00 : f32
    %650 = vector.broadcast %cst_190 : f32 to vector<2x16xf32>
    %651 = arith.addf %650, %649 : vector<2x16xf32>
    %652 = arith.divf %650, %651 : vector<2x16xf32>
    %653 = vector.extract_strided_slice %646 {offsets = [0, 16], sizes = [2, 16], strides = [1, 1]} : vector<2x64xf32> to vector<2x16xf32>
    %654 = arith.negf %653 : vector<2x16xf32>
    %655 = math.exp %654 : vector<2x16xf32>
    %cst_191 = arith.constant 1.000000e+00 : f32
    %656 = vector.broadcast %cst_191 : f32 to vector<2x16xf32>
    %657 = arith.addf %656, %655 : vector<2x16xf32>
    %658 = arith.divf %656, %657 : vector<2x16xf32>
    %659 = vector.extract_strided_slice %646 {offsets = [0, 32], sizes = [2, 16], strides = [1, 1]} : vector<2x64xf32> to vector<2x16xf32>
    %660 = math.tanh %659 : vector<2x16xf32>
    %661 = vector.extract_strided_slice %646 {offsets = [0, 48], sizes = [2, 16], strides = [1, 1]} : vector<2x64xf32> to vector<2x16xf32>
    %662 = arith.negf %661 : vector<2x16xf32>
    %663 = math.exp %662 : vector<2x16xf32>
    %cst_192 = arith.constant 1.000000e+00 : f32
    %664 = vector.broadcast %cst_192 : f32 to vector<2x16xf32>
    %665 = arith.addf %664, %663 : vector<2x16xf32>
    %666 = arith.divf %664, %665 : vector<2x16xf32>
    %667 = arith.mulf %658, %638 : vector<2x16xf32>
    %668 = arith.mulf %652, %660 : vector<2x16xf32>
    %669 = arith.addf %667, %668 : vector<2x16xf32>
    %670 = math.tanh %669 : vector<2x16xf32>
    %671 = arith.mulf %666, %670 : vector<2x16xf32>
    %c96 = arith.constant 96 : index
    %c0_193 = arith.constant 0 : index
    %672 = vector.load %arg13[%c96, %c0_193] : memref<256x39xf32, #tpu.memory_space<vmem>>, vector<16x39xf32>
    %cst_194 = arith.constant dense<0.000000e+00> : vector<2x39xf32>
    %673 = tpu.matmul %671, %672, %cst_194 {dimension_numbers = #tpu.dot_dimension_numbers<[1], [0], [0], [1], [0, 0, 1, 1], [], []>} : vector<2x16xf32>, vector<16x39xf32>, vector<2x39xf32> -> vector<2x39xf32>
    %674 = arith.addf %643, %673 : vector<2x39xf32>
    %675 = vector.extract_strided_slice %542 {offsets = [8, 0], sizes = [2, 64], strides = [1, 1]} : vector<16x64xf32> to vector<2x64xf32>
    %cst_195 = arith.constant dense<0.000000e+00> : vector<2x64xf32>
    %676 = tpu.matmul %671, %547, %cst_195 {dimension_numbers = #tpu.dot_dimension_numbers<[1], [0], [0], [1], [0, 0, 1, 1], [], []>} : vector<2x16xf32>, vector<16x64xf32>, vector<2x64xf32> -> vector<2x64xf32>
    %677 = arith.addf %675, %676 : vector<2x64xf32>
    %678 = vector.extract_strided_slice %677 {offsets = [0, 0], sizes = [2, 16], strides = [1, 1]} : vector<2x64xf32> to vector<2x16xf32>
    %679 = arith.negf %678 : vector<2x16xf32>
    %680 = math.exp %679 : vector<2x16xf32>
    %cst_196 = arith.constant 1.000000e+00 : f32
    %681 = vector.broadcast %cst_196 : f32 to vector<2x16xf32>
    %682 = arith.addf %681, %680 : vector<2x16xf32>
    %683 = arith.divf %681, %682 : vector<2x16xf32>
    %684 = vector.extract_strided_slice %677 {offsets = [0, 16], sizes = [2, 16], strides = [1, 1]} : vector<2x64xf32> to vector<2x16xf32>
    %685 = arith.negf %684 : vector<2x16xf32>
    %686 = math.exp %685 : vector<2x16xf32>
    %cst_197 = arith.constant 1.000000e+00 : f32
    %687 = vector.broadcast %cst_197 : f32 to vector<2x16xf32>
    %688 = arith.addf %687, %686 : vector<2x16xf32>
    %689 = arith.divf %687, %688 : vector<2x16xf32>
    %690 = vector.extract_strided_slice %677 {offsets = [0, 32], sizes = [2, 16], strides = [1, 1]} : vector<2x64xf32> to vector<2x16xf32>
    %691 = math.tanh %690 : vector<2x16xf32>
    %692 = vector.extract_strided_slice %677 {offsets = [0, 48], sizes = [2, 16], strides = [1, 1]} : vector<2x64xf32> to vector<2x16xf32>
    %693 = arith.negf %692 : vector<2x16xf32>
    %694 = math.exp %693 : vector<2x16xf32>
    %cst_198 = arith.constant 1.000000e+00 : f32
    %695 = vector.broadcast %cst_198 : f32 to vector<2x16xf32>
    %696 = arith.addf %695, %694 : vector<2x16xf32>
    %697 = arith.divf %695, %696 : vector<2x16xf32>
    %698 = arith.mulf %689, %669 : vector<2x16xf32>
    %699 = arith.mulf %683, %691 : vector<2x16xf32>
    %700 = arith.addf %698, %699 : vector<2x16xf32>
    %701 = math.tanh %700 : vector<2x16xf32>
    %702 = arith.mulf %697, %701 : vector<2x16xf32>
    %c128 = arith.constant 128 : index
    %c0_199 = arith.constant 0 : index
    %703 = vector.load %arg13[%c128, %c0_199] : memref<256x39xf32, #tpu.memory_space<vmem>>, vector<16x39xf32>
    %cst_200 = arith.constant dense<0.000000e+00> : vector<2x39xf32>
    %704 = tpu.matmul %702, %703, %cst_200 {dimension_numbers = #tpu.dot_dimension_numbers<[1], [0], [0], [1], [0, 0, 1, 1], [], []>} : vector<2x16xf32>, vector<16x39xf32>, vector<2x39xf32> -> vector<2x39xf32>
    %705 = arith.addf %674, %704 : vector<2x39xf32>
    %706 = vector.extract_strided_slice %542 {offsets = [10, 0], sizes = [2, 64], strides = [1, 1]} : vector<16x64xf32> to vector<2x64xf32>
    %cst_201 = arith.constant dense<0.000000e+00> : vector<2x64xf32>
    %707 = tpu.matmul %702, %547, %cst_201 {dimension_numbers = #tpu.dot_dimension_numbers<[1], [0], [0], [1], [0, 0, 1, 1], [], []>} : vector<2x16xf32>, vector<16x64xf32>, vector<2x64xf32> -> vector<2x64xf32>
    %708 = arith.addf %706, %707 : vector<2x64xf32>
    %709 = vector.extract_strided_slice %708 {offsets = [0, 0], sizes = [2, 16], strides = [1, 1]} : vector<2x64xf32> to vector<2x16xf32>
    %710 = arith.negf %709 : vector<2x16xf32>
    %711 = math.exp %710 : vector<2x16xf32>
    %cst_202 = arith.constant 1.000000e+00 : f32
    %712 = vector.broadcast %cst_202 : f32 to vector<2x16xf32>
    %713 = arith.addf %712, %711 : vector<2x16xf32>
    %714 = arith.divf %712, %713 : vector<2x16xf32>
    %715 = vector.extract_strided_slice %708 {offsets = [0, 16], sizes = [2, 16], strides = [1, 1]} : vector<2x64xf32> to vector<2x16xf32>
    %716 = arith.negf %715 : vector<2x16xf32>
    %717 = math.exp %716 : vector<2x16xf32>
    %cst_203 = arith.constant 1.000000e+00 : f32
    %718 = vector.broadcast %cst_203 : f32 to vector<2x16xf32>
    %719 = arith.addf %718, %717 : vector<2x16xf32>
    %720 = arith.divf %718, %719 : vector<2x16xf32>
    %721 = vector.extract_strided_slice %708 {offsets = [0, 32], sizes = [2, 16], strides = [1, 1]} : vector<2x64xf32> to vector<2x16xf32>
    %722 = math.tanh %721 : vector<2x16xf32>
    %723 = vector.extract_strided_slice %708 {offsets = [0, 48], sizes = [2, 16], strides = [1, 1]} : vector<2x64xf32> to vector<2x16xf32>
    %724 = arith.negf %723 : vector<2x16xf32>
    %725 = math.exp %724 : vector<2x16xf32>
    %cst_204 = arith.constant 1.000000e+00 : f32
    %726 = vector.broadcast %cst_204 : f32 to vector<2x16xf32>
    %727 = arith.addf %726, %725 : vector<2x16xf32>
    %728 = arith.divf %726, %727 : vector<2x16xf32>
    %729 = arith.mulf %720, %700 : vector<2x16xf32>
    %730 = arith.mulf %714, %722 : vector<2x16xf32>
    %731 = arith.addf %729, %730 : vector<2x16xf32>
    %732 = math.tanh %731 : vector<2x16xf32>
    %733 = arith.mulf %728, %732 : vector<2x16xf32>
    %c160 = arith.constant 160 : index
    %c0_205 = arith.constant 0 : index
    %734 = vector.load %arg13[%c160, %c0_205] : memref<256x39xf32, #tpu.memory_space<vmem>>, vector<16x39xf32>
    %cst_206 = arith.constant dense<0.000000e+00> : vector<2x39xf32>
    %735 = tpu.matmul %733, %734, %cst_206 {dimension_numbers = #tpu.dot_dimension_numbers<[1], [0], [0], [1], [0, 0, 1, 1], [], []>} : vector<2x16xf32>, vector<16x39xf32>, vector<2x39xf32> -> vector<2x39xf32>
    %736 = arith.addf %705, %735 : vector<2x39xf32>
    %737 = vector.extract_strided_slice %542 {offsets = [12, 0], sizes = [2, 64], strides = [1, 1]} : vector<16x64xf32> to vector<2x64xf32>
    %cst_207 = arith.constant dense<0.000000e+00> : vector<2x64xf32>
    %738 = tpu.matmul %733, %547, %cst_207 {dimension_numbers = #tpu.dot_dimension_numbers<[1], [0], [0], [1], [0, 0, 1, 1], [], []>} : vector<2x16xf32>, vector<16x64xf32>, vector<2x64xf32> -> vector<2x64xf32>
    %739 = arith.addf %737, %738 : vector<2x64xf32>
    %740 = vector.extract_strided_slice %739 {offsets = [0, 0], sizes = [2, 16], strides = [1, 1]} : vector<2x64xf32> to vector<2x16xf32>
    %741 = arith.negf %740 : vector<2x16xf32>
    %742 = math.exp %741 : vector<2x16xf32>
    %cst_208 = arith.constant 1.000000e+00 : f32
    %743 = vector.broadcast %cst_208 : f32 to vector<2x16xf32>
    %744 = arith.addf %743, %742 : vector<2x16xf32>
    %745 = arith.divf %743, %744 : vector<2x16xf32>
    %746 = vector.extract_strided_slice %739 {offsets = [0, 16], sizes = [2, 16], strides = [1, 1]} : vector<2x64xf32> to vector<2x16xf32>
    %747 = arith.negf %746 : vector<2x16xf32>
    %748 = math.exp %747 : vector<2x16xf32>
    %cst_209 = arith.constant 1.000000e+00 : f32
    %749 = vector.broadcast %cst_209 : f32 to vector<2x16xf32>
    %750 = arith.addf %749, %748 : vector<2x16xf32>
    %751 = arith.divf %749, %750 : vector<2x16xf32>
    %752 = vector.extract_strided_slice %739 {offsets = [0, 32], sizes = [2, 16], strides = [1, 1]} : vector<2x64xf32> to vector<2x16xf32>
    %753 = math.tanh %752 : vector<2x16xf32>
    %754 = vector.extract_strided_slice %739 {offsets = [0, 48], sizes = [2, 16], strides = [1, 1]} : vector<2x64xf32> to vector<2x16xf32>
    %755 = arith.negf %754 : vector<2x16xf32>
    %756 = math.exp %755 : vector<2x16xf32>
    %cst_210 = arith.constant 1.000000e+00 : f32
    %757 = vector.broadcast %cst_210 : f32 to vector<2x16xf32>
    %758 = arith.addf %757, %756 : vector<2x16xf32>
    %759 = arith.divf %757, %758 : vector<2x16xf32>
    %760 = arith.mulf %751, %731 : vector<2x16xf32>
    %761 = arith.mulf %745, %753 : vector<2x16xf32>
    %762 = arith.addf %760, %761 : vector<2x16xf32>
    %763 = math.tanh %762 : vector<2x16xf32>
    %764 = arith.mulf %759, %763 : vector<2x16xf32>
    %c192 = arith.constant 192 : index
    %c0_211 = arith.constant 0 : index
    %765 = vector.load %arg13[%c192, %c0_211] : memref<256x39xf32, #tpu.memory_space<vmem>>, vector<16x39xf32>
    %cst_212 = arith.constant dense<0.000000e+00> : vector<2x39xf32>
    %766 = tpu.matmul %764, %765, %cst_212 {dimension_numbers = #tpu.dot_dimension_numbers<[1], [0], [0], [1], [0, 0, 1, 1], [], []>} : vector<2x16xf32>, vector<16x39xf32>, vector<2x39xf32> -> vector<2x39xf32>
    %767 = arith.addf %736, %766 : vector<2x39xf32>
    %768 = vector.extract_strided_slice %542 {offsets = [14, 0], sizes = [2, 64], strides = [1, 1]} : vector<16x64xf32> to vector<2x64xf32>
    %cst_213 = arith.constant dense<0.000000e+00> : vector<2x64xf32>
    %769 = tpu.matmul %764, %547, %cst_213 {dimension_numbers = #tpu.dot_dimension_numbers<[1], [0], [0], [1], [0, 0, 1, 1], [], []>} : vector<2x16xf32>, vector<16x64xf32>, vector<2x64xf32> -> vector<2x64xf32>
    %770 = arith.addf %768, %769 : vector<2x64xf32>
    %771 = vector.extract_strided_slice %770 {offsets = [0, 0], sizes = [2, 16], strides = [1, 1]} : vector<2x64xf32> to vector<2x16xf32>
    %772 = arith.negf %771 : vector<2x16xf32>
    %773 = math.exp %772 : vector<2x16xf32>
    %cst_214 = arith.constant 1.000000e+00 : f32
    %774 = vector.broadcast %cst_214 : f32 to vector<2x16xf32>
    %775 = arith.addf %774, %773 : vector<2x16xf32>
    %776 = arith.divf %774, %775 : vector<2x16xf32>
    %777 = vector.extract_strided_slice %770 {offsets = [0, 16], sizes = [2, 16], strides = [1, 1]} : vector<2x64xf32> to vector<2x16xf32>
    %778 = arith.negf %777 : vector<2x16xf32>
    %779 = math.exp %778 : vector<2x16xf32>
    %cst_215 = arith.constant 1.000000e+00 : f32
    %780 = vector.broadcast %cst_215 : f32 to vector<2x16xf32>
    %781 = arith.addf %780, %779 : vector<2x16xf32>
    %782 = arith.divf %780, %781 : vector<2x16xf32>
    %783 = vector.extract_strided_slice %770 {offsets = [0, 32], sizes = [2, 16], strides = [1, 1]} : vector<2x64xf32> to vector<2x16xf32>
    %784 = math.tanh %783 : vector<2x16xf32>
    %785 = vector.extract_strided_slice %770 {offsets = [0, 48], sizes = [2, 16], strides = [1, 1]} : vector<2x64xf32> to vector<2x16xf32>
    %786 = arith.negf %785 : vector<2x16xf32>
    %787 = math.exp %786 : vector<2x16xf32>
    %cst_216 = arith.constant 1.000000e+00 : f32
    %788 = vector.broadcast %cst_216 : f32 to vector<2x16xf32>
    %789 = arith.addf %788, %787 : vector<2x16xf32>
    %790 = arith.divf %788, %789 : vector<2x16xf32>
    %791 = arith.mulf %782, %762 : vector<2x16xf32>
    %792 = arith.mulf %776, %784 : vector<2x16xf32>
    %793 = arith.addf %791, %792 : vector<2x16xf32>
    %794 = math.tanh %793 : vector<2x16xf32>
    %795 = arith.mulf %790, %794 : vector<2x16xf32>
    %c224 = arith.constant 224 : index
    %c0_217 = arith.constant 0 : index
    %796 = vector.load %arg13[%c224, %c0_217] : memref<256x39xf32, #tpu.memory_space<vmem>>, vector<16x39xf32>
    %cst_218 = arith.constant dense<0.000000e+00> : vector<2x39xf32>
    %797 = tpu.matmul %795, %796, %cst_218 {dimension_numbers = #tpu.dot_dimension_numbers<[1], [0], [0], [1], [0, 0, 1, 1], [], []>} : vector<2x16xf32>, vector<16x39xf32>, vector<2x39xf32> -> vector<2x39xf32>
    %798 = arith.addf %767, %797 : vector<2x39xf32>
    %799 = vector.extract_strided_slice %546 {offsets = [14, 0], sizes = [2, 64], strides = [1, 1]} : vector<16x64xf32> to vector<2x64xf32>
    %cst_219 = arith.constant dense<0.000000e+00> : vector<2x64xf32>
    %800 = tpu.matmul %549, %548, %cst_219 {dimension_numbers = #tpu.dot_dimension_numbers<[1], [0], [0], [1], [0, 0, 1, 1], [], []>} : vector<2x16xf32>, vector<16x64xf32>, vector<2x64xf32> -> vector<2x64xf32>
    %801 = arith.addf %799, %800 : vector<2x64xf32>
    %802 = vector.extract_strided_slice %801 {offsets = [0, 0], sizes = [2, 16], strides = [1, 1]} : vector<2x64xf32> to vector<2x16xf32>
    %803 = arith.negf %802 : vector<2x16xf32>
    %804 = math.exp %803 : vector<2x16xf32>
    %cst_220 = arith.constant 1.000000e+00 : f32
    %805 = vector.broadcast %cst_220 : f32 to vector<2x16xf32>
    %806 = arith.addf %805, %804 : vector<2x16xf32>
    %807 = arith.divf %805, %806 : vector<2x16xf32>
    %808 = vector.extract_strided_slice %801 {offsets = [0, 16], sizes = [2, 16], strides = [1, 1]} : vector<2x64xf32> to vector<2x16xf32>
    %809 = arith.negf %808 : vector<2x16xf32>
    %810 = math.exp %809 : vector<2x16xf32>
    %cst_221 = arith.constant 1.000000e+00 : f32
    %811 = vector.broadcast %cst_221 : f32 to vector<2x16xf32>
    %812 = arith.addf %811, %810 : vector<2x16xf32>
    %813 = arith.divf %811, %812 : vector<2x16xf32>
    %814 = vector.extract_strided_slice %801 {offsets = [0, 32], sizes = [2, 16], strides = [1, 1]} : vector<2x64xf32> to vector<2x16xf32>
    %815 = math.tanh %814 : vector<2x16xf32>
    %816 = vector.extract_strided_slice %801 {offsets = [0, 48], sizes = [2, 16], strides = [1, 1]} : vector<2x64xf32> to vector<2x16xf32>
    %817 = arith.negf %816 : vector<2x16xf32>
    %818 = math.exp %817 : vector<2x16xf32>
    %cst_222 = arith.constant 1.000000e+00 : f32
    %819 = vector.broadcast %cst_222 : f32 to vector<2x16xf32>
    %820 = arith.addf %819, %818 : vector<2x16xf32>
    %821 = arith.divf %819, %820 : vector<2x16xf32>
    %822 = arith.mulf %813, %549 : vector<2x16xf32>
    %823 = arith.mulf %807, %815 : vector<2x16xf32>
    %824 = arith.addf %822, %823 : vector<2x16xf32>
    %825 = math.tanh %824 : vector<2x16xf32>
    %826 = arith.mulf %821, %825 : vector<2x16xf32>
    %c240 = arith.constant 240 : index
    %c0_223 = arith.constant 0 : index
    %827 = vector.load %arg13[%c240, %c0_223] : memref<256x39xf32, #tpu.memory_space<vmem>>, vector<16x39xf32>
    %cst_224 = arith.constant dense<0.000000e+00> : vector<2x39xf32>
    %828 = tpu.matmul %826, %827, %cst_224 {dimension_numbers = #tpu.dot_dimension_numbers<[1], [0], [0], [1], [0, 0, 1, 1], [], []>} : vector<2x16xf32>, vector<16x39xf32>, vector<2x39xf32> -> vector<2x39xf32>
    %829 = arith.addf %798, %828 : vector<2x39xf32>
    %830 = vector.extract_strided_slice %546 {offsets = [12, 0], sizes = [2, 64], strides = [1, 1]} : vector<16x64xf32> to vector<2x64xf32>
    %cst_225 = arith.constant dense<0.000000e+00> : vector<2x64xf32>
    %831 = tpu.matmul %826, %548, %cst_225 {dimension_numbers = #tpu.dot_dimension_numbers<[1], [0], [0], [1], [0, 0, 1, 1], [], []>} : vector<2x16xf32>, vector<16x64xf32>, vector<2x64xf32> -> vector<2x64xf32>
    %832 = arith.addf %830, %831 : vector<2x64xf32>
    %833 = vector.extract_strided_slice %832 {offsets = [0, 0], sizes = [2, 16], strides = [1, 1]} : vector<2x64xf32> to vector<2x16xf32>
    %834 = arith.negf %833 : vector<2x16xf32>
    %835 = math.exp %834 : vector<2x16xf32>
    %cst_226 = arith.constant 1.000000e+00 : f32
    %836 = vector.broadcast %cst_226 : f32 to vector<2x16xf32>
    %837 = arith.addf %836, %835 : vector<2x16xf32>
    %838 = arith.divf %836, %837 : vector<2x16xf32>
    %839 = vector.extract_strided_slice %832 {offsets = [0, 16], sizes = [2, 16], strides = [1, 1]} : vector<2x64xf32> to vector<2x16xf32>
    %840 = arith.negf %839 : vector<2x16xf32>
    %841 = math.exp %840 : vector<2x16xf32>
    %cst_227 = arith.constant 1.000000e+00 : f32
    %842 = vector.broadcast %cst_227 : f32 to vector<2x16xf32>
    %843 = arith.addf %842, %841 : vector<2x16xf32>
    %844 = arith.divf %842, %843 : vector<2x16xf32>
    %845 = vector.extract_strided_slice %832 {offsets = [0, 32], sizes = [2, 16], strides = [1, 1]} : vector<2x64xf32> to vector<2x16xf32>
    %846 = math.tanh %845 : vector<2x16xf32>
    %847 = vector.extract_strided_slice %832 {offsets = [0, 48], sizes = [2, 16], strides = [1, 1]} : vector<2x64xf32> to vector<2x16xf32>
    %848 = arith.negf %847 : vector<2x16xf32>
    %849 = math.exp %848 : vector<2x16xf32>
    %cst_228 = arith.constant 1.000000e+00 : f32
    %850 = vector.broadcast %cst_228 : f32 to vector<2x16xf32>
    %851 = arith.addf %850, %849 : vector<2x16xf32>
    %852 = arith.divf %850, %851 : vector<2x16xf32>
    %853 = arith.mulf %844, %824 : vector<2x16xf32>
    %854 = arith.mulf %838, %846 : vector<2x16xf32>
    %855 = arith.addf %853, %854 : vector<2x16xf32>
    %856 = math.tanh %855 : vector<2x16xf32>
    %857 = arith.mulf %852, %856 : vector<2x16xf32>
    %c208 = arith.constant 208 : index
    %c0_229 = arith.constant 0 : index
    %858 = vector.load %arg13[%c208, %c0_229] : memref<256x39xf32, #tpu.memory_space<vmem>>, vector<16x39xf32>
    %cst_230 = arith.constant dense<0.000000e+00> : vector<2x39xf32>
    %859 = tpu.matmul %857, %858, %cst_230 {dimension_numbers = #tpu.dot_dimension_numbers<[1], [0], [0], [1], [0, 0, 1, 1], [], []>} : vector<2x16xf32>, vector<16x39xf32>, vector<2x39xf32> -> vector<2x39xf32>
    %860 = arith.addf %829, %859 : vector<2x39xf32>
    %861 = vector.extract_strided_slice %546 {offsets = [10, 0], sizes = [2, 64], strides = [1, 1]} : vector<16x64xf32> to vector<2x64xf32>
    %cst_231 = arith.constant dense<0.000000e+00> : vector<2x64xf32>
    %862 = tpu.matmul %857, %548, %cst_231 {dimension_numbers = #tpu.dot_dimension_numbers<[1], [0], [0], [1], [0, 0, 1, 1], [], []>} : vector<2x16xf32>, vector<16x64xf32>, vector<2x64xf32> -> vector<2x64xf32>
    %863 = arith.addf %861, %862 : vector<2x64xf32>
    %864 = vector.extract_strided_slice %863 {offsets = [0, 0], sizes = [2, 16], strides = [1, 1]} : vector<2x64xf32> to vector<2x16xf32>
    %865 = arith.negf %864 : vector<2x16xf32>
    %866 = math.exp %865 : vector<2x16xf32>
    %cst_232 = arith.constant 1.000000e+00 : f32
    %867 = vector.broadcast %cst_232 : f32 to vector<2x16xf32>
    %868 = arith.addf %867, %866 : vector<2x16xf32>
    %869 = arith.divf %867, %868 : vector<2x16xf32>
    %870 = vector.extract_strided_slice %863 {offsets = [0, 16], sizes = [2, 16], strides = [1, 1]} : vector<2x64xf32> to vector<2x16xf32>
    %871 = arith.negf %870 : vector<2x16xf32>
    %872 = math.exp %871 : vector<2x16xf32>
    %cst_233 = arith.constant 1.000000e+00 : f32
    %873 = vector.broadcast %cst_233 : f32 to vector<2x16xf32>
    %874 = arith.addf %873, %872 : vector<2x16xf32>
    %875 = arith.divf %873, %874 : vector<2x16xf32>
    %876 = vector.extract_strided_slice %863 {offsets = [0, 32], sizes = [2, 16], strides = [1, 1]} : vector<2x64xf32> to vector<2x16xf32>
    %877 = math.tanh %876 : vector<2x16xf32>
    %878 = vector.extract_strided_slice %863 {offsets = [0, 48], sizes = [2, 16], strides = [1, 1]} : vector<2x64xf32> to vector<2x16xf32>
    %879 = arith.negf %878 : vector<2x16xf32>
    %880 = math.exp %879 : vector<2x16xf32>
    %cst_234 = arith.constant 1.000000e+00 : f32
    %881 = vector.broadcast %cst_234 : f32 to vector<2x16xf32>
    %882 = arith.addf %881, %880 : vector<2x16xf32>
    %883 = arith.divf %881, %882 : vector<2x16xf32>
    %884 = arith.mulf %875, %855 : vector<2x16xf32>
    %885 = arith.mulf %869, %877 : vector<2x16xf32>
    %886 = arith.addf %884, %885 : vector<2x16xf32>
    %887 = math.tanh %886 : vector<2x16xf32>
    %888 = arith.mulf %883, %887 : vector<2x16xf32>
    %c176 = arith.constant 176 : index
    %c0_235 = arith.constant 0 : index
    %889 = vector.load %arg13[%c176, %c0_235] : memref<256x39xf32, #tpu.memory_space<vmem>>, vector<16x39xf32>
    %cst_236 = arith.constant dense<0.000000e+00> : vector<2x39xf32>
    %890 = tpu.matmul %888, %889, %cst_236 {dimension_numbers = #tpu.dot_dimension_numbers<[1], [0], [0], [1], [0, 0, 1, 1], [], []>} : vector<2x16xf32>, vector<16x39xf32>, vector<2x39xf32> -> vector<2x39xf32>
    %891 = arith.addf %860, %890 : vector<2x39xf32>
    %892 = vector.extract_strided_slice %546 {offsets = [8, 0], sizes = [2, 64], strides = [1, 1]} : vector<16x64xf32> to vector<2x64xf32>
    %cst_237 = arith.constant dense<0.000000e+00> : vector<2x64xf32>
    %893 = tpu.matmul %888, %548, %cst_237 {dimension_numbers = #tpu.dot_dimension_numbers<[1], [0], [0], [1], [0, 0, 1, 1], [], []>} : vector<2x16xf32>, vector<16x64xf32>, vector<2x64xf32> -> vector<2x64xf32>
    %894 = arith.addf %892, %893 : vector<2x64xf32>
    %895 = vector.extract_strided_slice %894 {offsets = [0, 0], sizes = [2, 16], strides = [1, 1]} : vector<2x64xf32> to vector<2x16xf32>
    %896 = arith.negf %895 : vector<2x16xf32>
    %897 = math.exp %896 : vector<2x16xf32>
    %cst_238 = arith.constant 1.000000e+00 : f32
    %898 = vector.broadcast %cst_238 : f32 to vector<2x16xf32>
    %899 = arith.addf %898, %897 : vector<2x16xf32>
    %900 = arith.divf %898, %899 : vector<2x16xf32>
    %901 = vector.extract_strided_slice %894 {offsets = [0, 16], sizes = [2, 16], strides = [1, 1]} : vector<2x64xf32> to vector<2x16xf32>
    %902 = arith.negf %901 : vector<2x16xf32>
    %903 = math.exp %902 : vector<2x16xf32>
    %cst_239 = arith.constant 1.000000e+00 : f32
    %904 = vector.broadcast %cst_239 : f32 to vector<2x16xf32>
    %905 = arith.addf %904, %903 : vector<2x16xf32>
    %906 = arith.divf %904, %905 : vector<2x16xf32>
    %907 = vector.extract_strided_slice %894 {offsets = [0, 32], sizes = [2, 16], strides = [1, 1]} : vector<2x64xf32> to vector<2x16xf32>
    %908 = math.tanh %907 : vector<2x16xf32>
    %909 = vector.extract_strided_slice %894 {offsets = [0, 48], sizes = [2, 16], strides = [1, 1]} : vector<2x64xf32> to vector<2x16xf32>
    %910 = arith.negf %909 : vector<2x16xf32>
    %911 = math.exp %910 : vector<2x16xf32>
    %cst_240 = arith.constant 1.000000e+00 : f32
    %912 = vector.broadcast %cst_240 : f32 to vector<2x16xf32>
    %913 = arith.addf %912, %911 : vector<2x16xf32>
    %914 = arith.divf %912, %913 : vector<2x16xf32>
    %915 = arith.mulf %906, %886 : vector<2x16xf32>
    %916 = arith.mulf %900, %908 : vector<2x16xf32>
    %917 = arith.addf %915, %916 : vector<2x16xf32>
    %918 = math.tanh %917 : vector<2x16xf32>
    %919 = arith.mulf %914, %918 : vector<2x16xf32>
    %c144 = arith.constant 144 : index
    %c0_241 = arith.constant 0 : index
    %920 = vector.load %arg13[%c144, %c0_241] : memref<256x39xf32, #tpu.memory_space<vmem>>, vector<16x39xf32>
    %cst_242 = arith.constant dense<0.000000e+00> : vector<2x39xf32>
    %921 = tpu.matmul %919, %920, %cst_242 {dimension_numbers = #tpu.dot_dimension_numbers<[1], [0], [0], [1], [0, 0, 1, 1], [], []>} : vector<2x16xf32>, vector<16x39xf32>, vector<2x39xf32> -> vector<2x39xf32>
    %922 = arith.addf %891, %921 : vector<2x39xf32>
    %923 = vector.extract_strided_slice %546 {offsets = [6, 0], sizes = [2, 64], strides = [1, 1]} : vector<16x64xf32> to vector<2x64xf32>
    %cst_243 = arith.constant dense<0.000000e+00> : vector<2x64xf32>
    %924 = tpu.matmul %919, %548, %cst_243 {dimension_numbers = #tpu.dot_dimension_numbers<[1], [0], [0], [1], [0, 0, 1, 1], [], []>} : vector<2x16xf32>, vector<16x64xf32>, vector<2x64xf32> -> vector<2x64xf32>
    %925 = arith.addf %923, %924 : vector<2x64xf32>
    %926 = vector.extract_strided_slice %925 {offsets = [0, 0], sizes = [2, 16], strides = [1, 1]} : vector<2x64xf32> to vector<2x16xf32>
    %927 = arith.negf %926 : vector<2x16xf32>
    %928 = math.exp %927 : vector<2x16xf32>
    %cst_244 = arith.constant 1.000000e+00 : f32
    %929 = vector.broadcast %cst_244 : f32 to vector<2x16xf32>
    %930 = arith.addf %929, %928 : vector<2x16xf32>
    %931 = arith.divf %929, %930 : vector<2x16xf32>
    %932 = vector.extract_strided_slice %925 {offsets = [0, 16], sizes = [2, 16], strides = [1, 1]} : vector<2x64xf32> to vector<2x16xf32>
    %933 = arith.negf %932 : vector<2x16xf32>
    %934 = math.exp %933 : vector<2x16xf32>
    %cst_245 = arith.constant 1.000000e+00 : f32
    %935 = vector.broadcast %cst_245 : f32 to vector<2x16xf32>
    %936 = arith.addf %935, %934 : vector<2x16xf32>
    %937 = arith.divf %935, %936 : vector<2x16xf32>
    %938 = vector.extract_strided_slice %925 {offsets = [0, 32], sizes = [2, 16], strides = [1, 1]} : vector<2x64xf32> to vector<2x16xf32>
    %939 = math.tanh %938 : vector<2x16xf32>
    %940 = vector.extract_strided_slice %925 {offsets = [0, 48], sizes = [2, 16], strides = [1, 1]} : vector<2x64xf32> to vector<2x16xf32>
    %941 = arith.negf %940 : vector<2x16xf32>
    %942 = math.exp %941 : vector<2x16xf32>
    %cst_246 = arith.constant 1.000000e+00 : f32
    %943 = vector.broadcast %cst_246 : f32 to vector<2x16xf32>
    %944 = arith.addf %943, %942 : vector<2x16xf32>
    %945 = arith.divf %943, %944 : vector<2x16xf32>
    %946 = arith.mulf %937, %917 : vector<2x16xf32>
    %947 = arith.mulf %931, %939 : vector<2x16xf32>
    %948 = arith.addf %946, %947 : vector<2x16xf32>
    %949 = math.tanh %948 : vector<2x16xf32>
    %950 = arith.mulf %945, %949 : vector<2x16xf32>
    %c112 = arith.constant 112 : index
    %c0_247 = arith.constant 0 : index
    %951 = vector.load %arg13[%c112, %c0_247] : memref<256x39xf32, #tpu.memory_space<vmem>>, vector<16x39xf32>
    %cst_248 = arith.constant dense<0.000000e+00> : vector<2x39xf32>
    %952 = tpu.matmul %950, %951, %cst_248 {dimension_numbers = #tpu.dot_dimension_numbers<[1], [0], [0], [1], [0, 0, 1, 1], [], []>} : vector<2x16xf32>, vector<16x39xf32>, vector<2x39xf32> -> vector<2x39xf32>
    %953 = arith.addf %922, %952 : vector<2x39xf32>
    %954 = vector.extract_strided_slice %546 {offsets = [4, 0], sizes = [2, 64], strides = [1, 1]} : vector<16x64xf32> to vector<2x64xf32>
    %cst_249 = arith.constant dense<0.000000e+00> : vector<2x64xf32>
    %955 = tpu.matmul %950, %548, %cst_249 {dimension_numbers = #tpu.dot_dimension_numbers<[1], [0], [0], [1], [0, 0, 1, 1], [], []>} : vector<2x16xf32>, vector<16x64xf32>, vector<2x64xf32> -> vector<2x64xf32>
    %956 = arith.addf %954, %955 : vector<2x64xf32>
    %957 = vector.extract_strided_slice %956 {offsets = [0, 0], sizes = [2, 16], strides = [1, 1]} : vector<2x64xf32> to vector<2x16xf32>
    %958 = arith.negf %957 : vector<2x16xf32>
    %959 = math.exp %958 : vector<2x16xf32>
    %cst_250 = arith.constant 1.000000e+00 : f32
    %960 = vector.broadcast %cst_250 : f32 to vector<2x16xf32>
    %961 = arith.addf %960, %959 : vector<2x16xf32>
    %962 = arith.divf %960, %961 : vector<2x16xf32>
    %963 = vector.extract_strided_slice %956 {offsets = [0, 16], sizes = [2, 16], strides = [1, 1]} : vector<2x64xf32> to vector<2x16xf32>
    %964 = arith.negf %963 : vector<2x16xf32>
    %965 = math.exp %964 : vector<2x16xf32>
    %cst_251 = arith.constant 1.000000e+00 : f32
    %966 = vector.broadcast %cst_251 : f32 to vector<2x16xf32>
    %967 = arith.addf %966, %965 : vector<2x16xf32>
    %968 = arith.divf %966, %967 : vector<2x16xf32>
    %969 = vector.extract_strided_slice %956 {offsets = [0, 32], sizes = [2, 16], strides = [1, 1]} : vector<2x64xf32> to vector<2x16xf32>
    %970 = math.tanh %969 : vector<2x16xf32>
    %971 = vector.extract_strided_slice %956 {offsets = [0, 48], sizes = [2, 16], strides = [1, 1]} : vector<2x64xf32> to vector<2x16xf32>
    %972 = arith.negf %971 : vector<2x16xf32>
    %973 = math.exp %972 : vector<2x16xf32>
    %cst_252 = arith.constant 1.000000e+00 : f32
    %974 = vector.broadcast %cst_252 : f32 to vector<2x16xf32>
    %975 = arith.addf %974, %973 : vector<2x16xf32>
    %976 = arith.divf %974, %975 : vector<2x16xf32>
    %977 = arith.mulf %968, %948 : vector<2x16xf32>
    %978 = arith.mulf %962, %970 : vector<2x16xf32>
    %979 = arith.addf %977, %978 : vector<2x16xf32>
    %980 = math.tanh %979 : vector<2x16xf32>
    %981 = arith.mulf %976, %980 : vector<2x16xf32>
    %c80 = arith.constant 80 : index
    %c0_253 = arith.constant 0 : index
    %982 = vector.load %arg13[%c80, %c0_253] : memref<256x39xf32, #tpu.memory_space<vmem>>, vector<16x39xf32>
    %cst_254 = arith.constant dense<0.000000e+00> : vector<2x39xf32>
    %983 = tpu.matmul %981, %982, %cst_254 {dimension_numbers = #tpu.dot_dimension_numbers<[1], [0], [0], [1], [0, 0, 1, 1], [], []>} : vector<2x16xf32>, vector<16x39xf32>, vector<2x39xf32> -> vector<2x39xf32>
    %984 = arith.addf %953, %983 : vector<2x39xf32>
    %985 = vector.extract_strided_slice %546 {offsets = [2, 0], sizes = [2, 64], strides = [1, 1]} : vector<16x64xf32> to vector<2x64xf32>
    %cst_255 = arith.constant dense<0.000000e+00> : vector<2x64xf32>
    %986 = tpu.matmul %981, %548, %cst_255 {dimension_numbers = #tpu.dot_dimension_numbers<[1], [0], [0], [1], [0, 0, 1, 1], [], []>} : vector<2x16xf32>, vector<16x64xf32>, vector<2x64xf32> -> vector<2x64xf32>
    %987 = arith.addf %985, %986 : vector<2x64xf32>
    %988 = vector.extract_strided_slice %987 {offsets = [0, 0], sizes = [2, 16], strides = [1, 1]} : vector<2x64xf32> to vector<2x16xf32>
    %989 = arith.negf %988 : vector<2x16xf32>
    %990 = math.exp %989 : vector<2x16xf32>
    %cst_256 = arith.constant 1.000000e+00 : f32
    %991 = vector.broadcast %cst_256 : f32 to vector<2x16xf32>
    %992 = arith.addf %991, %990 : vector<2x16xf32>
    %993 = arith.divf %991, %992 : vector<2x16xf32>
    %994 = vector.extract_strided_slice %987 {offsets = [0, 16], sizes = [2, 16], strides = [1, 1]} : vector<2x64xf32> to vector<2x16xf32>
    %995 = arith.negf %994 : vector<2x16xf32>
    %996 = math.exp %995 : vector<2x16xf32>
    %cst_257 = arith.constant 1.000000e+00 : f32
    %997 = vector.broadcast %cst_257 : f32 to vector<2x16xf32>
    %998 = arith.addf %997, %996 : vector<2x16xf32>
    %999 = arith.divf %997, %998 : vector<2x16xf32>
    %1000 = vector.extract_strided_slice %987 {offsets = [0, 32], sizes = [2, 16], strides = [1, 1]} : vector<2x64xf32> to vector<2x16xf32>
    %1001 = math.tanh %1000 : vector<2x16xf32>
    %1002 = vector.extract_strided_slice %987 {offsets = [0, 48], sizes = [2, 16], strides = [1, 1]} : vector<2x64xf32> to vector<2x16xf32>
    %1003 = arith.negf %1002 : vector<2x16xf32>
    %1004 = math.exp %1003 : vector<2x16xf32>
    %cst_258 = arith.constant 1.000000e+00 : f32
    %1005 = vector.broadcast %cst_258 : f32 to vector<2x16xf32>
    %1006 = arith.addf %1005, %1004 : vector<2x16xf32>
    %1007 = arith.divf %1005, %1006 : vector<2x16xf32>
    %1008 = arith.mulf %999, %979 : vector<2x16xf32>
    %1009 = arith.mulf %993, %1001 : vector<2x16xf32>
    %1010 = arith.addf %1008, %1009 : vector<2x16xf32>
    %1011 = math.tanh %1010 : vector<2x16xf32>
    %1012 = arith.mulf %1007, %1011 : vector<2x16xf32>
    %c48 = arith.constant 48 : index
    %c0_259 = arith.constant 0 : index
    %1013 = vector.load %arg13[%c48, %c0_259] : memref<256x39xf32, #tpu.memory_space<vmem>>, vector<16x39xf32>
    %cst_260 = arith.constant dense<0.000000e+00> : vector<2x39xf32>
    %1014 = tpu.matmul %1012, %1013, %cst_260 {dimension_numbers = #tpu.dot_dimension_numbers<[1], [0], [0], [1], [0, 0, 1, 1], [], []>} : vector<2x16xf32>, vector<16x39xf32>, vector<2x39xf32> -> vector<2x39xf32>
    %1015 = arith.addf %984, %1014 : vector<2x39xf32>
    %1016 = vector.extract_strided_slice %546 {offsets = [0, 0], sizes = [2, 64], strides = [1, 1]} : vector<16x64xf32> to vector<2x64xf32>
    %cst_261 = arith.constant dense<0.000000e+00> : vector<2x64xf32>
    %1017 = tpu.matmul %1012, %548, %cst_261 {dimension_numbers = #tpu.dot_dimension_numbers<[1], [0], [0], [1], [0, 0, 1, 1], [], []>} : vector<2x16xf32>, vector<16x64xf32>, vector<2x64xf32> -> vector<2x64xf32>
    %1018 = arith.addf %1016, %1017 : vector<2x64xf32>
    %1019 = vector.extract_strided_slice %1018 {offsets = [0, 0], sizes = [2, 16], strides = [1, 1]} : vector<2x64xf32> to vector<2x16xf32>
    %1020 = arith.negf %1019 : vector<2x16xf32>
    %1021 = math.exp %1020 : vector<2x16xf32>
    %cst_262 = arith.constant 1.000000e+00 : f32
    %1022 = vector.broadcast %cst_262 : f32 to vector<2x16xf32>
    %1023 = arith.addf %1022, %1021 : vector<2x16xf32>
    %1024 = arith.divf %1022, %1023 : vector<2x16xf32>
    %1025 = vector.extract_strided_slice %1018 {offsets = [0, 16], sizes = [2, 16], strides = [1, 1]} : vector<2x64xf32> to vector<2x16xf32>
    %1026 = arith.negf %1025 : vector<2x16xf32>
    %1027 = math.exp %1026 : vector<2x16xf32>
    %cst_263 = arith.constant 1.000000e+00 : f32
    %1028 = vector.broadcast %cst_263 : f32 to vector<2x16xf32>
    %1029 = arith.addf %1028, %1027 : vector<2x16xf32>
    %1030 = arith.divf %1028, %1029 : vector<2x16xf32>
    %1031 = vector.extract_strided_slice %1018 {offsets = [0, 32], sizes = [2, 16], strides = [1, 1]} : vector<2x64xf32> to vector<2x16xf32>
    %1032 = math.tanh %1031 : vector<2x16xf32>
    %1033 = vector.extract_strided_slice %1018 {offsets = [0, 48], sizes = [2, 16], strides = [1, 1]} : vector<2x64xf32> to vector<2x16xf32>
    %1034 = arith.negf %1033 : vector<2x16xf32>
    %1035 = math.exp %1034 : vector<2x16xf32>
    %cst_264 = arith.constant 1.000000e+00 : f32
    %1036 = vector.broadcast %cst_264 : f32 to vector<2x16xf32>
    %1037 = arith.addf %1036, %1035 : vector<2x16xf32>
    %1038 = arith.divf %1036, %1037 : vector<2x16xf32>
    %1039 = arith.mulf %1030, %1010 : vector<2x16xf32>
    %1040 = arith.mulf %1024, %1032 : vector<2x16xf32>
    %1041 = arith.addf %1039, %1040 : vector<2x16xf32>
    %1042 = math.tanh %1041 : vector<2x16xf32>
    %1043 = arith.mulf %1038, %1042 : vector<2x16xf32>
    %c16 = arith.constant 16 : index
    %c0_265 = arith.constant 0 : index
    %1044 = vector.load %arg13[%c16, %c0_265] : memref<256x39xf32, #tpu.memory_space<vmem>>, vector<16x39xf32>
    %cst_266 = arith.constant dense<0.000000e+00> : vector<2x39xf32>
    %1045 = tpu.matmul %1043, %1044, %cst_266 {dimension_numbers = #tpu.dot_dimension_numbers<[1], [0], [0], [1], [0, 0, 1, 1], [], []>} : vector<2x16xf32>, vector<16x39xf32>, vector<2x39xf32> -> vector<2x39xf32>
    %1046 = arith.addf %1015, %1045 : vector<2x39xf32>
    %1047 = vector.broadcast %521 : vector<1x39xf32> to vector<2x39xf32>
    %1048 = arith.addf %1046, %1047 : vector<2x39xf32>
    %c0_267 = arith.constant 0 : index
    %c0_268 = arith.constant 0 : index
    %1049 = vector.load %arg15[%c0_267, %c0_268] : memref<2x39xf32, #tpu.memory_space<vmem>>, vector<2x39xf32>
    tpu.vector_store %arg15[%c0_267, %c0_268], %1048 {strides = array<i32>} : memref<2x39xf32, #tpu.memory_space<vmem>>, vector<2x39xf32>,
    return
  }
  func.func @transform_0(%arg0: i32) -> (i32, i32) {
    %c0_i32 = arith.constant 0 : i32
    %c0_i32_0 = arith.constant 0 : i32
    %c0_i32_1 = arith.constant 0 : i32
    return %c0_i32, %c0_i32_0 : i32, i32
  }
  func.func @transform_1(%arg0: i32) -> (i32, i32) {
    %c0_i32 = arith.constant 0 : i32
    %c0_i32_0 = arith.constant 0 : i32
    %c0_i32_1 = arith.constant 0 : i32
    return %c0_i32, %c0_i32_0 : i32, i32
  }
  func.func @transform_2(%arg0: i32) -> (i32, i32) {
    %c0_i32 = arith.constant 0 : i32
    %c0_i32_0 = arith.constant 0 : i32
    %c0_i32_1 = arith.constant 0 : i32
    return %c0_i32, %c0_i32_0 : i32, i32
  }
  func.func @transform_3(%arg0: i32) -> (i32, i32, i32) {
    %c0_i32 = arith.constant 0 : i32
    %c0_i32_0 = arith.constant 0 : i32
    %c0_i32_1 = arith.constant 0 : i32
    %c0_i32_2 = arith.constant 0 : i32
    return %c0_i32, %c0_i32_0, %c0_i32_1 : i32, i32, i32
  }
  func.func @transform_4(%arg0: i32) -> (i32, i32, i32) {
    %c0_i32 = arith.constant 0 : i32
    %c0_i32_0 = arith.constant 0 : i32
    %c0_i32_1 = arith.constant 0 : i32
    %c0_i32_2 = arith.constant 0 : i32
    return %c0_i32, %c0_i32_0, %c0_i32_1 : i32, i32, i32
  }
  func.func @transform_5(%arg0: i32) -> (i32, i32, i32) {
    %c0_i32 = arith.constant 0 : i32
    %c0_i32_0 = arith.constant 0 : i32
    %c0_i32_1 = arith.constant 0 : i32
    %c0_i32_2 = arith.constant 0 : i32
    return %c0_i32, %c0_i32_0, %c0_i32_1 : i32, i32, i32
  }
  func.func @transform_6(%arg0: i32) -> (i32, i32, i32) {
    %c0_i32 = arith.constant 0 : i32
    %c0_i32_0 = arith.constant 0 : i32
    %c0_i32_1 = arith.constant 0 : i32
    %c0_i32_2 = arith.constant 0 : i32
    return %c0_i32, %c0_i32_0, %c0_i32_1 : i32, i32, i32
  }
  func.func @transform_7(%arg0: i32) -> (i32, i32, i32) {
    %c0_i32 = arith.constant 0 : i32
    %c0_i32_0 = arith.constant 0 : i32
    %c0_i32_1 = arith.constant 0 : i32
    %c0_i32_2 = arith.constant 0 : i32
    return %c0_i32, %c0_i32_0, %c0_i32_1 : i32, i32, i32
  }
  func.func @transform_8(%arg0: i32) -> (i32, i32) {
    %c0_i32 = arith.constant 0 : i32
    %c0_i32_0 = arith.constant 0 : i32
    %c0_i32_1 = arith.constant 0 : i32
    return %c0_i32, %c0_i32_0 : i32, i32
  }
  func.func @transform_9(%arg0: i32) -> (i32, i32) {
    %c0_i32 = arith.constant 0 : i32
    %c0_i32_0 = arith.constant 0 : i32
    %c0_i32_1 = arith.constant 0 : i32
    return %c0_i32, %c0_i32_0 : i32, i32
  }
  func.func @transform_10(%arg0: i32) -> (i32, i32) {
    %c0_i32 = arith.constant 0 : i32
    %c0_i32_0 = arith.constant 0 : i32
    %c0_i32_1 = arith.constant 0 : i32
    return %c0_i32, %c0_i32_0 : i32, i32
  }
  func.func @transform_11(%arg0: i32) -> (i32, i32) {
    %c0_i32 = arith.constant 0 : i32
    %c0_i32_0 = arith.constant 0 : i32
    %c0_i32_1 = arith.constant 0 : i32
    return %c0_i32, %c0_i32_0 : i32, i32
  }
  func.func @transform_12(%arg0: i32) -> (i32, i32) {
    %c0_i32 = arith.constant 0 : i32
    %c0_i32_0 = arith.constant 0 : i32
    %c0_i32_1 = arith.constant 0 : i32
    return %c0_i32, %c0_i32_0 : i32, i32
  }
  func.func @transform_13(%arg0: i32) -> (i32, i32) {
    %c0_i32 = arith.constant 0 : i32
    %c0_i32_0 = arith.constant 0 : i32
    %c0_i32_1 = arith.constant 0 : i32
    return %c0_i32, %c0_i32_0 : i32, i32
  }
  func.func @transform_14(%arg0: i32) -> (i32, i32) {
    %c0_i32 = arith.constant 0 : i32
    %c0_i32_0 = arith.constant 0 : i32
    %c0_i32_1 = arith.constant 0 : i32
    return %c0_i32, %c0_i32_0 : i32, i32
  }
}

</mosaic_0001>

<llo_original>
// kernel: custom_bert_forward.1
$region0: #{custom_bert_forward.1}
  #allocation0 [shape = 'u32[]', space=smem, size = 0x4, offset = 0x4, fixed_abs, tag = 'smem constant byte address 0x4 - core index']
  #allocation1 [shape = 'u32[72,128]{1,0:T(1,128)}', space=vmem, size = 0x9000, scoped, tag = 'internal scratch']
  %s0 = inlined_call_operand.vmem [shape: f32[16,32], index: 0, kind: input, shape index: {}]
  %s1 = inlined_call_operand.vmem [shape: f32[2,8], index: 1, kind: input, shape index: {}]
  %s2 = inlined_call_operand.vmem [shape: f32[2,32], index: 2, kind: input, shape index: {}]
  %s3 = inlined_call_operand.vmem [shape: f32[2,32,96], index: 3, kind: input, shape index: {}]
  %s4 = inlined_call_operand.vmem [shape: f32[2,32,32], index: 4, kind: input, shape index: {}]
  %s5 = inlined_call_operand.vmem [shape: f32[2,32,64], index: 5, kind: input, shape index: {}]
  %s6 = inlined_call_operand.vmem [shape: f32[2,64,32], index: 6, kind: input, shape index: {}]
  %s7 = inlined_call_operand.vmem [shape: f32[2,8,96], index: 7, kind: input, shape index: {}]
  %s8 = inlined_call_operand.vmem [shape: f32[32,64], index: 8, kind: input, shape index: {}]
  %s9 = inlined_call_operand.vmem [shape: f32[16,64], index: 9, kind: input, shape index: {}]
  %s10 = inlined_call_operand.vmem [shape: f32[32,64], index: 10, kind: input, shape index: {}]
  %s11 = inlined_call_operand.vmem [shape: f32[16,64], index: 11, kind: input, shape index: {}]
  %s12 = inlined_call_operand.vmem [shape: f32[256,39], index: 12, kind: input, shape index: {}]
  %s13 = inlined_call_operand.vmem [shape: f32[3,64], index: 13, kind: input, shape index: {}]
  %s14 = inlined_call_operand.hbm [shape: f32[2,39], index: 14, kind: output, shape index: {}]
  %s15 = sld [smem:[#allocation0]]
  $region66: #{custom_bert_forward.1} parent=0
    _
  %s17 = ssub.s32 1, %s15
  %s18 = scalar_select 0, %s17, %s15
  $region1: #{custom_bert_forward.1} parent=0
    #allocation2 [shape = 'u8[1024]{0}', space=vmem, size = 0x400, scoped, tag = 'output window, operand 0, single buffered']
    #allocation3 [shape = 's32[1]{0}', space=sflag, size = 0x4, scoped, tag = 'scoped memory for custom_bert_forward.1']
    %19 = vsyncpa [#allocation3], 0
    // Predicated region
    $region2: #{custom_bert_forward.1} parent=1 // pred_check
      _
    $region3: #{custom_bert_forward.1} parent=1 // pred_check_branch
      %21 = sbr.rel (0) target = $region5
    $region4: #{custom_bert_forward.1} parent=1 // pred_region
      _
    $region5: #{custom_bert_forward.1} parent=1 // pred_fallthru
      _
    // Predicated region
    $region6: #{custom_bert_forward.1} parent=1 // pred_check
      _
    $region7: #{custom_bert_forward.1} parent=1 // pred_check_branch
      %23 = sbr.rel (0) target = $region9
    $region8: #{custom_bert_forward.1} parent=1 // pred_region
      _
    $region9: #{custom_bert_forward.1} parent=1 // pred_fallthru
      _
    // Predicated region
    $region10: #{custom_bert_forward.1} parent=1 // pred_check
      _
    $region11: #{custom_bert_forward.1} parent=1 // pred_check_branch
      %25 = sbr.rel (0) target = $region13
    $region12: #{custom_bert_forward.1} parent=1 // pred_region
      _
    $region13: #{custom_bert_forward.1} parent=1 // pred_fallthru
      _
    // Predicated region
    $region14: #{custom_bert_forward.1} parent=1 // pred_check
      _
    $region15: #{custom_bert_forward.1} parent=1 // pred_check_branch
      %27 = sbr.rel (0) target = $region17
    $region16: #{custom_bert_forward.1} parent=1 // pred_region
      _
    $region17: #{custom_bert_forward.1} parent=1 // pred_fallthru
      _
    // Predicated region
    $region18: #{custom_bert_forward.1} parent=1 // pred_check
      _
    $region19: #{custom_bert_forward.1} parent=1 // pred_check_branch
      %29 = sbr.rel (0) target = $region21
    $region20: #{custom_bert_forward.1} parent=1 // pred_region
      _
    $region21: #{custom_bert_forward.1} parent=1 // pred_fallthru
      _
    // Predicated region
    $region22: #{custom_bert_forward.1} parent=1 // pred_check
      _
    $region23: #{custom_bert_forward.1} parent=1 // pred_check_branch
      %31 = sbr.rel (0) target = $region25
    $region24: #{custom_bert_forward.1} parent=1 // pred_region
      _
    $region25: #{custom_bert_forward.1} parent=1 // pred_fallthru
      _
    // Predicated region
    $region26: #{custom_bert_forward.1} parent=1 // pred_check
      _
    $region27: #{custom_bert_forward.1} parent=1 // pred_check_branch
      %33 = sbr.rel (0) target = $region29
    $region28: #{custom_bert_forward.1} parent=1 // pred_region
      _
    $region29: #{custom_bert_forward.1} parent=1 // pred_fallthru
      _
    // Predicated region
    $region30: #{custom_bert_forward.1} parent=1 // pred_check
      _
    $region31: #{custom_bert_forward.1} parent=1 // pred_check_branch
      %35 = sbr.rel (0) target = $region33
    $region32: #{custom_bert_forward.1} parent=1 // pred_region
      _
    $region33: #{custom_bert_forward.1} parent=1 // pred_fallthru
      _
    // Predicated region
    $region34: #{custom_bert_forward.1} parent=1 // pred_check
      _
    $region35: #{custom_bert_forward.1} parent=1 // pred_check_branch
      %37 = sbr.rel (0) target = $region37
    $region36: #{custom_bert_forward.1} parent=1 // pred_region
      _
    $region37: #{custom_bert_forward.1} parent=1 // pred_fallthru
      _
    // Predicated region
    $region38: #{custom_bert_forward.1} parent=1 // pred_check
      _
    $region39: #{custom_bert_forward.1} parent=1 // pred_check_branch
      %39 = sbr.rel (0) target = $region41
    $region40: #{custom_bert_forward.1} parent=1 // pred_region
      _
    $region41: #{custom_bert_forward.1} parent=1 // pred_fallthru
      _
    // Predicated region
    $region42: #{custom_bert_forward.1} parent=1 // pred_check
      _
    $region43: #{custom_bert_forward.1} parent=1 // pred_check_branch
      %41 = sbr.rel (0) target = $region45
    $region44: #{custom_bert_forward.1} parent=1 // pred_region
      _
    $region45: #{custom_bert_forward.1} parent=1 // pred_fallthru
      _
    // Predicated region
    $region46: #{custom_bert_forward.1} parent=1 // pred_check
      _
    $region47: #{custom_bert_forward.1} parent=1 // pred_check_branch
      %43 = sbr.rel (0) target = $region49
    $region48: #{custom_bert_forward.1} parent=1 // pred_region
      _
    $region49: #{custom_bert_forward.1} parent=1 // pred_fallthru
      _
    // Predicated region
    $region50: #{custom_bert_forward.1} parent=1 // pred_check
      _
    $region51: #{custom_bert_forward.1} parent=1 // pred_check_branch
      %45 = sbr.rel (0) target = $region53
    $region52: #{custom_bert_forward.1} parent=1 // pred_region
      _
    $region53: #{custom_bert_forward.1} parent=1 // pred_fallthru
      _
    // Predicated region
    $region54: #{custom_bert_forward.1} parent=1 // pred_check
      _
    $region55: #{custom_bert_forward.1} parent=1 // pred_check_branch
      %47 = sbr.rel (0) target = $region57
    $region56: #{custom_bert_forward.1} parent=1 // pred_region
      _
    $region57: #{custom_bert_forward.1} parent=1 // pred_fallthru
      _
    %v48 = vld [vmem:[%s0] sm:$0xff]
    %v49 = vld [vmem:[%s0 + $0x8] sm:$0xff]
    %v50 = vld [vmem:[%s2] sm:$0x1]
    %v51 = vld [vmem:[%s2 + $0x1] sm:$0x1]
    %vm52 = vcmask 261120
    %v53 = vsel %vm52, %v48, 0.0
    %54 = vadd.xlane.f32.xlu0 %v53
    %v55 = vpop.xlane.xlu0 %54
    %v56 = vsel %vm52, %v49, 0.0
    %57 = vadd.xlane.f32.xlu0 %v56
    %v58 = vpop.xlane.xlu0 %57
    %v59 = vrcp.pop 32.0
    %v60 = vmul.f32 32.0, %v59
    %v61 = vsub.f32 1.0, %v60
    %v62 = vmul.f32 %v59, %v61
    %v63 = vadd.f32 %v59, %v62
    %vm64 = vweird.f32 %v59
    %v65 = vsel %vm64, %v59, %v63
    %v66 = vmul.f32 %v55, %v65
    %v67 = vmul.f32 %v58, %v65
    %v68 = vsub.f32 %v48, %v66
    %v69 = vsub.f32 %v49, %v67
    %v70 = vmul.f32 %v68, %v68
    %v71 = vmul.f32 %v69, %v69
    %v72 = vsel %vm52, %v70, 0.0
    %73 = vadd.xlane.f32.xlu0 %v72
    %v74 = vpop.xlane.xlu0 %73
    %v75 = vsel %vm52, %v71, 0.0
    %76 = vadd.xlane.f32.xlu0 %v75
    %v77 = vpop.xlane.xlu0 %76
    %v78 = vmul.f32 %v74, %v65
    %v79 = vmul.f32 %v77, %v65
    %v80 = vadd.f32 %v78, 1e-12
    %v81 = vadd.f32 %v79, 1e-12
    %v82 = vrsqrt.pop %v80
    %v83 = vmul.f32 %v82, %v80
    %v84 = vmul.f32 %v83, %v82
    %v85 = vmul.f32 0.5, %v84
    %v86 = vsub.f32 1.5, %v85
    %v87 = vmul.f32 %v82, %v86
    %vm88 = vweird.f32 %v80
    %vm89 = vweird.f32 %v82
    %vm90 = vmor %vm88, %vm89
    %v91 = vsel %vm90, %v82, %v87
    %v92 = vrsqrt.pop %v81
    %v93 = vmul.f32 %v92, %v81
    %v94 = vmul.f32 %v93, %v92
    %v95 = vmul.f32 0.5, %v94
    %v96 = vsub.f32 1.5, %v95
    %v97 = vmul.f32 %v92, %v96
    %vm98 = vweird.f32 %v81
    %vm99 = vweird.f32 %v92
    %vm100 = vmor %vm98, %vm99
    %v101 = vsel %vm100, %v92, %v97
    %v102 = vmul.f32 %v68, %v91
    %v103 = vmul.f32 %v69, %v101
    %v104 = vperm.slane %v50, 0
    %v105 = vmul.f32 %v102, %v104
    %v106 = vmul.f32 %v103, %v104
    %v107 = vperm.slane %v51, 0
    %v108 = vadd.f32 %v105, %v107
    %v109 = vadd.f32 %v106, %v107
    %v110 = vld [vmem:[%s1] sm:$0x3]
    %v111 = vld [vmem:[%s3] sm:$0xff]
    %v112 = vld [vmem:[%s3 + $0x8] sm:$0xff]
    %v113 = vld [vmem:[%s3 + $0x10] sm:$0xff]
    %v114 = vld [vmem:[%s3 + $0x18] sm:$0xff]
    %v115 = vld [vmem:[%s4] sm:$0xff]
    %v116 = vld [vmem:[%s4 + $0x8] sm:$0xff]
    %v117 = vld [vmem:[%s4 + $0x10] sm:$0xff]
    %v118 = vld [vmem:[%s4 + $0x18] sm:$0xff]
    %v119 = vld [vmem:[%s5] sm:$0xff]
    %v120 = vld [vmem:[%s5 + $0x8] sm:$0xff]
    %v121 = vld [vmem:[%s5 + $0x10] sm:$0xff]
    %v122 = vld [vmem:[%s5 + $0x18] sm:$0xff]
    %v123 = vld [vmem:[%s6] sm:$0xff]
    %v124 = vld [vmem:[%s6 + $0x8] sm:$0xff]
    %v125 = vld [vmem:[%s6 + $0x10] sm:$0xff]
    %v126 = vld [vmem:[%s6 + $0x18] sm:$0xff]
    %v127 = vld [vmem:[%s6 + $0x20] sm:$0xff]
    %v128 = vld [vmem:[%s6 + $0x28] sm:$0xff]
    %v129 = vld [vmem:[%s6 + $0x30] sm:$0xff]
    %v130 = vld [vmem:[%s6 + $0x38] sm:$0xff]
    %v131 = vld [vmem:[%s7] sm:$0xff]
    %v132 = vperm.slane %v131, 0
    %v134 = vsel %vm52, %v108, 0
    %v137 = vsel %vm52, %v109, 0
    %139 = vmatpush.msra.mxu0 0.0
    %140 = vmatpush.msra.mxu0 0.0
    %141 = vmatpush.msra.mxu0 0.0
    %142 = vmatpush.msra.mxu0 0.0
    %143 = vmatpush.msra.mxu0 0.0
    %144 = vmatpush.msra.mxu0 0.0
    %145 = vmatpush.msra.mxu0 0.0
    %146 = vmatpush.msra.mxu0 0.0
    %147 = vmatpush.msra.mxu0 0.0
    %148 = vmatpush.msra.mxu0 0.0
    %149 = vmatpush.msra.mxu0 0.0
    %150 = vmatpush.msra.mxu0 0.0
    %151 = vmatpush.msra.mxu0 %v114
    %152 = vmatpush.msra.mxu0 %v113
    %153 = vmatpush.msra.mxu0 %v112
    %154 = vmatpush.msra.mxu0 %v111
    %155 = vmatmul.f32.gmra.mxu0 %v134
    %v156 = vpop.f32.mrf.mxu0
    %v157 = vadd.f32 %v132, %v156
    %158 = vmatmul.f32.gmra.mxu0 %v137
    %v159 = vpop.f32.mrf.mxu0
    %v160 = vadd.f32 %v132, %v159
    %161 = vdwg.mxu0
    %163 = vrot.lane.b32.xlu0 %v157, 96
    %v164 = vpop.permute.xlu0 %163
    %vm165 = vcmask 64512
    %v166 = vsel %vm165, %v157, 0
    %v168 = vsel %vm165, %v164, 0
    %170 = vmatpush.xpose.msra.mxu0 0.0
    %171 = vmatpush.xpose.msra.mxu0 0.0
    %172 = vmatpush.xpose.msra.mxu0 0.0
    %173 = vmatpush.xpose.msra.mxu0 0.0
    %174 = vmatpush.xpose.msra.mxu0 0.0
    %175 = vmatpush.xpose.msra.mxu0 0.0
    %176 = vmatpush.xpose.msra.mxu0 0.0
    %177 = vmatpush.xpose.msra.mxu0 0.0
    %178 = vmatpush.xpose.msra.mxu0 0.0
    %179 = vmatpush.xpose.msra.mxu0 0.0
    %180 = vmatpush.xpose.msra.mxu0 0.0
    %181 = vmatpush.xpose.msra.mxu0 0.0
    %182 = vmatpush.xpose.msra.mxu0 0.0
    %183 = vmatpush.xpose.msra.mxu0 0.0
    %184 = vmatpush.xpose.msra.mxu0 0.0
    %185 = vmatpush.xpose.msra.mxu0 %v168
    %186 = vmatmul.f32.gmra.mxu0 %v166
    %v187 = vpop.f32.mrf.mxu0
    %v188 = vadd.f32 0.0, %v187
    %189 = vdwg.mxu0
    %v190 = vmul.f32 %v188, 0.35355338
    %v191 = vperm.slane %v110, 0
    %v192 = vadd.f32 %v190, %v191
    %v193 = vsel %vm165, %v192, -inf
    %194 = vmax.xlane.f32.xlu0 %v193
    %v195 = vpop.xlane.xlu0 %194
    %v196 = vsub.f32 %v192, %v195
    %v197 = vmul.f32 %v196, 1.442695
    %v198 = vpow.pop %v197
    %v199 = vsel %vm165, %v198, 0.0
    %200 = vadd.xlane.f32.xlu0 %v199
    %v201 = vpop.xlane.xlu0 %200
    %v202 = vrcp.pop %v201
    %v203 = vmul.f32 %v198, %v202
    %204 = vrot.lane.b32.xlu0 %v157, 64
    %v205 = vpop.permute.xlu0 %204
    %v208 = vsel %vm165, %v203, 0
    %210 = vmatpush.msra.mxu0 0.0
    %211 = vmatpush.msra.mxu0 0.0
    %212 = vmatpush.msra.mxu0 0.0
    %213 = vmatpush.msra.mxu0 0.0
    %214 = vmatpush.msra.mxu0 0.0
    %215 = vmatpush.msra.mxu0 0.0
    %216 = vmatpush.msra.mxu0 0.0
    %217 = vmatpush.msra.mxu0 0.0
    %218 = vmatpush.msra.mxu0 0.0
    %219 = vmatpush.msra.mxu0 0.0
    %220 = vmatpush.msra.mxu0 0.0
    %221 = vmatpush.msra.mxu0 0.0
    %222 = vmatpush.msra.mxu0 0.0
    %223 = vmatpush.msra.mxu0 0.0
    %224 = vmatpush.msra.mxu0 0.0
    %225 = vmatpush.msra.mxu0 %v205
    %226 = vmatmul.f32.gmra.mxu0 %v208
    %v227 = vpop.f32.mrf.mxu0
    %v228 = vadd.f32 0.0, %v227
    %229 = vdwg.mxu0
    %230 = vrot.lane.b32.xlu0 %v157, 120
    %v231 = vpop.permute.xlu0 %230
    %232 = vrot.lane.b32.xlu0 %v157, 88
    %v233 = vpop.permute.xlu0 %232
    %v234 = vsel %vm165, %v231, 0
    %v236 = vsel %vm165, %v233, 0
    %238 = vmatpush.xpose.msra.mxu0 0.0
    %239 = vmatpush.xpose.msra.mxu0 0.0
    %240 = vmatpush.xpose.msra.mxu0 0.0
    %241 = vmatpush.xpose.msra.mxu0 0.0
    %242 = vmatpush.xpose.msra.mxu0 0.0
    %243 = vmatpush.xpose.msra.mxu0 0.0
    %244 = vmatpush.xpose.msra.mxu0 0.0
    %245 = vmatpush.xpose.msra.mxu0 0.0
    %246 = vmatpush.xpose.msra.mxu0 0.0
    %247 = vmatpush.xpose.msra.mxu0 0.0
    %248 = vmatpush.xpose.msra.mxu0 0.0
    %249 = vmatpush.xpose.msra.mxu0 0.0
    %250 = vmatpush.xpose.msra.mxu0 0.0
    %251 = vmatpush.xpose.msra.mxu0 0.0
    %252 = vmatpush.xpose.msra.mxu0 0.0
    %253 = vmatpush.xpose.msra.mxu0 %v236
    %254 = vmatmul.f32.gmra.mxu0 %v234
    %v255 = vpop.f32.mrf.mxu0
    %v256 = vadd.f32 0.0, %v255
    %257 = vdwg.mxu0
    %v258 = vmul.f32 %v256, 0.35355338
    %v259 = vadd.f32 %v258, %v191
    %v260 = vsel %vm165, %v259, -inf
    %261 = vmax.xlane.f32.xlu0 %v260
    %v262 = vpop.xlane.xlu0 %261
    %v263 = vsub.f32 %v259, %v262
    %v264 = vmul.f32 %v263, 1.442695
    %v265 = vpow.pop %v264
    %v266 = vsel %vm165, %v265, 0.0
    %267 = vadd.xlane.f32.xlu0 %v266
    %v268 = vpop.xlane.xlu0 %267
    %v269 = vrcp.pop %v268
    %v270 = vmul.f32 %v265, %v269
    %271 = vrot.lane.b32.xlu0 %v157, 56
    %v272 = vpop.permute.xlu0 %271
    %v275 = vsel %vm165, %v270, 0
    %277 = vmatpush.msra.mxu0 0.0
    %278 = vmatpush.msra.mxu0 0.0
    %279 = vmatpush.msra.mxu0 0.0
    %280 = vmatpush.msra.mxu0 0.0
    %281 = vmatpush.msra.mxu0 0.0
    %282 = vmatpush.msra.mxu0 0.0
    %283 = vmatpush.msra.mxu0 0.0
    %284 = vmatpush.msra.mxu0 0.0
    %285 = vmatpush.msra.mxu0 0.0
    %286 = vmatpush.msra.mxu0 0.0
    %287 = vmatpush.msra.mxu0 0.0
    %288 = vmatpush.msra.mxu0 0.0
    %289 = vmatpush.msra.mxu0 0.0
    %290 = vmatpush.msra.mxu0 0.0
    %291 = vmatpush.msra.mxu0 0.0
    %292 = vmatpush.msra.mxu0 %v272
    %293 = vmatmul.f32.gmra.mxu0 %v275
    %v294 = vpop.f32.mrf.mxu0
    %v295 = vadd.f32 0.0, %v294
    %296 = vdwg.mxu0
    %297 = vrot.lane.b32.xlu0 %v157, 112
    %v298 = vpop.permute.xlu0 %297
    %299 = vrot.lane.b32.xlu0 %v157, 80
    %v300 = vpop.permute.xlu0 %299
    %v301 = vsel %vm165, %v298, 0
    %v303 = vsel %vm165, %v300, 0
    %305 = vmatpush.xpose.msra.mxu0 0.0
    %306 = vmatpush.xpose.msra.mxu0 0.0
    %307 = vmatpush.xpose.msra.mxu0 0.0
    %308 = vmatpush.xpose.msra.mxu0 0.0
    %309 = vmatpush.xpose.msra.mxu0 0.0
    %310 = vmatpush.xpose.msra.mxu0 0.0
    %311 = vmatpush.xpose.msra.mxu0 0.0
    %312 = vmatpush.xpose.msra.mxu0 0.0
    %313 = vmatpush.xpose.msra.mxu0 0.0
    %314 = vmatpush.xpose.msra.mxu0 0.0
    %315 = vmatpush.xpose.msra.mxu0 0.0
    %316 = vmatpush.xpose.msra.mxu0 0.0
    %317 = vmatpush.xpose.msra.mxu0 0.0
    %318 = vmatpush.xpose.msra.mxu0 0.0
    %319 = vmatpush.xpose.msra.mxu0 0.0
    %320 = vmatpush.xpose.msra.mxu0 %v303
    %321 = vmatmul.f32.gmra.mxu0 %v301
    %v322 = vpop.f32.mrf.mxu0
    %v323 = vadd.f32 0.0, %v322
    %324 = vdwg.mxu0
    %v325 = vmul.f32 %v323, 0.35355338
    %v326 = vadd.f32 %v325, %v191
    %v327 = vsel %vm165, %v326, -inf
    %328 = vmax.xlane.f32.xlu0 %v327
    %v329 = vpop.xlane.xlu0 %328
    %v330 = vsub.f32 %v326, %v329
    %v331 = vmul.f32 %v330, 1.442695
    %v332 = vpow.pop %v331
    %v333 = vsel %vm165, %v332, 0.0
    %334 = vadd.xlane.f32.xlu0 %v333
    %v335 = vpop.xlane.xlu0 %334
    %v336 = vrcp.pop %v335
    %v337 = vmul.f32 %v332, %v336
    %338 = vrot.lane.b32.xlu0 %v157, 48
    %v339 = vpop.permute.xlu0 %338
    %v342 = vsel %vm165, %v337, 0
    %344 = vmatpush.msra.mxu0 0.0
    %345 = vmatpush.msra.mxu0 0.0
    %346 = vmatpush.msra.mxu0 0.0
    %347 = vmatpush.msra.mxu0 0.0
    %348 = vmatpush.msra.mxu0 0.0
    %349 = vmatpush.msra.mxu0 0.0
    %350 = vmatpush.msra.mxu0 0.0
    %351 = vmatpush.msra.mxu0 0.0
    %352 = vmatpush.msra.mxu0 0.0
    %353 = vmatpush.msra.mxu0 0.0
    %354 = vmatpush.msra.mxu0 0.0
    %355 = vmatpush.msra.mxu0 0.0
    %356 = vmatpush.msra.mxu0 0.0
    %357 = vmatpush.msra.mxu0 0.0
    %358 = vmatpush.msra.mxu0 0.0
    %359 = vmatpush.msra.mxu0 %v339
    %360 = vmatmul.f32.gmra.mxu0 %v342
    %v361 = vpop.f32.mrf.mxu0
    %v362 = vadd.f32 0.0, %v361
    %363 = vdwg.mxu0
    %364 = vrot.lane.b32.xlu0 %v157, 104
    %v365 = vpop.permute.xlu0 %364
    %366 = vrot.lane.b32.xlu0 %v157, 72
    %v367 = vpop.permute.xlu0 %366
    %v368 = vsel %vm165, %v365, 0
    %v370 = vsel %vm165, %v367, 0
    %372 = vmatpush.xpose.msra.mxu0 0.0
    %373 = vmatpush.xpose.msra.mxu0 0.0
    %374 = vmatpush.xpose.msra.mxu0 0.0
    %375 = vmatpush.xpose.msra.mxu0 0.0
    %376 = vmatpush.xpose.msra.mxu0 0.0
    %377 = vmatpush.xpose.msra.mxu0 0.0
    %378 = vmatpush.xpose.msra.mxu0 0.0
    %379 = vmatpush.xpose.msra.mxu0 0.0
    %380 = vmatpush.xpose.msra.mxu0 0.0
    %381 = vmatpush.xpose.msra.mxu0 0.0
    %382 = vmatpush.xpose.msra.mxu0 0.0
    %383 = vmatpush.xpose.msra.mxu0 0.0
    %384 = vmatpush.xpose.msra.mxu0 0.0
    %385 = vmatpush.xpose.msra.mxu0 0.0
    %386 = vmatpush.xpose.msra.mxu0 0.0
    %387 = vmatpush.xpose.msra.mxu0 %v370
    %388 = vmatmul.f32.gmra.mxu0 %v368
    %v389 = vpop.f32.mrf.mxu0
    %v390 = vadd.f32 0.0, %v389
    %391 = vdwg.mxu0
    %v392 = vmul.f32 %v390, 0.35355338
    %v393 = vadd.f32 %v392, %v191
    %v394 = vsel %vm165, %v393, -inf
    %395 = vmax.xlane.f32.xlu0 %v394
    %v396 = vpop.xlane.xlu0 %395
    %v397 = vsub.f32 %v393, %v396
    %v398 = vmul.f32 %v397, 1.442695
    %v399 = vpow.pop %v398
    %v400 = vsel %vm165, %v399, 0.0
    %401 = vadd.xlane.f32.xlu0 %v400
    %v402 = vpop.xlane.xlu0 %401
    %v403 = vrcp.pop %v402
    %v404 = vmul.f32 %v399, %v403
    %405 = vrot.lane.b32.xlu0 %v157, 40
    %v406 = vpop.permute.xlu0 %405
    %v409 = vsel %vm165, %v404, 0
    %411 = vmatpush.msra.mxu0 0.0
    %412 = vmatpush.msra.mxu0 0.0
    %413 = vmatpush.msra.mxu0 0.0
    %414 = vmatpush.msra.mxu0 0.0
    %415 = vmatpush.msra.mxu0 0.0
    %416 = vmatpush.msra.mxu0 0.0
    %417 = vmatpush.msra.mxu0 0.0
    %418 = vmatpush.msra.mxu0 0.0
    %419 = vmatpush.msra.mxu0 0.0
    %420 = vmatpush.msra.mxu0 0.0
    %421 = vmatpush.msra.mxu0 0.0
    %422 = vmatpush.msra.mxu0 0.0
    %423 = vmatpush.msra.mxu0 0.0
    %424 = vmatpush.msra.mxu0 0.0
    %425 = vmatpush.msra.mxu0 0.0
    %426 = vmatpush.msra.mxu0 %v406
    %427 = vmatmul.f32.gmra.mxu0 %v409
    %v428 = vpop.f32.mrf.mxu0
    %v429 = vadd.f32 0.0, %v428
    %430 = vdwg.mxu0
    %432 = vrot.lane.b32.xlu0 %v295, 8
    %v433 = vpop.permute.xlu0 %432
    %436 = vrot.lane.b32.xlu0 %v362, 16
    %v437 = vpop.permute.xlu0 %436
    %440 = vrot.lane.b32.xlu0 %v429, 24
    %v441 = vpop.permute.xlu0 %440
    %v443 = vsel %vm165, %v228, %v433
    %vm444 = vcmask 130048
    %v445 = vsel %vm444, %v443, %v437
    %vm446 = vcmask 195584
    %v447 = vsel %vm446, %v445, %v441
    %449 = vrot.lane.b32.xlu0 %v160, 96
    %v450 = vpop.permute.xlu0 %449
    %v451 = vsel %vm165, %v160, 0
    %v453 = vsel %vm165, %v450, 0
    %455 = vmatpush.xpose.msra.mxu0 0.0
    %456 = vmatpush.xpose.msra.mxu0 0.0
    %457 = vmatpush.xpose.msra.mxu0 0.0
    %458 = vmatpush.xpose.msra.mxu0 0.0
    %459 = vmatpush.xpose.msra.mxu0 0.0
    %460 = vmatpush.xpose.msra.mxu0 0.0
    %461 = vmatpush.xpose.msra.mxu0 0.0
    %462 = vmatpush.xpose.msra.mxu0 0.0
    %463 = vmatpush.xpose.msra.mxu0 0.0
    %464 = vmatpush.xpose.msra.mxu0 0.0
    %465 = vmatpush.xpose.msra.mxu0 0.0
    %466 = vmatpush.xpose.msra.mxu0 0.0
    %467 = vmatpush.xpose.msra.mxu0 0.0
    %468 = vmatpush.xpose.msra.mxu0 0.0
    %469 = vmatpush.xpose.msra.mxu0 0.0
    %470 = vmatpush.xpose.msra.mxu0 %v453
    %471 = vmatmul.f32.gmra.mxu0 %v451
    %v472 = vpop.f32.mrf.mxu0
    %v473 = vadd.f32 0.0, %v472
    %474 = vdwg.mxu0
    %v475 = vmul.f32 %v473, 0.35355338
    %v476 = vperm.slane %v110, 1
    %v477 = vadd.f32 %v475, %v476
    %v478 = vsel %vm165, %v477, -inf
    %479 = vmax.xlane.f32.xlu0 %v478
    %v480 = vpop.xlane.xlu0 %479
    %v481 = vsub.f32 %v477, %v480
    %v482 = vmul.f32 %v481, 1.442695
    %v483 = vpow.pop %v482
    %v484 = vsel %vm165, %v483, 0.0
    %485 = vadd.xlane.f32.xlu0 %v484
    %v486 = vpop.xlane.xlu0 %485
    %v487 = vrcp.pop %v486
    %v488 = vmul.f32 %v483, %v487
    %489 = vrot.lane.b32.xlu0 %v160, 64
    %v490 = vpop.permute.xlu0 %489
    %v493 = vsel %vm165, %v488, 0
    %495 = vmatpush.msra.mxu0 0.0
    %496 = vmatpush.msra.mxu0 0.0
    %497 = vmatpush.msra.mxu0 0.0
    %498 = vmatpush.msra.mxu0 0.0
    %499 = vmatpush.msra.mxu0 0.0
    %500 = vmatpush.msra.mxu0 0.0
    %501 = vmatpush.msra.mxu0 0.0
    %502 = vmatpush.msra.mxu0 0.0
    %503 = vmatpush.msra.mxu0 0.0
    %504 = vmatpush.msra.mxu0 0.0
    %505 = vmatpush.msra.mxu0 0.0
    %506 = vmatpush.msra.mxu0 0.0
    %507 = vmatpush.msra.mxu0 0.0
    %508 = vmatpush.msra.mxu0 0.0
    %509 = vmatpush.msra.mxu0 0.0
    %510 = vmatpush.msra.mxu0 %v490
    %511 = vmatmul.f32.gmra.mxu0 %v493
    %v512 = vpop.f32.mrf.mxu0
    %v513 = vadd.f32 0.0, %v512
    %514 = vdwg.mxu0
    %515 = vrot.lane.b32.xlu0 %v160, 120
    %v516 = vpop.permute.xlu0 %515
    %517 = vrot.lane.b32.xlu0 %v160, 88
    %v518 = vpop.permute.xlu0 %517
    %v519 = vsel %vm165, %v516, 0
    %v521 = vsel %vm165, %v518, 0
    %523 = vmatpush.xpose.msra.mxu0 0.0
    %524 = vmatpush.xpose.msra.mxu0 0.0
    %525 = vmatpush.xpose.msra.mxu0 0.0
    %526 = vmatpush.xpose.msra.mxu0 0.0
    %527 = vmatpush.xpose.msra.mxu0 0.0
    %528 = vmatpush.xpose.msra.mxu0 0.0
    %529 = vmatpush.xpose.msra.mxu0 0.0
    %530 = vmatpush.xpose.msra.mxu0 0.0
    %531 = vmatpush.xpose.msra.mxu0 0.0
    %532 = vmatpush.xpose.msra.mxu0 0.0
    %533 = vmatpush.xpose.msra.mxu0 0.0
    %534 = vmatpush.xpose.msra.mxu0 0.0
    %535 = vmatpush.xpose.msra.mxu0 0.0
    %536 = vmatpush.xpose.msra.mxu0 0.0
    %537 = vmatpush.xpose.msra.mxu0 0.0
    %538 = vmatpush.xpose.msra.mxu0 %v521
    %539 = vmatmul.f32.gmra.mxu0 %v519
    %v540 = vpop.f32.mrf.mxu0
    %v541 = vadd.f32 0.0, %v540
    %542 = vdwg.mxu0
    %v543 = vmul.f32 %v541, 0.35355338
    %v544 = vadd.f32 %v543, %v476
    %v545 = vsel %vm165, %v544, -inf
    %546 = vmax.xlane.f32.xlu0 %v545
    %v547 = vpop.xlane.xlu0 %546
    %v548 = vsub.f32 %v544, %v547
    %v549 = vmul.f32 %v548, 1.442695
    %v550 = vpow.pop %v549
    %v551 = vsel %vm165, %v550, 0.0
    %552 = vadd.xlane.f32.xlu0 %v551
    %v553 = vpop.xlane.xlu0 %552
    %v554 = vrcp.pop %v553
    %v555 = vmul.f32 %v550, %v554
    %556 = vrot.lane.b32.xlu0 %v160, 56
    %v557 = vpop.permute.xlu0 %556
    %v560 = vsel %vm165, %v555, 0
    %562 = vmatpush.msra.mxu0 0.0
    %563 = vmatpush.msra.mxu0 0.0
    %564 = vmatpush.msra.mxu0 0.0
    %565 = vmatpush.msra.mxu0 0.0
    %566 = vmatpush.msra.mxu0 0.0
    %567 = vmatpush.msra.mxu0 0.0
    %568 = vmatpush.msra.mxu0 0.0
    %569 = vmatpush.msra.mxu0 0.0
    %570 = vmatpush.msra.mxu0 0.0
    %571 = vmatpush.msra.mxu0 0.0
    %572 = vmatpush.msra.mxu0 0.0
    %573 = vmatpush.msra.mxu0 0.0
    %574 = vmatpush.msra.mxu0 0.0
    %575 = vmatpush.msra.mxu0 0.0
    %576 = vmatpush.msra.mxu0 0.0
    %577 = vmatpush.msra.mxu0 %v557
    %578 = vmatmul.f32.gmra.mxu0 %v560
    %v579 = vpop.f32.mrf.mxu0
    %v580 = vadd.f32 0.0, %v579
    %581 = vdwg.mxu0
    %582 = vrot.lane.b32.xlu0 %v160, 112
    %v583 = vpop.permute.xlu0 %582
    %584 = vrot.lane.b32.xlu0 %v160, 80
    %v585 = vpop.permute.xlu0 %584
    %v586 = vsel %vm165, %v583, 0
    %v588 = vsel %vm165, %v585, 0
    %590 = vmatpush.xpose.msra.mxu0 0.0
    %591 = vmatpush.xpose.msra.mxu0 0.0
    %592 = vmatpush.xpose.msra.mxu0 0.0
    %593 = vmatpush.xpose.msra.mxu0 0.0
    %594 = vmatpush.xpose.msra.mxu0 0.0
    %595 = vmatpush.xpose.msra.mxu0 0.0
    %596 = vmatpush.xpose.msra.mxu0 0.0
    %597 = vmatpush.xpose.msra.mxu0 0.0
    %598 = vmatpush.xpose.msra.mxu0 0.0
    %599 = vmatpush.xpose.msra.mxu0 0.0
    %600 = vmatpush.xpose.msra.mxu0 0.0
    %601 = vmatpush.xpose.msra.mxu0 0.0
    %602 = vmatpush.xpose.msra.mxu0 0.0
    %603 = vmatpush.xpose.msra.mxu0 0.0
    %604 = vmatpush.xpose.msra.mxu0 0.0
    %605 = vmatpush.xpose.msra.mxu0 %v588
    %606 = vmatmul.f32.gmra.mxu0 %v586
    %v607 = vpop.f32.mrf.mxu0
    %v608 = vadd.f32 0.0, %v607
    %609 = vdwg.mxu0
    %v610 = vmul.f32 %v608, 0.35355338
    %v611 = vadd.f32 %v610, %v476
    %v612 = vsel %vm165, %v611, -inf
    %613 = vmax.xlane.f32.xlu0 %v612
    %v614 = vpop.xlane.xlu0 %613
    %v615 = vsub.f32 %v611, %v614
    %v616 = vmul.f32 %v615, 1.442695
    %v617 = vpow.pop %v616
    %v618 = vsel %vm165, %v617, 0.0
    %619 = vadd.xlane.f32.xlu0 %v618
    %v620 = vpop.xlane.xlu0 %619
    %v621 = vrcp.pop %v620
    %v622 = vmul.f32 %v617, %v621
    %623 = vrot.lane.b32.xlu0 %v160, 48
    %v624 = vpop.permute.xlu0 %623
    %v627 = vsel %vm165, %v622, 0
    %629 = vmatpush.msra.mxu0 0.0
    %630 = vmatpush.msra.mxu0 0.0
    %631 = vmatpush.msra.mxu0 0.0
    %632 = vmatpush.msra.mxu0 0.0
    %633 = vmatpush.msra.mxu0 0.0
    %634 = vmatpush.msra.mxu0 0.0
    %635 = vmatpush.msra.mxu0 0.0
    %636 = vmatpush.msra.mxu0 0.0
    %637 = vmatpush.msra.mxu0 0.0
    %638 = vmatpush.msra.mxu0 0.0
    %639 = vmatpush.msra.mxu0 0.0
    %640 = vmatpush.msra.mxu0 0.0
    %641 = vmatpush.msra.mxu0 0.0
    %642 = vmatpush.msra.mxu0 0.0
    %643 = vmatpush.msra.mxu0 0.0
    %644 = vmatpush.msra.mxu0 %v624
    %645 = vmatmul.f32.gmra.mxu0 %v627
    %v646 = vpop.f32.mrf.mxu0
    %v647 = vadd.f32 0.0, %v646
    %648 = vdwg.mxu0
    %649 = vrot.lane.b32.xlu0 %v160, 104
    %v650 = vpop.permute.xlu0 %649
    %651 = vrot.lane.b32.xlu0 %v160, 72
    %v652 = vpop.permute.xlu0 %651
    %v653 = vsel %vm165, %v650, 0
    %v655 = vsel %vm165, %v652, 0
    %657 = vmatpush.xpose.msra.mxu0 0.0
    %658 = vmatpush.xpose.msra.mxu0 0.0
    %659 = vmatpush.xpose.msra.mxu0 0.0
    %660 = vmatpush.xpose.msra.mxu0 0.0
    %661 = vmatpush.xpose.msra.mxu0 0.0
    %662 = vmatpush.xpose.msra.mxu0 0.0
    %663 = vmatpush.xpose.msra.mxu0 0.0
    %664 = vmatpush.xpose.msra.mxu0 0.0
    %665 = vmatpush.xpose.msra.mxu0 0.0
    %666 = vmatpush.xpose.msra.mxu0 0.0
    %667 = vmatpush.xpose.msra.mxu0 0.0
    %668 = vmatpush.xpose.msra.mxu0 0.0
    %669 = vmatpush.xpose.msra.mxu0 0.0
    %670 = vmatpush.xpose.msra.mxu0 0.0
    %671 = vmatpush.xpose.msra.mxu0 0.0
    %672 = vmatpush.xpose.msra.mxu0 %v655
    %673 = vmatmul.f32.gmra.mxu0 %v653
    %v674 = vpop.f32.mrf.mxu0
    %v675 = vadd.f32 0.0, %v674
    %676 = vdwg.mxu0
    %v677 = vmul.f32 %v675, 0.35355338
    %v678 = vadd.f32 %v677, %v476
    %v679 = vsel %vm165, %v678, -inf
    %680 = vmax.xlane.f32.xlu0 %v679
    %v681 = vpop.xlane.xlu0 %680
    %v682 = vsub.f32 %v678, %v681
    %v683 = vmul.f32 %v682, 1.442695
    %v684 = vpow.pop %v683
    %v685 = vsel %vm165, %v684, 0.0
    %686 = vadd.xlane.f32.xlu0 %v685
    %v687 = vpop.xlane.xlu0 %686
    %v688 = vrcp.pop %v687
    %v689 = vmul.f32 %v684, %v688
    %690 = vrot.lane.b32.xlu0 %v160, 40
    %v691 = vpop.permute.xlu0 %690
    %v694 = vsel %vm165, %v689, 0
    %696 = vmatpush.msra.mxu0 0.0
    %697 = vmatpush.msra.mxu0 0.0
    %698 = vmatpush.msra.mxu0 0.0
    %699 = vmatpush.msra.mxu0 0.0
    %700 = vmatpush.msra.mxu0 0.0
    %701 = vmatpush.msra.mxu0 0.0
    %702 = vmatpush.msra.mxu0 0.0
    %703 = vmatpush.msra.mxu0 0.0
    %704 = vmatpush.msra.mxu0 0.0
    %705 = vmatpush.msra.mxu0 0.0
    %706 = vmatpush.msra.mxu0 0.0
    %707 = vmatpush.msra.mxu0 0.0
    %708 = vmatpush.msra.mxu0 0.0
    %709 = vmatpush.msra.mxu0 0.0
    %710 = vmatpush.msra.mxu0 0.0
    %711 = vmatpush.msra.mxu0 %v691
    %712 = vmatmul.f32.gmra.mxu0 %v694
    %v713 = vpop.f32.mrf.mxu0
    %v714 = vadd.f32 0.0, %v713
    %715 = vdwg.mxu0
    %717 = vrot.lane.b32.xlu0 %v580, 8
    %v718 = vpop.permute.xlu0 %717
    %721 = vrot.lane.b32.xlu0 %v647, 16
    %v722 = vpop.permute.xlu0 %721
    %725 = vrot.lane.b32.xlu0 %v714, 24
    %v726 = vpop.permute.xlu0 %725
    %v728 = vsel %vm165, %v513, %v718
    %v729 = vsel %vm444, %v728, %v722
    %v730 = vsel %vm446, %v729, %v726
    %v731 = vperm.slane %v131, 1
    %v733 = vsel %vm52, %v447, 0
    %v736 = vsel %vm52, %v730, 0
    %738 = vmatpush.msra.mxu0 0.0
    %739 = vmatpush.msra.mxu0 0.0
    %740 = vmatpush.msra.mxu0 0.0
    %741 = vmatpush.msra.mxu0 0.0
    %742 = vmatpush.msra.mxu0 0.0
    %743 = vmatpush.msra.mxu0 0.0
    %744 = vmatpush.msra.mxu0 0.0
    %745 = vmatpush.msra.mxu0 0.0
    %746 = vmatpush.msra.mxu0 0.0
    %747 = vmatpush.msra.mxu0 0.0
    %748 = vmatpush.msra.mxu0 0.0
    %749 = vmatpush.msra.mxu0 0.0
    %750 = vmatpush.msra.mxu0 %v118
    %751 = vmatpush.msra.mxu0 %v117
    %752 = vmatpush.msra.mxu0 %v116
    %753 = vmatpush.msra.mxu0 %v115
    %754 = vmatmul.f32.gmra.mxu0 %v733
    %v755 = vpop.f32.mrf.mxu0
    %v756 = vadd.f32 %v731, %v755
    %757 = vmatmul.f32.gmra.mxu0 %v736
    %v758 = vpop.f32.mrf.mxu0
    %v759 = vadd.f32 %v731, %v758
    %760 = vdwg.mxu0
    %v761 = vadd.f32 %v108, %v756
    %v762 = vadd.f32 %v109, %v759
    %v763 = vsel %vm52, %v761, 0.0
    %764 = vadd.xlane.f32.xlu0 %v763
    %v765 = vpop.xlane.xlu0 %764
    %v766 = vsel %vm52, %v762, 0.0
    %767 = vadd.xlane.f32.xlu0 %v766
    %v768 = vpop.xlane.xlu0 %767
    %v769 = vmul.f32 %v765, %v65
    %v770 = vmul.f32 %v768, %v65
    %v771 = vsub.f32 %v761, %v769
    %v772 = vsub.f32 %v762, %v770
    %v773 = vmul.f32 %v771, %v771
    %v774 = vmul.f32 %v772, %v772
    %v775 = vsel %vm52, %v773, 0.0
    %776 = vadd.xlane.f32.xlu0 %v775
    %v777 = vpop.xlane.xlu0 %776
    %v778 = vsel %vm52, %v774, 0.0
    %779 = vadd.xlane.f32.xlu0 %v778
    %v780 = vpop.xlane.xlu0 %779
    %v781 = vmul.f32 %v777, %v65
    %v782 = vmul.f32 %v780, %v65
    %v783 = vadd.f32 %v781, 1e-12
    %v784 = vadd.f32 %v782, 1e-12
    %v785 = vrsqrt.pop %v783
    %v786 = vmul.f32 %v785, %v783
    %v787 = vmul.f32 %v786, %v785
    %v788 = vmul.f32 0.5, %v787
    %v789 = vsub.f32 1.5, %v788
    %v790 = vmul.f32 %v785, %v789
    %vm791 = vweird.f32 %v783
    %vm792 = vweird.f32 %v785
    %vm793 = vmor %vm791, %vm792
    %v794 = vsel %vm793, %v785, %v790
    %v795 = vrsqrt.pop %v784
    %v796 = vmul.f32 %v795, %v784
    %v797 = vmul.f32 %v796, %v795
    %v798 = vmul.f32 0.5, %v797
    %v799 = vsub.f32 1.5, %v798
    %v800 = vmul.f32 %v795, %v799
    %vm801 = vweird.f32 %v784
    %vm802 = vweird.f32 %v795
    %vm803 = vmor %vm801, %vm802
    %v804 = vsel %vm803, %v795, %v800
    %v805 = vmul.f32 %v771, %v794
    %v806 = vmul.f32 %v772, %v804
    %v807 = vperm.slane %v131, 2
    %v808 = vmul.f32 %v805, %v807
    %v809 = vmul.f32 %v806, %v807
    %v810 = vperm.slane %v131, 3
    %v811 = vadd.f32 %v808, %v810
    %v812 = vadd.f32 %v809, %v810
    %v813 = vperm.slane %v131, 4
    %v815 = vsel %vm52, %v811, 0
    %v818 = vsel %vm52, %v812, 0
    %820 = vmatpush.msra.mxu0 0.0
    %821 = vmatpush.msra.mxu0 0.0
    %822 = vmatpush.msra.mxu0 0.0
    %823 = vmatpush.msra.mxu0 0.0
    %824 = vmatpush.msra.mxu0 0.0
    %825 = vmatpush.msra.mxu0 0.0
    %826 = vmatpush.msra.mxu0 0.0
    %827 = vmatpush.msra.mxu0 0.0
    %828 = vmatpush.msra.mxu0 0.0
    %829 = vmatpush.msra.mxu0 0.0
    %830 = vmatpush.msra.mxu0 0.0
    %831 = vmatpush.msra.mxu0 0.0
    %832 = vmatpush.msra.mxu0 %v122
    %833 = vmatpush.msra.mxu0 %v121
    %834 = vmatpush.msra.mxu0 %v120
    %835 = vmatpush.msra.mxu0 %v119
    %836 = vmatmul.f32.gmra.mxu0 %v815
    %v837 = vpop.f32.mrf.mxu0
    %v838 = vadd.f32 %v813, %v837
    %839 = vmatmul.f32.gmra.mxu0 %v818
    %v840 = vpop.f32.mrf.mxu0
    %v841 = vadd.f32 %v813, %v840
    %842 = vdwg.mxu0
    %v843 = vmul.f32 %v838, %v838
    %v844 = vmul.f32 %v841, %v841
    %v845 = vmul.f32 %v838, %v843
    %v846 = vmul.f32 %v841, %v844
    %v847 = vmul.f32 %v845, 0.044715
    %v848 = vmul.f32 %v846, 0.044715
    %v849 = vadd.f32 %v838, %v847
    %v850 = vadd.f32 %v841, %v848
    %v851 = vmul.f32 %v849, 0.7978846
    %v852 = vmul.f32 %v850, 0.7978846
    %v853 = vtanh.pop %v851
    %v854 = vtanh.pop %v852
    %v855 = vadd.f32 %v853, 1.0
    %v856 = vadd.f32 %v854, 1.0
    %v857 = vmul.f32 %v855, 0.5
    %v858 = vmul.f32 %v856, 0.5
    %v859 = vmul.f32 %v838, %v857
    %v860 = vmul.f32 %v841, %v858
    %v861 = vperm.slane %v131, 5
    %vm862 = vcmask 523264
    %v864 = vsel %vm862, %v859, 0
    %v867 = vsel %vm862, %v860, 0
    %869 = vmatpush.msra.mxu0 0.0
    %870 = vmatpush.msra.mxu0 0.0
    %871 = vmatpush.msra.mxu0 0.0
    %872 = vmatpush.msra.mxu0 0.0
    %873 = vmatpush.msra.mxu0 0.0
    %874 = vmatpush.msra.mxu0 0.0
    %875 = vmatpush.msra.mxu0 0.0
    %876 = vmatpush.msra.mxu0 0.0
    %877 = vmatpush.msra.mxu0 %v130
    %878 = vmatpush.msra.mxu0 %v129
    %879 = vmatpush.msra.mxu0 %v128
    %880 = vmatpush.msra.mxu0 %v127
    %881 = vmatpush.msra.mxu0 %v126
    %882 = vmatpush.msra.mxu0 %v125
    %883 = vmatpush.msra.mxu0 %v124
    %884 = vmatpush.msra.mxu0 %v123
    %885 = vmatmul.f32.gmra.mxu0 %v864
    %v886 = vpop.f32.mrf.mxu0
    %v887 = vadd.f32 %v861, %v886
    %888 = vmatmul.f32.gmra.mxu0 %v867
    %v889 = vpop.f32.mrf.mxu0
    %v890 = vadd.f32 %v861, %v889
    %891 = vdwg.mxu0
    %v892 = vadd.f32 %v811, %v887
    %v893 = vadd.f32 %v812, %v890
    %v894 = vsel %vm52, %v892, 0.0
    %895 = vadd.xlane.f32.xlu0 %v894
    %v896 = vpop.xlane.xlu0 %895
    %v897 = vsel %vm52, %v893, 0.0
    %898 = vadd.xlane.f32.xlu0 %v897
    %v899 = vpop.xlane.xlu0 %898
    %v900 = vmul.f32 %v896, %v65
    %v901 = vmul.f32 %v899, %v65
    %v902 = vsub.f32 %v892, %v900
    %v903 = vsub.f32 %v893, %v901
    %v904 = vmul.f32 %v902, %v902
    %v905 = vmul.f32 %v903, %v903
    %v906 = vsel %vm52, %v904, 0.0
    %907 = vadd.xlane.f32.xlu0 %v906
    %v908 = vpop.xlane.xlu0 %907
    %v909 = vsel %vm52, %v905, 0.0
    %910 = vadd.xlane.f32.xlu0 %v909
    %v911 = vpop.xlane.xlu0 %910
    %v912 = vmul.f32 %v908, %v65
    %v913 = vmul.f32 %v911, %v65
    %v914 = vadd.f32 %v912, 1e-12
    %v915 = vadd.f32 %v913, 1e-12
    %v916 = vrsqrt.pop %v914
    %v917 = vmul.f32 %v916, %v914
    %v918 = vmul.f32 %v917, %v916
    %v919 = vmul.f32 0.5, %v918
    %v920 = vsub.f32 1.5, %v919
    %v921 = vmul.f32 %v916, %v920
    %vm922 = vweird.f32 %v914
    %vm923 = vweird.f32 %v916
    %vm924 = vmor %vm922, %vm923
    %v925 = vsel %vm924, %v916, %v921
    %v926 = vrsqrt.pop %v915
    %v927 = vmul.f32 %v926, %v915
    %v928 = vmul.f32 %v927, %v926
    %v929 = vmul.f32 0.5, %v928
    %v930 = vsub.f32 1.5, %v929
    %v931 = vmul.f32 %v926, %v930
    %vm932 = vweird.f32 %v915
    %vm933 = vweird.f32 %v926
    %vm934 = vmor %vm932, %vm933
    %v935 = vsel %vm934, %v926, %v931
    %v936 = vmul.f32 %v902, %v925
    %v937 = vmul.f32 %v903, %v935
    %v938 = vperm.slane %v131, 6
    %v939 = vmul.f32 %v936, %v938
    %v940 = vmul.f32 %v937, %v938
    %v941 = vperm.slane %v131, 7
    %v942 = vadd.f32 %v939, %v941
    %v943 = vadd.f32 %v940, %v941
    %s944 = scalar_lea.vmem %s3, 32
    %v945 = vld [vmem:[%s944] sm:$0xff]
    %v946 = vld [vmem:[%s944 + $0x8] sm:$0xff]
    %v947 = vld [vmem:[%s944 + $0x10] sm:$0xff]
    %v948 = vld [vmem:[%s944 + $0x18] sm:$0xff]
    %s949 = scalar_lea.vmem %s4, 32
    %v950 = vld [vmem:[%s949] sm:$0xff]
    %v951 = vld [vmem:[%s949 + $0x8] sm:$0xff]
    %v952 = vld [vmem:[%s949 + $0x10] sm:$0xff]
    %v953 = vld [vmem:[%s949 + $0x18] sm:$0xff]
    %s954 = scalar_lea.vmem %s5, 32
    %v955 = vld [vmem:[%s954] sm:$0xff]
    %v956 = vld [vmem:[%s954 + $0x8] sm:$0xff]
    %v957 = vld [vmem:[%s954 + $0x10] sm:$0xff]
    %v958 = vld [vmem:[%s954 + $0x18] sm:$0xff]
    %s959 = scalar_lea.vmem %s6, 64
    %v960 = vld [vmem:[%s959] sm:$0xff]
    %v961 = vld [vmem:[%s959 + $0x8] sm:$0xff]
    %v962 = vld [vmem:[%s959 + $0x10] sm:$0xff]
    %v963 = vld [vmem:[%s959 + $0x18] sm:$0xff]
    %v964 = vld [vmem:[%s959 + $0x20] sm:$0xff]
    %v965 = vld [vmem:[%s959 + $0x28] sm:$0xff]
    %v966 = vld [vmem:[%s959 + $0x30] sm:$0xff]
    %v967 = vld [vmem:[%s959 + $0x38] sm:$0xff]
    %s968 = scalar_lea.vmem %s7, 8
    %v969 = vld [vmem:[%s968] sm:$0xff]
    %v970 = vperm.slane %v969, 0
    %v972 = vsel %vm52, %v942, 0
    %v975 = vsel %vm52, %v943, 0
    %977 = vmatpush.msra.mxu0 0.0
    %978 = vmatpush.msra.mxu0 0.0
    %979 = vmatpush.msra.mxu0 0.0
    %980 = vmatpush.msra.mxu0 0.0
    %981 = vmatpush.msra.mxu0 0.0
    %982 = vmatpush.msra.mxu0 0.0
    %983 = vmatpush.msra.mxu0 0.0
    %984 = vmatpush.msra.mxu0 0.0
    %985 = vmatpush.msra.mxu0 0.0
    %986 = vmatpush.msra.mxu0 0.0
    %987 = vmatpush.msra.mxu0 0.0
    %988 = vmatpush.msra.mxu0 0.0
    %989 = vmatpush.msra.mxu0 %v948
    %990 = vmatpush.msra.mxu0 %v947
    %991 = vmatpush.msra.mxu0 %v946
    %992 = vmatpush.msra.mxu0 %v945
    %993 = vmatmul.f32.gmra.mxu0 %v972
    %v994 = vpop.f32.mrf.mxu0
    %v995 = vadd.f32 %v970, %v994
    %996 = vmatmul.f32.gmra.mxu0 %v975
    %v997 = vpop.f32.mrf.mxu0
    %v998 = vadd.f32 %v970, %v997
    %999 = vdwg.mxu0
    %1001 = vrot.lane.b32.xlu0 %v995, 96
    %v1002 = vpop.permute.xlu0 %1001
    %v1003 = vsel %vm165, %v995, 0
    %v1005 = vsel %vm165, %v1002, 0
    %1007 = vmatpush.xpose.msra.mxu0 0.0
    %1008 = vmatpush.xpose.msra.mxu0 0.0
    %1009 = vmatpush.xpose.msra.mxu0 0.0
    %1010 = vmatpush.xpose.msra.mxu0 0.0
    %1011 = vmatpush.xpose.msra.mxu0 0.0
    %1012 = vmatpush.xpose.msra.mxu0 0.0
    %1013 = vmatpush.xpose.msra.mxu0 0.0
    %1014 = vmatpush.xpose.msra.mxu0 0.0
    %1015 = vmatpush.xpose.msra.mxu0 0.0
    %1016 = vmatpush.xpose.msra.mxu0 0.0
    %1017 = vmatpush.xpose.msra.mxu0 0.0
    %1018 = vmatpush.xpose.msra.mxu0 0.0
    %1019 = vmatpush.xpose.msra.mxu0 0.0
    %1020 = vmatpush.xpose.msra.mxu0 0.0
    %1021 = vmatpush.xpose.msra.mxu0 0.0
    %1022 = vmatpush.xpose.msra.mxu0 %v1005
    %1023 = vmatmul.f32.gmra.mxu0 %v1003
    %v1024 = vpop.f32.mrf.mxu0
    %v1025 = vadd.f32 0.0, %v1024
    %1026 = vdwg.mxu0
    %v1027 = vmul.f32 %v1025, 0.35355338
    %v1028 = vadd.f32 %v1027, %v191
    %v1029 = vsel %vm165, %v1028, -inf
    %1030 = vmax.xlane.f32.xlu0 %v1029
    %v1031 = vpop.xlane.xlu0 %1030
    %v1032 = vsub.f32 %v1028, %v1031
    %v1033 = vmul.f32 %v1032, 1.442695
    %v1034 = vpow.pop %v1033
    %v1035 = vsel %vm165, %v1034, 0.0
    %1036 = vadd.xlane.f32.xlu0 %v1035
    %v1037 = vpop.xlane.xlu0 %1036
    %v1038 = vrcp.pop %v1037
    %v1039 = vmul.f32 %v1034, %v1038
    %1040 = vrot.lane.b32.xlu0 %v995, 64
    %v1041 = vpop.permute.xlu0 %1040
    %v1044 = vsel %vm165, %v1039, 0
    %1046 = vmatpush.msra.mxu0 0.0
    %1047 = vmatpush.msra.mxu0 0.0
    %1048 = vmatpush.msra.mxu0 0.0
    %1049 = vmatpush.msra.mxu0 0.0
    %1050 = vmatpush.msra.mxu0 0.0
    %1051 = vmatpush.msra.mxu0 0.0
    %1052 = vmatpush.msra.mxu0 0.0
    %1053 = vmatpush.msra.mxu0 0.0
    %1054 = vmatpush.msra.mxu0 0.0
    %1055 = vmatpush.msra.mxu0 0.0
    %1056 = vmatpush.msra.mxu0 0.0
    %1057 = vmatpush.msra.mxu0 0.0
    %1058 = vmatpush.msra.mxu0 0.0
    %1059 = vmatpush.msra.mxu0 0.0
    %1060 = vmatpush.msra.mxu0 0.0
    %1061 = vmatpush.msra.mxu0 %v1041
    %1062 = vmatmul.f32.gmra.mxu0 %v1044
    %v1063 = vpop.f32.mrf.mxu0
    %v1064 = vadd.f32 0.0, %v1063
    %1065 = vdwg.mxu0
    %1066 = vrot.lane.b32.xlu0 %v995, 120
    %v1067 = vpop.permute.xlu0 %1066
    %1068 = vrot.lane.b32.xlu0 %v995, 88
    %v1069 = vpop.permute.xlu0 %1068
    %v1070 = vsel %vm165, %v1067, 0
    %v1072 = vsel %vm165, %v1069, 0
    %1074 = vmatpush.xpose.msra.mxu0 0.0
    %1075 = vmatpush.xpose.msra.mxu0 0.0
    %1076 = vmatpush.xpose.msra.mxu0 0.0
    %1077 = vmatpush.xpose.msra.mxu0 0.0
    %1078 = vmatpush.xpose.msra.mxu0 0.0
    %1079 = vmatpush.xpose.msra.mxu0 0.0
    %1080 = vmatpush.xpose.msra.mxu0 0.0
    %1081 = vmatpush.xpose.msra.mxu0 0.0
    %1082 = vmatpush.xpose.msra.mxu0 0.0
    %1083 = vmatpush.xpose.msra.mxu0 0.0
    %1084 = vmatpush.xpose.msra.mxu0 0.0
    %1085 = vmatpush.xpose.msra.mxu0 0.0
    %1086 = vmatpush.xpose.msra.mxu0 0.0
    %1087 = vmatpush.xpose.msra.mxu0 0.0
    %1088 = vmatpush.xpose.msra.mxu0 0.0
    %1089 = vmatpush.xpose.msra.mxu0 %v1072
    %1090 = vmatmul.f32.gmra.mxu0 %v1070
    %v1091 = vpop.f32.mrf.mxu0
    %v1092 = vadd.f32 0.0, %v1091
    %1093 = vdwg.mxu0
    %v1094 = vmul.f32 %v1092, 0.35355338
    %v1095 = vadd.f32 %v1094, %v191
    %v1096 = vsel %vm165, %v1095, -inf
    %1097 = vmax.xlane.f32.xlu0 %v1096
    %v1098 = vpop.xlane.xlu0 %1097
    %v1099 = vsub.f32 %v1095, %v1098
    %v1100 = vmul.f32 %v1099, 1.442695
    %v1101 = vpow.pop %v1100
    %v1102 = vsel %vm165, %v1101, 0.0
    %1103 = vadd.xlane.f32.xlu0 %v1102
    %v1104 = vpop.xlane.xlu0 %1103
    %v1105 = vrcp.pop %v1104
    %v1106 = vmul.f32 %v1101, %v1105
    %1107 = vrot.lane.b32.xlu0 %v995, 56
    %v1108 = vpop.permute.xlu0 %1107
    %v1111 = vsel %vm165, %v1106, 0
    %1113 = vmatpush.msra.mxu0 0.0
    %1114 = vmatpush.msra.mxu0 0.0
    %1115 = vmatpush.msra.mxu0 0.0
    %1116 = vmatpush.msra.mxu0 0.0
    %1117 = vmatpush.msra.mxu0 0.0
    %1118 = vmatpush.msra.mxu0 0.0
    %1119 = vmatpush.msra.mxu0 0.0
    %1120 = vmatpush.msra.mxu0 0.0
    %1121 = vmatpush.msra.mxu0 0.0
    %1122 = vmatpush.msra.mxu0 0.0
    %1123 = vmatpush.msra.mxu0 0.0
    %1124 = vmatpush.msra.mxu0 0.0
    %1125 = vmatpush.msra.mxu0 0.0
    %1126 = vmatpush.msra.mxu0 0.0
    %1127 = vmatpush.msra.mxu0 0.0
    %1128 = vmatpush.msra.mxu0 %v1108
    %1129 = vmatmul.f32.gmra.mxu0 %v1111
    %v1130 = vpop.f32.mrf.mxu0
    %v1131 = vadd.f32 0.0, %v1130
    %1132 = vdwg.mxu0
    %1133 = vrot.lane.b32.xlu0 %v995, 112
    %v1134 = vpop.permute.xlu0 %1133
    %1135 = vrot.lane.b32.xlu0 %v995, 80
    %v1136 = vpop.permute.xlu0 %1135
    %v1137 = vsel %vm165, %v1134, 0
    %v1139 = vsel %vm165, %v1136, 0
    %1141 = vmatpush.xpose.msra.mxu0 0.0
    %1142 = vmatpush.xpose.msra.mxu0 0.0
    %1143 = vmatpush.xpose.msra.mxu0 0.0
    %1144 = vmatpush.xpose.msra.mxu0 0.0
    %1145 = vmatpush.xpose.msra.mxu0 0.0
    %1146 = vmatpush.xpose.msra.mxu0 0.0
    %1147 = vmatpush.xpose.msra.mxu0 0.0
    %1148 = vmatpush.xpose.msra.mxu0 0.0
    %1149 = vmatpush.xpose.msra.mxu0 0.0
    %1150 = vmatpush.xpose.msra.mxu0 0.0
    %1151 = vmatpush.xpose.msra.mxu0 0.0
    %1152 = vmatpush.xpose.msra.mxu0 0.0
    %1153 = vmatpush.xpose.msra.mxu0 0.0
    %1154 = vmatpush.xpose.msra.mxu0 0.0
    %1155 = vmatpush.xpose.msra.mxu0 0.0
    %1156 = vmatpush.xpose.msra.mxu0 %v1139
    %1157 = vmatmul.f32.gmra.mxu0 %v1137
    %v1158 = vpop.f32.mrf.mxu0
    %v1159 = vadd.f32 0.0, %v1158
    %1160 = vdwg.mxu0
    %v1161 = vmul.f32 %v1159, 0.35355338
    %v1162 = vadd.f32 %v1161, %v191
    %v1163 = vsel %vm165, %v1162, -inf
    %1164 = vmax.xlane.f32.xlu0 %v1163
    %v1165 = vpop.xlane.xlu0 %1164
    %v1166 = vsub.f32 %v1162, %v1165
    %v1167 = vmul.f32 %v1166, 1.442695
    %v1168 = vpow.pop %v1167
    %v1169 = vsel %vm165, %v1168, 0.0
    %1170 = vadd.xlane.f32.xlu0 %v1169
    %v1171 = vpop.xlane.xlu0 %1170
    %v1172 = vrcp.pop %v1171
    %v1173 = vmul.f32 %v1168, %v1172
    %1174 = vrot.lane.b32.xlu0 %v995, 48
    %v1175 = vpop.permute.xlu0 %1174
    %v1178 = vsel %vm165, %v1173, 0
    %1180 = vmatpush.msra.mxu0 0.0
    %1181 = vmatpush.msra.mxu0 0.0
    %1182 = vmatpush.msra.mxu0 0.0
    %1183 = vmatpush.msra.mxu0 0.0
    %1184 = vmatpush.msra.mxu0 0.0
    %1185 = vmatpush.msra.mxu0 0.0
    %1186 = vmatpush.msra.mxu0 0.0
    %1187 = vmatpush.msra.mxu0 0.0
    %1188 = vmatpush.msra.mxu0 0.0
    %1189 = vmatpush.msra.mxu0 0.0
    %1190 = vmatpush.msra.mxu0 0.0
    %1191 = vmatpush.msra.mxu0 0.0
    %1192 = vmatpush.msra.mxu0 0.0
    %1193 = vmatpush.msra.mxu0 0.0
    %1194 = vmatpush.msra.mxu0 0.0
    %1195 = vmatpush.msra.mxu0 %v1175
    %1196 = vmatmul.f32.gmra.mxu0 %v1178
    %v1197 = vpop.f32.mrf.mxu0
    %v1198 = vadd.f32 0.0, %v1197
    %1199 = vdwg.mxu0
    %1200 = vrot.lane.b32.xlu0 %v995, 104
    %v1201 = vpop.permute.xlu0 %1200
    %1202 = vrot.lane.b32.xlu0 %v995, 72
    %v1203 = vpop.permute.xlu0 %1202
    %v1204 = vsel %vm165, %v1201, 0
    %v1206 = vsel %vm165, %v1203, 0
    %1208 = vmatpush.xpose.msra.mxu0 0.0
    %1209 = vmatpush.xpose.msra.mxu0 0.0
    %1210 = vmatpush.xpose.msra.mxu0 0.0
    %1211 = vmatpush.xpose.msra.mxu0 0.0
    %1212 = vmatpush.xpose.msra.mxu0 0.0
    %1213 = vmatpush.xpose.msra.mxu0 0.0
    %1214 = vmatpush.xpose.msra.mxu0 0.0
    %1215 = vmatpush.xpose.msra.mxu0 0.0
    %1216 = vmatpush.xpose.msra.mxu0 0.0
    %1217 = vmatpush.xpose.msra.mxu0 0.0
    %1218 = vmatpush.xpose.msra.mxu0 0.0
    %1219 = vmatpush.xpose.msra.mxu0 0.0
    %1220 = vmatpush.xpose.msra.mxu0 0.0
    %1221 = vmatpush.xpose.msra.mxu0 0.0
    %1222 = vmatpush.xpose.msra.mxu0 0.0
    %1223 = vmatpush.xpose.msra.mxu0 %v1206
    %1224 = vmatmul.f32.gmra.mxu0 %v1204
    %v1225 = vpop.f32.mrf.mxu0
    %v1226 = vadd.f32 0.0, %v1225
    %1227 = vdwg.mxu0
    %v1228 = vmul.f32 %v1226, 0.35355338
    %v1229 = vadd.f32 %v1228, %v191
    %v1230 = vsel %vm165, %v1229, -inf
    %1231 = vmax.xlane.f32.xlu0 %v1230
    %v1232 = vpop.xlane.xlu0 %1231
    %v1233 = vsub.f32 %v1229, %v1232
    %v1234 = vmul.f32 %v1233, 1.442695
    %v1235 = vpow.pop %v1234
    %v1236 = vsel %vm165, %v1235, 0.0
    %1237 = vadd.xlane.f32.xlu0 %v1236
    %v1238 = vpop.xlane.xlu0 %1237
    %v1239 = vrcp.pop %v1238
    %v1240 = vmul.f32 %v1235, %v1239
    %1241 = vrot.lane.b32.xlu0 %v995, 40
    %v1242 = vpop.permute.xlu0 %1241
    %v1245 = vsel %vm165, %v1240, 0
    %1247 = vmatpush.msra.mxu0 0.0
    %1248 = vmatpush.msra.mxu0 0.0
    %1249 = vmatpush.msra.mxu0 0.0
    %1250 = vmatpush.msra.mxu0 0.0
    %1251 = vmatpush.msra.mxu0 0.0
    %1252 = vmatpush.msra.mxu0 0.0
    %1253 = vmatpush.msra.mxu0 0.0
    %1254 = vmatpush.msra.mxu0 0.0
    %1255 = vmatpush.msra.mxu0 0.0
    %1256 = vmatpush.msra.mxu0 0.0
    %1257 = vmatpush.msra.mxu0 0.0
    %1258 = vmatpush.msra.mxu0 0.0
    %1259 = vmatpush.msra.mxu0 0.0
    %1260 = vmatpush.msra.mxu0 0.0
    %1261 = vmatpush.msra.mxu0 0.0
    %1262 = vmatpush.msra.mxu0 %v1242
    %1263 = vmatmul.f32.gmra.mxu0 %v1245
    %v1264 = vpop.f32.mrf.mxu0
    %v1265 = vadd.f32 0.0, %v1264
    %1266 = vdwg.mxu0
    %1268 = vrot.lane.b32.xlu0 %v1131, 8
    %v1269 = vpop.permute.xlu0 %1268
    %1272 = vrot.lane.b32.xlu0 %v1198, 16
    %v1273 = vpop.permute.xlu0 %1272
    %1276 = vrot.lane.b32.xlu0 %v1265, 24
    %v1277 = vpop.permute.xlu0 %1276
    %v1279 = vsel %vm165, %v1064, %v1269
    %v1280 = vsel %vm444, %v1279, %v1273
    %v1281 = vsel %vm446, %v1280, %v1277
    %1283 = vrot.lane.b32.xlu0 %v998, 96
    %v1284 = vpop.permute.xlu0 %1283
    %v1285 = vsel %vm165, %v998, 0
    %v1287 = vsel %vm165, %v1284, 0
    %1289 = vmatpush.xpose.msra.mxu0 0.0
    %1290 = vmatpush.xpose.msra.mxu0 0.0
    %1291 = vmatpush.xpose.msra.mxu0 0.0
    %1292 = vmatpush.xpose.msra.mxu0 0.0
    %1293 = vmatpush.xpose.msra.mxu0 0.0
    %1294 = vmatpush.xpose.msra.mxu0 0.0
    %1295 = vmatpush.xpose.msra.mxu0 0.0
    %1296 = vmatpush.xpose.msra.mxu0 0.0
    %1297 = vmatpush.xpose.msra.mxu0 0.0
    %1298 = vmatpush.xpose.msra.mxu0 0.0
    %1299 = vmatpush.xpose.msra.mxu0 0.0
    %1300 = vmatpush.xpose.msra.mxu0 0.0
    %1301 = vmatpush.xpose.msra.mxu0 0.0
    %1302 = vmatpush.xpose.msra.mxu0 0.0
    %1303 = vmatpush.xpose.msra.mxu0 0.0
    %1304 = vmatpush.xpose.msra.mxu0 %v1287
    %1305 = vmatmul.f32.gmra.mxu0 %v1285
    %v1306 = vpop.f32.mrf.mxu0
    %v1307 = vadd.f32 0.0, %v1306
    %1308 = vdwg.mxu0
    %v1309 = vmul.f32 %v1307, 0.35355338
    %v1310 = vadd.f32 %v1309, %v476
    %v1311 = vsel %vm165, %v1310, -inf
    %1312 = vmax.xlane.f32.xlu0 %v1311
    %v1313 = vpop.xlane.xlu0 %1312
    %v1314 = vsub.f32 %v1310, %v1313
    %v1315 = vmul.f32 %v1314, 1.442695
    %v1316 = vpow.pop %v1315
    %v1317 = vsel %vm165, %v1316, 0.0
    %1318 = vadd.xlane.f32.xlu0 %v1317
    %v1319 = vpop.xlane.xlu0 %1318
    %v1320 = vrcp.pop %v1319
    %v1321 = vmul.f32 %v1316, %v1320
    %1322 = vrot.lane.b32.xlu0 %v998, 64
    %v1323 = vpop.permute.xlu0 %1322
    %v1326 = vsel %vm165, %v1321, 0
    %1328 = vmatpush.msra.mxu0 0.0
    %1329 = vmatpush.msra.mxu0 0.0
    %1330 = vmatpush.msra.mxu0 0.0
    %1331 = vmatpush.msra.mxu0 0.0
    %1332 = vmatpush.msra.mxu0 0.0
    %1333 = vmatpush.msra.mxu0 0.0
    %1334 = vmatpush.msra.mxu0 0.0
    %1335 = vmatpush.msra.mxu0 0.0
    %1336 = vmatpush.msra.mxu0 0.0
    %1337 = vmatpush.msra.mxu0 0.0
    %1338 = vmatpush.msra.mxu0 0.0
    %1339 = vmatpush.msra.mxu0 0.0
    %1340 = vmatpush.msra.mxu0 0.0
    %1341 = vmatpush.msra.mxu0 0.0
    %1342 = vmatpush.msra.mxu0 0.0
    %1343 = vmatpush.msra.mxu0 %v1323
    %1344 = vmatmul.f32.gmra.mxu0 %v1326
    %v1345 = vpop.f32.mrf.mxu0
    %v1346 = vadd.f32 0.0, %v1345
    %1347 = vdwg.mxu0
    %1348 = vrot.lane.b32.xlu0 %v998, 120
    %v1349 = vpop.permute.xlu0 %1348
    %1350 = vrot.lane.b32.xlu0 %v998, 88
    %v1351 = vpop.permute.xlu0 %1350
    %v1352 = vsel %vm165, %v1349, 0
    %v1354 = vsel %vm165, %v1351, 0
    %1356 = vmatpush.xpose.msra.mxu0 0.0
    %1357 = vmatpush.xpose.msra.mxu0 0.0
    %1358 = vmatpush.xpose.msra.mxu0 0.0
    %1359 = vmatpush.xpose.msra.mxu0 0.0
    %1360 = vmatpush.xpose.msra.mxu0 0.0
    %1361 = vmatpush.xpose.msra.mxu0 0.0
    %1362 = vmatpush.xpose.msra.mxu0 0.0
    %1363 = vmatpush.xpose.msra.mxu0 0.0
    %1364 = vmatpush.xpose.msra.mxu0 0.0
    %1365 = vmatpush.xpose.msra.mxu0 0.0
    %1366 = vmatpush.xpose.msra.mxu0 0.0
    %1367 = vmatpush.xpose.msra.mxu0 0.0
    %1368 = vmatpush.xpose.msra.mxu0 0.0
    %1369 = vmatpush.xpose.msra.mxu0 0.0
    %1370 = vmatpush.xpose.msra.mxu0 0.0
    %1371 = vmatpush.xpose.msra.mxu0 %v1354
    %1372 = vmatmul.f32.gmra.mxu0 %v1352
    %v1373 = vpop.f32.mrf.mxu0
    %v1374 = vadd.f32 0.0, %v1373
    %1375 = vdwg.mxu0
    %v1376 = vmul.f32 %v1374, 0.35355338
    %v1377 = vadd.f32 %v1376, %v476
    %v1378 = vsel %vm165, %v1377, -inf
    %1379 = vmax.xlane.f32.xlu0 %v1378
    %v1380 = vpop.xlane.xlu0 %1379
    %v1381 = vsub.f32 %v1377, %v1380
    %v1382 = vmul.f32 %v1381, 1.442695
    %v1383 = vpow.pop %v1382
    %v1384 = vsel %vm165, %v1383, 0.0
    %1385 = vadd.xlane.f32.xlu0 %v1384
    %v1386 = vpop.xlane.xlu0 %1385
    %v1387 = vrcp.pop %v1386
    %v1388 = vmul.f32 %v1383, %v1387
    %1389 = vrot.lane.b32.xlu0 %v998, 56
    %v1390 = vpop.permute.xlu0 %1389
    %v1393 = vsel %vm165, %v1388, 0
    %1395 = vmatpush.msra.mxu0 0.0
    %1396 = vmatpush.msra.mxu0 0.0
    %1397 = vmatpush.msra.mxu0 0.0
    %1398 = vmatpush.msra.mxu0 0.0
    %1399 = vmatpush.msra.mxu0 0.0
    %1400 = vmatpush.msra.mxu0 0.0
    %1401 = vmatpush.msra.mxu0 0.0
    %1402 = vmatpush.msra.mxu0 0.0
    %1403 = vmatpush.msra.mxu0 0.0
    %1404 = vmatpush.msra.mxu0 0.0
    %1405 = vmatpush.msra.mxu0 0.0
    %1406 = vmatpush.msra.mxu0 0.0
    %1407 = vmatpush.msra.mxu0 0.0
    %1408 = vmatpush.msra.mxu0 0.0
    %1409 = vmatpush.msra.mxu0 0.0
    %1410 = vmatpush.msra.mxu0 %v1390
    %1411 = vmatmul.f32.gmra.mxu0 %v1393
    %v1412 = vpop.f32.mrf.mxu0
    %v1413 = vadd.f32 0.0, %v1412
    %1414 = vdwg.mxu0
    %1415 = vrot.lane.b32.xlu0 %v998, 112
    %v1416 = vpop.permute.xlu0 %1415
    %1417 = vrot.lane.b32.xlu0 %v998, 80
    %v1418 = vpop.permute.xlu0 %1417
    %v1419 = vsel %vm165, %v1416, 0
    %v1421 = vsel %vm165, %v1418, 0
    %1423 = vmatpush.xpose.msra.mxu0 0.0
    %1424 = vmatpush.xpose.msra.mxu0 0.0
    %1425 = vmatpush.xpose.msra.mxu0 0.0
    %1426 = vmatpush.xpose.msra.mxu0 0.0
    %1427 = vmatpush.xpose.msra.mxu0 0.0
    %1428 = vmatpush.xpose.msra.mxu0 0.0
    %1429 = vmatpush.xpose.msra.mxu0 0.0
    %1430 = vmatpush.xpose.msra.mxu0 0.0
    %1431 = vmatpush.xpose.msra.mxu0 0.0
    %1432 = vmatpush.xpose.msra.mxu0 0.0
    %1433 = vmatpush.xpose.msra.mxu0 0.0
    %1434 = vmatpush.xpose.msra.mxu0 0.0
    %1435 = vmatpush.xpose.msra.mxu0 0.0
    %1436 = vmatpush.xpose.msra.mxu0 0.0
    %1437 = vmatpush.xpose.msra.mxu0 0.0
    %1438 = vmatpush.xpose.msra.mxu0 %v1421
    %1439 = vmatmul.f32.gmra.mxu0 %v1419
    %v1440 = vpop.f32.mrf.mxu0
    %v1441 = vadd.f32 0.0, %v1440
    %1442 = vdwg.mxu0
    %v1443 = vmul.f32 %v1441, 0.35355338
    %v1444 = vadd.f32 %v1443, %v476
    %v1445 = vsel %vm165, %v1444, -inf
    %1446 = vmax.xlane.f32.xlu0 %v1445
    %v1447 = vpop.xlane.xlu0 %1446
    %v1448 = vsub.f32 %v1444, %v1447
    %v1449 = vmul.f32 %v1448, 1.442695
    %v1450 = vpow.pop %v1449
    %v1451 = vsel %vm165, %v1450, 0.0
    %1452 = vadd.xlane.f32.xlu0 %v1451
    %v1453 = vpop.xlane.xlu0 %1452
    %v1454 = vrcp.pop %v1453
    %v1455 = vmul.f32 %v1450, %v1454
    %1456 = vrot.lane.b32.xlu0 %v998, 48
    %v1457 = vpop.permute.xlu0 %1456
    %v1460 = vsel %vm165, %v1455, 0
    %1462 = vmatpush.msra.mxu0 0.0
    %1463 = vmatpush.msra.mxu0 0.0
    %1464 = vmatpush.msra.mxu0 0.0
    %1465 = vmatpush.msra.mxu0 0.0
    %1466 = vmatpush.msra.mxu0 0.0
    %1467 = vmatpush.msra.mxu0 0.0
    %1468 = vmatpush.msra.mxu0 0.0
    %1469 = vmatpush.msra.mxu0 0.0
    %1470 = vmatpush.msra.mxu0 0.0
    %1471 = vmatpush.msra.mxu0 0.0
    %1472 = vmatpush.msra.mxu0 0.0
    %1473 = vmatpush.msra.mxu0 0.0
    %1474 = vmatpush.msra.mxu0 0.0
    %1475 = vmatpush.msra.mxu0 0.0
    %1476 = vmatpush.msra.mxu0 0.0
    %1477 = vmatpush.msra.mxu0 %v1457
    %1478 = vmatmul.f32.gmra.mxu0 %v1460
    %v1479 = vpop.f32.mrf.mxu0
    %v1480 = vadd.f32 0.0, %v1479
    %1481 = vdwg.mxu0
    %1482 = vrot.lane.b32.xlu0 %v998, 104
    %v1483 = vpop.permute.xlu0 %1482
    %1484 = vrot.lane.b32.xlu0 %v998, 72
    %v1485 = vpop.permute.xlu0 %1484
    %v1486 = vsel %vm165, %v1483, 0
    %v1488 = vsel %vm165, %v1485, 0
    %1490 = vmatpush.xpose.msra.mxu0 0.0
    %1491 = vmatpush.xpose.msra.mxu0 0.0
    %1492 = vmatpush.xpose.msra.mxu0 0.0
    %1493 = vmatpush.xpose.msra.mxu0 0.0
    %1494 = vmatpush.xpose.msra.mxu0 0.0
    %1495 = vmatpush.xpose.msra.mxu0 0.0
    %1496 = vmatpush.xpose.msra.mxu0 0.0
    %1497 = vmatpush.xpose.msra.mxu0 0.0
    %1498 = vmatpush.xpose.msra.mxu0 0.0
    %1499 = vmatpush.xpose.msra.mxu0 0.0
    %1500 = vmatpush.xpose.msra.mxu0 0.0
    %1501 = vmatpush.xpose.msra.mxu0 0.0
    %1502 = vmatpush.xpose.msra.mxu0 0.0
    %1503 = vmatpush.xpose.msra.mxu0 0.0
    %1504 = vmatpush.xpose.msra.mxu0 0.0
    %1505 = vmatpush.xpose.msra.mxu0 %v1488
    %1506 = vmatmul.f32.gmra.mxu0 %v1486
    %v1507 = vpop.f32.mrf.mxu0
    %v1508 = vadd.f32 0.0, %v1507
    %1509 = vdwg.mxu0
    %v1510 = vmul.f32 %v1508, 0.35355338
    %v1511 = vadd.f32 %v1510, %v476
    %v1512 = vsel %vm165, %v1511, -inf
    %1513 = vmax.xlane.f32.xlu0 %v1512
    %v1514 = vpop.xlane.xlu0 %1513
    %v1515 = vsub.f32 %v1511, %v1514
    %v1516 = vmul.f32 %v1515, 1.442695
    %v1517 = vpow.pop %v1516
    %v1518 = vsel %vm165, %v1517, 0.0
    %1519 = vadd.xlane.f32.xlu0 %v1518
    %v1520 = vpop.xlane.xlu0 %1519
    %v1521 = vrcp.pop %v1520
    %v1522 = vmul.f32 %v1517, %v1521
    %1523 = vrot.lane.b32.xlu0 %v998, 40
    %v1524 = vpop.permute.xlu0 %1523
    %v1527 = vsel %vm165, %v1522, 0
    %1529 = vmatpush.msra.mxu0 0.0
    %1530 = vmatpush.msra.mxu0 0.0
    %1531 = vmatpush.msra.mxu0 0.0
    %1532 = vmatpush.msra.mxu0 0.0
    %1533 = vmatpush.msra.mxu0 0.0
    %1534 = vmatpush.msra.mxu0 0.0
    %1535 = vmatpush.msra.mxu0 0.0
    %1536 = vmatpush.msra.mxu0 0.0
    %1537 = vmatpush.msra.mxu0 0.0
    %1538 = vmatpush.msra.mxu0 0.0
    %1539 = vmatpush.msra.mxu0 0.0
    %1540 = vmatpush.msra.mxu0 0.0
    %1541 = vmatpush.msra.mxu0 0.0
    %1542 = vmatpush.msra.mxu0 0.0
    %1543 = vmatpush.msra.mxu0 0.0
    %1544 = vmatpush.msra.mxu0 %v1524
    %1545 = vmatmul.f32.gmra.mxu0 %v1527
    %v1546 = vpop.f32.mrf.mxu0
    %v1547 = vadd.f32 0.0, %v1546
    %1548 = vdwg.mxu0
    %1550 = vrot.lane.b32.xlu0 %v1413, 8
    %v1551 = vpop.permute.xlu0 %1550
    %1554 = vrot.lane.b32.xlu0 %v1480, 16
    %v1555 = vpop.permute.xlu0 %1554
    %1558 = vrot.lane.b32.xlu0 %v1547, 24
    %v1559 = vpop.permute.xlu0 %1558
    %v1561 = vsel %vm165, %v1346, %v1551
    %v1562 = vsel %vm444, %v1561, %v1555
    %v1563 = vsel %vm446, %v1562, %v1559
    %v1564 = vperm.slane %v969, 1
    %v1566 = vsel %vm52, %v1281, 0
    %v1569 = vsel %vm52, %v1563, 0
    %1571 = vmatpush.msra.mxu0 0.0
    %1572 = vmatpush.msra.mxu0 0.0
    %1573 = vmatpush.msra.mxu0 0.0
    %1574 = vmatpush.msra.mxu0 0.0
    %1575 = vmatpush.msra.mxu0 0.0
    %1576 = vmatpush.msra.mxu0 0.0
    %1577 = vmatpush.msra.mxu0 0.0
    %1578 = vmatpush.msra.mxu0 0.0
    %1579 = vmatpush.msra.mxu0 0.0
    %1580 = vmatpush.msra.mxu0 0.0
    %1581 = vmatpush.msra.mxu0 0.0
    %1582 = vmatpush.msra.mxu0 0.0
    %1583 = vmatpush.msra.mxu0 %v953
    %1584 = vmatpush.msra.mxu0 %v952
    %1585 = vmatpush.msra.mxu0 %v951
    %1586 = vmatpush.msra.mxu0 %v950
    %1587 = vmatmul.f32.gmra.mxu0 %v1566
    %v1588 = vpop.f32.mrf.mxu0
    %v1589 = vadd.f32 %v1564, %v1588
    %1590 = vmatmul.f32.gmra.mxu0 %v1569
    %v1591 = vpop.f32.mrf.mxu0
    %v1592 = vadd.f32 %v1564, %v1591
    %1593 = vdwg.mxu0
    %v1594 = vadd.f32 %v942, %v1589
    %v1595 = vadd.f32 %v943, %v1592
    %v1596 = vsel %vm52, %v1594, 0.0
    %1597 = vadd.xlane.f32.xlu0 %v1596
    %v1598 = vpop.xlane.xlu0 %1597
    %v1599 = vsel %vm52, %v1595, 0.0
    %1600 = vadd.xlane.f32.xlu0 %v1599
    %v1601 = vpop.xlane.xlu0 %1600
    %v1602 = vmul.f32 %v1598, %v65
    %v1603 = vmul.f32 %v1601, %v65
    %v1604 = vsub.f32 %v1594, %v1602
    %v1605 = vsub.f32 %v1595, %v1603
    %v1606 = vmul.f32 %v1604, %v1604
    %v1607 = vmul.f32 %v1605, %v1605
    %v1608 = vsel %vm52, %v1606, 0.0
    %1609 = vadd.xlane.f32.xlu0 %v1608
    %v1610 = vpop.xlane.xlu0 %1609
    %v1611 = vsel %vm52, %v1607, 0.0
    %1612 = vadd.xlane.f32.xlu0 %v1611
    %v1613 = vpop.xlane.xlu0 %1612
    %v1614 = vmul.f32 %v1610, %v65
    %v1615 = vmul.f32 %v1613, %v65
    %v1616 = vadd.f32 %v1614, 1e-12
    %v1617 = vadd.f32 %v1615, 1e-12
    %v1618 = vrsqrt.pop %v1616
    %v1619 = vmul.f32 %v1618, %v1616
    %v1620 = vmul.f32 %v1619, %v1618
    %v1621 = vmul.f32 0.5, %v1620
    %v1622 = vsub.f32 1.5, %v1621
    %v1623 = vmul.f32 %v1618, %v1622
    %vm1624 = vweird.f32 %v1616
    %vm1625 = vweird.f32 %v1618
    %vm1626 = vmor %vm1624, %vm1625
    %v1627 = vsel %vm1626, %v1618, %v1623
    %v1628 = vrsqrt.pop %v1617
    %v1629 = vmul.f32 %v1628, %v1617
    %v1630 = vmul.f32 %v1629, %v1628
    %v1631 = vmul.f32 0.5, %v1630
    %v1632 = vsub.f32 1.5, %v1631
    %v1633 = vmul.f32 %v1628, %v1632
    %vm1634 = vweird.f32 %v1617
    %vm1635 = vweird.f32 %v1628
    %vm1636 = vmor %vm1634, %vm1635
    %v1637 = vsel %vm1636, %v1628, %v1633
    %v1638 = vmul.f32 %v1604, %v1627
    %v1639 = vmul.f32 %v1605, %v1637
    %v1640 = vperm.slane %v969, 2
    %v1641 = vmul.f32 %v1638, %v1640
    %v1642 = vmul.f32 %v1639, %v1640
    %v1643 = vperm.slane %v969, 3
    %v1644 = vadd.f32 %v1641, %v1643
    %v1645 = vadd.f32 %v1642, %v1643
    %v1646 = vperm.slane %v969, 4
    %v1648 = vsel %vm52, %v1644, 0
    %v1651 = vsel %vm52, %v1645, 0
    %1653 = vmatpush.msra.mxu0 0.0
    %1654 = vmatpush.msra.mxu0 0.0
    %1655 = vmatpush.msra.mxu0 0.0
    %1656 = vmatpush.msra.mxu0 0.0
    %1657 = vmatpush.msra.mxu0 0.0
    %1658 = vmatpush.msra.mxu0 0.0
    %1659 = vmatpush.msra.mxu0 0.0
    %1660 = vmatpush.msra.mxu0 0.0
    %1661 = vmatpush.msra.mxu0 0.0
    %1662 = vmatpush.msra.mxu0 0.0
    %1663 = vmatpush.msra.mxu0 0.0
    %1664 = vmatpush.msra.mxu0 0.0
    %1665 = vmatpush.msra.mxu0 %v958
    %1666 = vmatpush.msra.mxu0 %v957
    %1667 = vmatpush.msra.mxu0 %v956
    %1668 = vmatpush.msra.mxu0 %v955
    %1669 = vmatmul.f32.gmra.mxu0 %v1648
    %v1670 = vpop.f32.mrf.mxu0
    %v1671 = vadd.f32 %v1646, %v1670
    %1672 = vmatmul.f32.gmra.mxu0 %v1651
    %v1673 = vpop.f32.mrf.mxu0
    %v1674 = vadd.f32 %v1646, %v1673
    %1675 = vdwg.mxu0
    %v1676 = vmul.f32 %v1671, %v1671
    %v1677 = vmul.f32 %v1674, %v1674
    %v1678 = vmul.f32 %v1671, %v1676
    %v1679 = vmul.f32 %v1674, %v1677
    %v1680 = vmul.f32 %v1678, 0.044715
    %v1681 = vmul.f32 %v1679, 0.044715
    %v1682 = vadd.f32 %v1671, %v1680
    %v1683 = vadd.f32 %v1674, %v1681
    %v1684 = vmul.f32 %v1682, 0.7978846
    %v1685 = vmul.f32 %v1683, 0.7978846
    %v1686 = vtanh.pop %v1684
    %v1687 = vtanh.pop %v1685
    %v1688 = vadd.f32 %v1686, 1.0
    %v1689 = vadd.f32 %v1687, 1.0
    %v1690 = vmul.f32 %v1688, 0.5
    %v1691 = vmul.f32 %v1689, 0.5
    %v1692 = vmul.f32 %v1671, %v1690
    %v1693 = vmul.f32 %v1674, %v1691
    %v1694 = vperm.slane %v969, 5
    %v1696 = vsel %vm862, %v1692, 0
    %v1699 = vsel %vm862, %v1693, 0
    %1701 = vmatpush.msra.mxu0 0.0
    %1702 = vmatpush.msra.mxu0 0.0
    %1703 = vmatpush.msra.mxu0 0.0
    %1704 = vmatpush.msra.mxu0 0.0
    %1705 = vmatpush.msra.mxu0 0.0
    %1706 = vmatpush.msra.mxu0 0.0
    %1707 = vmatpush.msra.mxu0 0.0
    %1708 = vmatpush.msra.mxu0 0.0
    %1709 = vmatpush.msra.mxu0 %v967
    %1710 = vmatpush.msra.mxu0 %v966
    %1711 = vmatpush.msra.mxu0 %v965
    %1712 = vmatpush.msra.mxu0 %v964
    %1713 = vmatpush.msra.mxu0 %v963
    %1714 = vmatpush.msra.mxu0 %v962
    %1715 = vmatpush.msra.mxu0 %v961
    %1716 = vmatpush.msra.mxu0 %v960
    %1717 = vmatmul.f32.gmra.mxu0 %v1696
    %v1718 = vpop.f32.mrf.mxu0
    %v1719 = vadd.f32 %v1694, %v1718
    %1720 = vmatmul.f32.gmra.mxu0 %v1699
    %v1721 = vpop.f32.mrf.mxu0
    %v1722 = vadd.f32 %v1694, %v1721
    %1723 = vdwg.mxu0
    %v1724 = vadd.f32 %v1644, %v1719
    %v1725 = vadd.f32 %v1645, %v1722
    %v1726 = vsel %vm52, %v1724, 0.0
    %1727 = vadd.xlane.f32.xlu0 %v1726
    %v1728 = vpop.xlane.xlu0 %1727
    %v1729 = vsel %vm52, %v1725, 0.0
    %1730 = vadd.xlane.f32.xlu0 %v1729
    %v1731 = vpop.xlane.xlu0 %1730
    %v1732 = vmul.f32 %v1728, %v65
    %v1733 = vmul.f32 %v1731, %v65
    %v1734 = vsub.f32 %v1724, %v1732
    %v1735 = vsub.f32 %v1725, %v1733
    %v1736 = vmul.f32 %v1734, %v1734
    %v1737 = vmul.f32 %v1735, %v1735
    %v1738 = vsel %vm52, %v1736, 0.0
    %1739 = vadd.xlane.f32.xlu0 %v1738
    %v1740 = vpop.xlane.xlu0 %1739
    %v1741 = vsel %vm52, %v1737, 0.0
    %1742 = vadd.xlane.f32.xlu0 %v1741
    %v1743 = vpop.xlane.xlu0 %1742
    %v1744 = vmul.f32 %v1740, %v65
    %v1745 = vmul.f32 %v1743, %v65
    %v1746 = vadd.f32 %v1744, 1e-12
    %v1747 = vadd.f32 %v1745, 1e-12
    %v1748 = vrsqrt.pop %v1746
    %v1749 = vmul.f32 %v1748, %v1746
    %v1750 = vmul.f32 %v1749, %v1748
    %v1751 = vmul.f32 0.5, %v1750
    %v1752 = vsub.f32 1.5, %v1751
    %v1753 = vmul.f32 %v1748, %v1752
    %vm1754 = vweird.f32 %v1746
    %vm1755 = vweird.f32 %v1748
    %vm1756 = vmor %vm1754, %vm1755
    %v1757 = vsel %vm1756, %v1748, %v1753
    %v1758 = vrsqrt.pop %v1747
    %v1759 = vmul.f32 %v1758, %v1747
    %v1760 = vmul.f32 %v1759, %v1758
    %v1761 = vmul.f32 0.5, %v1760
    %v1762 = vsub.f32 1.5, %v1761
    %v1763 = vmul.f32 %v1758, %v1762
    %vm1764 = vweird.f32 %v1747
    %vm1765 = vweird.f32 %v1758
    %vm1766 = vmor %vm1764, %vm1765
    %v1767 = vsel %vm1766, %v1758, %v1763
    %v1768 = vmul.f32 %v1734, %v1757
    %v1769 = vmul.f32 %v1735, %v1767
    %v1770 = vperm.slane %v969, 6
    %v1771 = vmul.f32 %v1768, %v1770
    %v1772 = vmul.f32 %v1769, %v1770
    %v1773 = vperm.slane %v969, 7
    %v1774 = vadd.f32 %v1771, %v1773
    %v1775 = vadd.f32 %v1772, %v1773
    %v1776 = vld [vmem:[%s13] sm:$0x7]
    %v1778 = vrot.slane %v1775, 7
    %v1781 = vrot.slane %v1774, 7
    %v1783 = vrot.slane %v1775, 6
    %v1785 = vrot.slane %v1774, 6
    %v1787 = vrot.slane %v1775, 5
    %v1789 = vrot.slane %v1774, 5
    %v1791 = vrot.slane %v1775, 4
    %v1793 = vrot.slane %v1774, 4
    %v1795 = vrot.slane %v1775, 3
    %v1797 = vrot.slane %v1774, 3
    %v1799 = vrot.slane %v1775, 2
    %v1801 = vrot.slane %v1774, 2
    %v1803 = vrot.slane %v1775, 1
    %v1805 = vrot.slane %v1774, 1
    %vm1807 = vcmask 1040384
    %v1808 = vsel %vm1807, %v1774, %v1778
    %vm1809 = vcmask 1041408
    %v1810 = vsel %vm1809, %v1808, %v1781
    %vm1811 = vcmask 1042432
    %v1812 = vsel %vm1811, %v1810, %v1783
    %vm1813 = vcmask 1043456
    %v1814 = vsel %vm1813, %v1812, %v1785
    %vm1815 = vcmask 1044480
    %v1816 = vsel %vm1815, %v1814, %v1787
    %vm1817 = vcmask 1045504
    %v1818 = vsel %vm1817, %v1816, %v1789
    %vm1819 = vcmask 1046528
    %v1820 = vsel %vm1819, %v1818, %v1791
    %v1821 = vsel %vm1807, %v1793, %v1795
    %v1822 = vsel %vm1809, %v1821, %v1797
    %v1823 = vsel %vm1811, %v1822, %v1799
    %v1824 = vsel %vm1813, %v1823, %v1801
    %v1825 = vsel %vm1815, %v1824, %v1803
    %v1826 = vsel %vm1817, %v1825, %v1805
    %v1827 = vsel %vm1819, %v1826, %v1775
    %v1828 = vld [vmem:[%s8] sm:$0xff]
    %v1829 = vld [vmem:[%s8 + $0x8] sm:$0xff]
    %v1830 = vld [vmem:[%s8 + $0x10] sm:$0xff]
    %v1831 = vld [vmem:[%s8 + $0x18] sm:$0xff]
    %v1832 = vperm.slane %v1776, 0
    %v1834 = vsel %vm52, %v1820, 0
    %v1837 = vsel %vm52, %v1827, 0
    %1839 = vmatpush.msra.mxu0 0.0
    %1840 = vmatpush.msra.mxu0 0.0
    %1841 = vmatpush.msra.mxu0 0.0
    %1842 = vmatpush.msra.mxu0 0.0
    %1843 = vmatpush.msra.mxu0 0.0
    %1844 = vmatpush.msra.mxu0 0.0
    %1845 = vmatpush.msra.mxu0 0.0
    %1846 = vmatpush.msra.mxu0 0.0
    %1847 = vmatpush.msra.mxu0 0.0
    %1848 = vmatpush.msra.mxu0 0.0
    %1849 = vmatpush.msra.mxu0 0.0
    %1850 = vmatpush.msra.mxu0 0.0
    %1851 = vmatpush.msra.mxu0 %v1831
    %1852 = vmatpush.msra.mxu0 %v1830
    %1853 = vmatpush.msra.mxu0 %v1829
    %1854 = vmatpush.msra.mxu0 %v1828
    %1855 = vmatmul.f32.gmra.mxu0 %v1834
    %v1856 = vpop.f32.mrf.mxu0
    %v1857 = vadd.f32 %v1832, %v1856
    %1858 = vmatmul.f32.gmra.mxu0 %v1837
    %v1859 = vpop.f32.mrf.mxu0
    %v1860 = vadd.f32 %v1832, %v1859
    %1861 = vdwg.mxu0
    %v1862 = vld [vmem:[%s10] sm:$0xff]
    %v1863 = vld [vmem:[%s10 + $0x8] sm:$0xff]
    %v1864 = vld [vmem:[%s10 + $0x10] sm:$0xff]
    %v1865 = vld [vmem:[%s10 + $0x18] sm:$0xff]
    %v1866 = vperm.slane %v1776, 1
    %1867 = vmatpush.msra.mxu0 0.0
    %1868 = vmatpush.msra.mxu0 0.0
    %1869 = vmatpush.msra.mxu0 0.0
    %1870 = vmatpush.msra.mxu0 0.0
    %1871 = vmatpush.msra.mxu0 0.0
    %1872 = vmatpush.msra.mxu0 0.0
    %1873 = vmatpush.msra.mxu0 0.0
    %1874 = vmatpush.msra.mxu0 0.0
    %1875 = vmatpush.msra.mxu0 0.0
    %1876 = vmatpush.msra.mxu0 0.0
    %1877 = vmatpush.msra.mxu0 0.0
    %1878 = vmatpush.msra.mxu0 0.0
    %1879 = vmatpush.msra.mxu0 %v1865
    %1880 = vmatpush.msra.mxu0 %v1864
    %1881 = vmatpush.msra.mxu0 %v1863
    %1882 = vmatpush.msra.mxu0 %v1862
    %1883 = vmatmul.f32.gmra.mxu0 %v1834
    %v1884 = vpop.f32.mrf.mxu0
    %v1885 = vadd.f32 %v1866, %v1884
    %1886 = vmatmul.f32.gmra.mxu0 %v1837
    %v1887 = vpop.f32.mrf.mxu0
    %v1888 = vadd.f32 %v1866, %v1887
    %1889 = vdwg.mxu0
    %v1890 = vld [vmem:[%s9] sm:$0xff]
    %v1891 = vld [vmem:[%s9 + $0x8] sm:$0xff]
    %v1892 = vld [vmem:[%s11] sm:$0xff]
    %v1893 = vld [vmem:[%s11 + $0x8] sm:$0xff]
    %v1895 = vsel %vm444, 0.0, 0
    %1897 = vmatpush.msra.mxu0 0.0
    %1898 = vmatpush.msra.mxu0 0.0
    %1899 = vmatpush.msra.mxu0 0.0
    %1900 = vmatpush.msra.mxu0 0.0
    %1901 = vmatpush.msra.mxu0 0.0
    %1902 = vmatpush.msra.mxu0 0.0
    %1903 = vmatpush.msra.mxu0 0.0
    %1904 = vmatpush.msra.mxu0 0.0
    %1905 = vmatpush.msra.mxu0 0.0
    %1906 = vmatpush.msra.mxu0 0.0
    %1907 = vmatpush.msra.mxu0 0.0
    %1908 = vmatpush.msra.mxu0 0.0
    %1909 = vmatpush.msra.mxu0 0.0
    %1910 = vmatpush.msra.mxu0 0.0
    %1911 = vmatpush.msra.mxu0 %v1891
    %1912 = vmatpush.msra.mxu0 %v1890
    %1913 = vmatmul.f32.gmra.mxu0 %v1895
    %v1914 = vpop.f32.mrf.mxu0
    %v1915 = vadd.f32 0.0, %v1914
    %1916 = vdwg.mxu0
    %v1917 = vadd.f32 %v1857, %v1915
    %v1918 = vxor.u32 %v1917, 2147483648
    %v1919 = vmul.f32 %v1918, 1.442695
    %v1920 = vpow.pop %v1919
    %v1921 = vadd.f32 %v1920, 1.0
    %v1922 = vrcp.pop %v1921
    %v1923 = vmul.f32 %v1921, %v1922
    %v1924 = vsub.f32 1.0, %v1923
    %v1925 = vmul.f32 %v1922, %v1924
    %v1926 = vadd.f32 %v1922, %v1925
    %vm1927 = vweird.f32 %v1921
    %vm1928 = vweird.f32 %v1922
    %vm1929 = vmor %vm1927, %vm1928
    %v1930 = vsel %vm1929, %v1922, %v1926
    %v1931 = vand.u32 2147483647, %v1921
    %vm1932 = vcmp.eq.f32.partialorder %v1931, 8.507059e+37
    %v1933 = vand.u32 %v1921, 2147483648
    %v1934 = vor.u32 1.1754944e-38, %v1933
    %v1935 = vsel %vm1932, %v1934, %v1930
    %v1936 = vmul.f32 1.0, %v1935
    %v1937 = vtanh.pop %v1917
    %v1938 = vmul.f32 %v1936, 0.0
    %1940 = vrot.lane.b32.xlu0 %v1937, 96
    %v1941 = vpop.permute.xlu0 %1940
    %v1943 = vmul.f32 %v1936, %v1941
    %1945 = vrot.lane.b32.xlu0 %v1943, 16
    %v1946 = vpop.permute.xlu0 %1945
    %v1948 = vadd.f32 %v1938, %v1946
    %v1949 = vtanh.pop %v1948
    %1951 = vrot.lane.b32.xlu0 %v1949, 32
    %v1952 = vpop.permute.xlu0 %1951
    %v1954 = vmul.f32 %v1936, %v1952
    %v1955 = vld [vmem:[%s12] sm:$0xff]
    %v1956 = vld [vmem:[%s12 + $0x8] sm:$0xff]
    %1958 = vrot.lane.b32.xlu0 %v1954, 80
    %v1959 = vpop.permute.xlu0 %1958
    %v1960 = vsel %vm444, %v1959, 0
    %1962 = vmatpush.msra.mxu0 0.0
    %1963 = vmatpush.msra.mxu0 0.0
    %1964 = vmatpush.msra.mxu0 0.0
    %1965 = vmatpush.msra.mxu0 0.0
    %1966 = vmatpush.msra.mxu0 0.0
    %1967 = vmatpush.msra.mxu0 0.0
    %1968 = vmatpush.msra.mxu0 0.0
    %1969 = vmatpush.msra.mxu0 0.0
    %1970 = vmatpush.msra.mxu0 0.0
    %1971 = vmatpush.msra.mxu0 0.0
    %1972 = vmatpush.msra.mxu0 0.0
    %1973 = vmatpush.msra.mxu0 0.0
    %1974 = vmatpush.msra.mxu0 0.0
    %1975 = vmatpush.msra.mxu0 0.0
    %1976 = vmatpush.msra.mxu0 %v1891
    %1977 = vmatpush.msra.mxu0 %v1890
    %1978 = vmatmul.f32.gmra.mxu0 %v1960
    %v1979 = vpop.f32.mrf.mxu0
    %v1980 = vadd.f32 0.0, %v1979
    %1981 = vdwg.mxu0
    %v1983 = vrot.slane %v1980, 6
    %v1985 = vadd.f32 %v1857, %v1983
    %v1986 = vxor.u32 %v1985, 2147483648
    %v1987 = vmul.f32 %v1986, 1.442695
    %v1988 = vpow.pop %v1987
    %v1989 = vadd.f32 %v1988, 1.0
    %v1990 = vrcp.pop %v1989
    %v1991 = vmul.f32 %v1989, %v1990
    %v1992 = vsub.f32 1.0, %v1991
    %v1993 = vmul.f32 %v1990, %v1992
    %v1994 = vadd.f32 %v1990, %v1993
    %vm1995 = vweird.f32 %v1989
    %vm1996 = vweird.f32 %v1990
    %vm1997 = vmor %vm1995, %vm1996
    %v1998 = vsel %vm1997, %v1990, %v1994
    %v1999 = vand.u32 2147483647, %v1989
    %vm2000 = vcmp.eq.f32.partialorder %v1999, 8.507059e+37
    %v2001 = vand.u32 %v1989, 2147483648
    %v2002 = vor.u32 1.1754944e-38, %v2001
    %v2003 = vsel %vm2000, %v2002, %v1998
    %v2004 = vmul.f32 1.0, %v2003
    %v2005 = vtanh.pop %v1985
    %v2007 = vrot.slane %v1948, 6
    %v2009 = vmul.f32 %v2004, %v2007
    %2011 = vrot.lane.b32.xlu0 %v2005, 96
    %v2012 = vpop.permute.xlu0 %2011
    %v2014 = vmul.f32 %v2004, %v2012
    %2016 = vrot.lane.b32.xlu0 %v2014, 16
    %v2017 = vpop.permute.xlu0 %2016
    %v2019 = vadd.f32 %v2009, %v2017
    %v2020 = vtanh.pop %v2019
    %2022 = vrot.lane.b32.xlu0 %v2020, 32
    %v2023 = vpop.permute.xlu0 %2022
    %v2025 = vmul.f32 %v2004, %v2023
    %v2026 = vld [vmem:[%s12 + $0x20] sm:$0xff]
    %v2027 = vld [vmem:[%s12 + $0x28] sm:$0xff]
    %v2029 = vrot.slane %v2025, 2
    %2030 = vrot.lane.b32.xlu0 %v2029, 80
    %v2031 = vpop.permute.xlu0 %2030
    %v2032 = vsel %vm444, %v2031, 0
    %2034 = vmatpush.msra.mxu0 0.0
    %2035 = vmatpush.msra.mxu0 0.0
    %2036 = vmatpush.msra.mxu0 0.0
    %2037 = vmatpush.msra.mxu0 0.0
    %2038 = vmatpush.msra.mxu0 0.0
    %2039 = vmatpush.msra.mxu0 0.0
    %2040 = vmatpush.msra.mxu0 0.0
    %2041 = vmatpush.msra.mxu0 0.0
    %2042 = vmatpush.msra.mxu0 0.0
    %2043 = vmatpush.msra.mxu0 0.0
    %2044 = vmatpush.msra.mxu0 0.0
    %2045 = vmatpush.msra.mxu0 0.0
    %2046 = vmatpush.msra.mxu0 0.0
    %2047 = vmatpush.msra.mxu0 0.0
    %2048 = vmatpush.msra.mxu0 %v2027
    %2049 = vmatpush.msra.mxu0 %v2026
    %2050 = vmatmul.f32.gmra.mxu0 %v2032
    %v2051 = vpop.f32.mrf.mxu0
    %v2052 = vadd.f32 0.0, %v2051
    %2053 = vdwg.mxu0
    %2054 = vmatpush.msra.mxu0 0.0
    %2055 = vmatpush.msra.mxu0 0.0
    %2056 = vmatpush.msra.mxu0 0.0
    %2057 = vmatpush.msra.mxu0 0.0
    %2058 = vmatpush.msra.mxu0 0.0
    %2059 = vmatpush.msra.mxu0 0.0
    %2060 = vmatpush.msra.mxu0 0.0
    %2061 = vmatpush.msra.mxu0 0.0
    %2062 = vmatpush.msra.mxu0 0.0
    %2063 = vmatpush.msra.mxu0 0.0
    %2064 = vmatpush.msra.mxu0 0.0
    %2065 = vmatpush.msra.mxu0 0.0
    %2066 = vmatpush.msra.mxu0 0.0
    %2067 = vmatpush.msra.mxu0 0.0
    %2068 = vmatpush.msra.mxu0 %v1956
    %2069 = vmatpush.msra.mxu0 %v1955
    %2070 = vmatmul.f32.gmra.mxu0 %v1960
    %v2071 = vpop.f32.mrf.mxu0
    %v2072 = vadd.f32 %v2052, %v2071
    %2073 = vdwg.mxu0
    %2074 = vmatpush.msra.mxu0 0.0
    %2075 = vmatpush.msra.mxu0 0.0
    %2076 = vmatpush.msra.mxu0 0.0
    %2077 = vmatpush.msra.mxu0 0.0
    %2078 = vmatpush.msra.mxu0 0.0
    %2079 = vmatpush.msra.mxu0 0.0
    %2080 = vmatpush.msra.mxu0 0.0
    %2081 = vmatpush.msra.mxu0 0.0
    %2082 = vmatpush.msra.mxu0 0.0
    %2083 = vmatpush.msra.mxu0 0.0
    %2084 = vmatpush.msra.mxu0 0.0
    %2085 = vmatpush.msra.mxu0 0.0
    %2086 = vmatpush.msra.mxu0 0.0
    %2087 = vmatpush.msra.mxu0 0.0
    %2088 = vmatpush.msra.mxu0 %v1891
    %2089 = vmatpush.msra.mxu0 %v1890
    %2090 = vmatmul.f32.gmra.mxu0 %v2032
    %v2091 = vpop.f32.mrf.mxu0
    %v2092 = vadd.f32 0.0, %v2091
    %2093 = vdwg.mxu0
    %v2095 = vrot.slane %v2092, 4
    %v2097 = vadd.f32 %v1857, %v2095
    %v2098 = vxor.u32 %v2097, 2147483648
    %v2099 = vmul.f32 %v2098, 1.442695
    %v2100 = vpow.pop %v2099
    %v2101 = vadd.f32 %v2100, 1.0
    %v2102 = vrcp.pop %v2101
    %v2103 = vmul.f32 %v2101, %v2102
    %v2104 = vsub.f32 1.0, %v2103
    %v2105 = vmul.f32 %v2102, %v2104
    %v2106 = vadd.f32 %v2102, %v2105
    %vm2107 = vweird.f32 %v2101
    %vm2108 = vweird.f32 %v2102
    %vm2109 = vmor %vm2107, %vm2108
    %v2110 = vsel %vm2109, %v2102, %v2106
    %v2111 = vand.u32 2147483647, %v2101
    %vm2112 = vcmp.eq.f32.partialorder %v2111, 8.507059e+37
    %v2113 = vand.u32 %v2101, 2147483648
    %v2114 = vor.u32 1.1754944e-38, %v2113
    %v2115 = vsel %vm2112, %v2114, %v2110
    %v2116 = vmul.f32 1.0, %v2115
    %v2117 = vtanh.pop %v2097
    %v2119 = vrot.slane %v2019, 6
    %v2121 = vmul.f32 %v2116, %v2119
    %2123 = vrot.lane.b32.xlu0 %v2117, 96
    %v2124 = vpop.permute.xlu0 %2123
    %v2126 = vmul.f32 %v2116, %v2124
    %2128 = vrot.lane.b32.xlu0 %v2126, 16
    %v2129 = vpop.permute.xlu0 %2128
    %v2131 = vadd.f32 %v2121, %v2129
    %v2132 = vtanh.pop %v2131
    %2134 = vrot.lane.b32.xlu0 %v2132, 32
    %v2135 = vpop.permute.xlu0 %2134
    %v2137 = vmul.f32 %v2116, %v2135
    %v2138 = vld [vmem:[%s12 + $0x40] sm:$0xff]
    %v2139 = vld [vmem:[%s12 + $0x48] sm:$0xff]
    %v2141 = vrot.slane %v2137, 4
    %2142 = vrot.lane.b32.xlu0 %v2141, 80
    %v2143 = vpop.permute.xlu0 %2142
    %v2144 = vsel %vm444, %v2143, 0
    %2146 = vmatpush.msra.mxu0 0.0
    %2147 = vmatpush.msra.mxu0 0.0
    %2148 = vmatpush.msra.mxu0 0.0
    %2149 = vmatpush.msra.mxu0 0.0
    %2150 = vmatpush.msra.mxu0 0.0
    %2151 = vmatpush.msra.mxu0 0.0
    %2152 = vmatpush.msra.mxu0 0.0
    %2153 = vmatpush.msra.mxu0 0.0
    %2154 = vmatpush.msra.mxu0 0.0
    %2155 = vmatpush.msra.mxu0 0.0
    %2156 = vmatpush.msra.mxu0 0.0
    %2157 = vmatpush.msra.mxu0 0.0
    %2158 = vmatpush.msra.mxu0 0.0
    %2159 = vmatpush.msra.mxu0 0.0
    %2160 = vmatpush.msra.mxu0 %v2139
    %2161 = vmatpush.msra.mxu0 %v2138
    %2162 = vmatmul.f32.gmra.mxu0 %v2144
    %v2163 = vpop.f32.mrf.mxu0
    %v2164 = vadd.f32 0.0, %v2163
    %2165 = vdwg.mxu0
    %v2166 = vadd.f32 %v2072, %v2164
    %2167 = vmatpush.msra.mxu0 0.0
    %2168 = vmatpush.msra.mxu0 0.0
    %2169 = vmatpush.msra.mxu0 0.0
    %2170 = vmatpush.msra.mxu0 0.0
    %2171 = vmatpush.msra.mxu0 0.0
    %2172 = vmatpush.msra.mxu0 0.0
    %2173 = vmatpush.msra.mxu0 0.0
    %2174 = vmatpush.msra.mxu0 0.0
    %2175 = vmatpush.msra.mxu0 0.0
    %2176 = vmatpush.msra.mxu0 0.0
    %2177 = vmatpush.msra.mxu0 0.0
    %2178 = vmatpush.msra.mxu0 0.0
    %2179 = vmatpush.msra.mxu0 0.0
    %2180 = vmatpush.msra.mxu0 0.0
    %2181 = vmatpush.msra.mxu0 %v1891
    %2182 = vmatpush.msra.mxu0 %v1890
    %2183 = vmatmul.f32.gmra.mxu0 %v2144
    %v2184 = vpop.f32.mrf.mxu0
    %v2185 = vadd.f32 0.0, %v2184
    %2186 = vdwg.mxu0
    %v2188 = vrot.slane %v2185, 2
    %v2190 = vadd.f32 %v1857, %v2188
    %v2191 = vxor.u32 %v2190, 2147483648
    %v2192 = vmul.f32 %v2191, 1.442695
    %v2193 = vpow.pop %v2192
    %v2194 = vadd.f32 %v2193, 1.0
    %v2195 = vrcp.pop %v2194
    %v2196 = vmul.f32 %v2194, %v2195
    %v2197 = vsub.f32 1.0, %v2196
    %v2198 = vmul.f32 %v2195, %v2197
    %v2199 = vadd.f32 %v2195, %v2198
    %vm2200 = vweird.f32 %v2194
    %vm2201 = vweird.f32 %v2195
    %vm2202 = vmor %vm2200, %vm2201
    %v2203 = vsel %vm2202, %v2195, %v2199
    %v2204 = vand.u32 2147483647, %v2194
    %vm2205 = vcmp.eq.f32.partialorder %v2204, 8.507059e+37
    %v2206 = vand.u32 %v2194, 2147483648
    %v2207 = vor.u32 1.1754944e-38, %v2206
    %v2208 = vsel %vm2205, %v2207, %v2203
    %v2209 = vmul.f32 1.0, %v2208
    %v2210 = vtanh.pop %v2190
    %v2212 = vrot.slane %v2131, 6
    %v2214 = vmul.f32 %v2209, %v2212
    %2216 = vrot.lane.b32.xlu0 %v2210, 96
    %v2217 = vpop.permute.xlu0 %2216
    %v2219 = vmul.f32 %v2209, %v2217
    %2221 = vrot.lane.b32.xlu0 %v2219, 16
    %v2222 = vpop.permute.xlu0 %2221
    %v2224 = vadd.f32 %v2214, %v2222
    %v2225 = vtanh.pop %v2224
    %2227 = vrot.lane.b32.xlu0 %v2225, 32
    %v2228 = vpop.permute.xlu0 %2227
    %v2230 = vmul.f32 %v2209, %v2228
    %v2231 = vld [vmem:[%s12 + $0x60] sm:$0xff]
    %v2232 = vld [vmem:[%s12 + $0x68] sm:$0xff]
    %v2234 = vrot.slane %v2230, 6
    %2235 = vrot.lane.b32.xlu0 %v2234, 80
    %v2236 = vpop.permute.xlu0 %2235
    %v2237 = vsel %vm444, %v2236, 0
    %2239 = vmatpush.msra.mxu0 0.0
    %2240 = vmatpush.msra.mxu0 0.0
    %2241 = vmatpush.msra.mxu0 0.0
    %2242 = vmatpush.msra.mxu0 0.0
    %2243 = vmatpush.msra.mxu0 0.0
    %2244 = vmatpush.msra.mxu0 0.0
    %2245 = vmatpush.msra.mxu0 0.0
    %2246 = vmatpush.msra.mxu0 0.0
    %2247 = vmatpush.msra.mxu0 0.0
    %2248 = vmatpush.msra.mxu0 0.0
    %2249 = vmatpush.msra.mxu0 0.0
    %2250 = vmatpush.msra.mxu0 0.0
    %2251 = vmatpush.msra.mxu0 0.0
    %2252 = vmatpush.msra.mxu0 0.0
    %2253 = vmatpush.msra.mxu0 %v2232
    %2254 = vmatpush.msra.mxu0 %v2231
    %2255 = vmatmul.f32.gmra.mxu0 %v2237
    %v2256 = vpop.f32.mrf.mxu0
    %v2257 = vadd.f32 0.0, %v2256
    %2258 = vdwg.mxu0
    %v2259 = vadd.f32 %v2166, %v2257
    %2260 = vmatpush.msra.mxu0 0.0
    %2261 = vmatpush.msra.mxu0 0.0
    %2262 = vmatpush.msra.mxu0 0.0
    %2263 = vmatpush.msra.mxu0 0.0
    %2264 = vmatpush.msra.mxu0 0.0
    %2265 = vmatpush.msra.mxu0 0.0
    %2266 = vmatpush.msra.mxu0 0.0
    %2267 = vmatpush.msra.mxu0 0.0
    %2268 = vmatpush.msra.mxu0 0.0
    %2269 = vmatpush.msra.mxu0 0.0
    %2270 = vmatpush.msra.mxu0 0.0
    %2271 = vmatpush.msra.mxu0 0.0
    %2272 = vmatpush.msra.mxu0 0.0
    %2273 = vmatpush.msra.mxu0 0.0
    %2274 = vmatpush.msra.mxu0 %v1891
    %2275 = vmatpush.msra.mxu0 %v1890
    %2276 = vmatmul.f32.gmra.mxu0 %v2237
    %v2277 = vpop.f32.mrf.mxu0
    %v2278 = vadd.f32 0.0, %v2277
    %2279 = vdwg.mxu0
    %v2280 = vadd.f32 %v1860, %v2278
    %v2281 = vxor.u32 %v2280, 2147483648
    %v2282 = vmul.f32 %v2281, 1.442695
    %v2283 = vpow.pop %v2282
    %v2284 = vadd.f32 %v2283, 1.0
    %v2285 = vrcp.pop %v2284
    %v2286 = vmul.f32 %v2284, %v2285
    %v2287 = vsub.f32 1.0, %v2286
    %v2288 = vmul.f32 %v2285, %v2287
    %v2289 = vadd.f32 %v2285, %v2288
    %vm2290 = vweird.f32 %v2284
    %vm2291 = vweird.f32 %v2285
    %vm2292 = vmor %vm2290, %vm2291
    %v2293 = vsel %vm2292, %v2285, %v2289
    %v2294 = vand.u32 2147483647, %v2284
    %vm2295 = vcmp.eq.f32.partialorder %v2294, 8.507059e+37
    %v2296 = vand.u32 %v2284, 2147483648
    %v2297 = vor.u32 1.1754944e-38, %v2296
    %v2298 = vsel %vm2295, %v2297, %v2293
    %v2299 = vmul.f32 1.0, %v2298
    %v2300 = vtanh.pop %v2280
    %v2302 = vrot.slane %v2224, 6
    %v2304 = vmul.f32 %v2299, %v2302
    %2306 = vrot.lane.b32.xlu0 %v2300, 96
    %v2307 = vpop.permute.xlu0 %2306
    %v2309 = vmul.f32 %v2299, %v2307
    %2311 = vrot.lane.b32.xlu0 %v2309, 16
    %v2312 = vpop.permute.xlu0 %2311
    %v2314 = vadd.f32 %v2304, %v2312
    %v2315 = vtanh.pop %v2314
    %2317 = vrot.lane.b32.xlu0 %v2315, 32
    %v2318 = vpop.permute.xlu0 %2317
    %v2320 = vmul.f32 %v2299, %v2318
    %v2321 = vld [vmem:[%s12 + $0x80] sm:$0xff]
    %v2322 = vld [vmem:[%s12 + $0x88] sm:$0xff]
    %2324 = vrot.lane.b32.xlu0 %v2320, 80
    %v2325 = vpop.permute.xlu0 %2324
    %v2326 = vsel %vm444, %v2325, 0
    %2328 = vmatpush.msra.mxu0 0.0
    %2329 = vmatpush.msra.mxu0 0.0
    %2330 = vmatpush.msra.mxu0 0.0
    %2331 = vmatpush.msra.mxu0 0.0
    %2332 = vmatpush.msra.mxu0 0.0
    %2333 = vmatpush.msra.mxu0 0.0
    %2334 = vmatpush.msra.mxu0 0.0
    %2335 = vmatpush.msra.mxu0 0.0
    %2336 = vmatpush.msra.mxu0 0.0
    %2337 = vmatpush.msra.mxu0 0.0
    %2338 = vmatpush.msra.mxu0 0.0
    %2339 = vmatpush.msra.mxu0 0.0
    %2340 = vmatpush.msra.mxu0 0.0
    %2341 = vmatpush.msra.mxu0 0.0
    %2342 = vmatpush.msra.mxu0 %v2322
    %2343 = vmatpush.msra.mxu0 %v2321
    %2344 = vmatmul.f32.gmra.mxu0 %v2326
    %v2345 = vpop.f32.mrf.mxu0
    %v2346 = vadd.f32 0.0, %v2345
    %2347 = vdwg.mxu0
    %v2348 = vadd.f32 %v2259, %v2346
    %2349 = vmatpush.msra.mxu0 0.0
    %2350 = vmatpush.msra.mxu0 0.0
    %2351 = vmatpush.msra.mxu0 0.0
    %2352 = vmatpush.msra.mxu0 0.0
    %2353 = vmatpush.msra.mxu0 0.0
    %2354 = vmatpush.msra.mxu0 0.0
    %2355 = vmatpush.msra.mxu0 0.0
    %2356 = vmatpush.msra.mxu0 0.0
    %2357 = vmatpush.msra.mxu0 0.0
    %2358 = vmatpush.msra.mxu0 0.0
    %2359 = vmatpush.msra.mxu0 0.0
    %2360 = vmatpush.msra.mxu0 0.0
    %2361 = vmatpush.msra.mxu0 0.0
    %2362 = vmatpush.msra.mxu0 0.0
    %2363 = vmatpush.msra.mxu0 %v1891
    %2364 = vmatpush.msra.mxu0 %v1890
    %2365 = vmatmul.f32.gmra.mxu0 %v2326
    %v2366 = vpop.f32.mrf.mxu0
    %v2367 = vadd.f32 0.0, %v2366
    %2368 = vdwg.mxu0
    %v2370 = vrot.slane %v2367, 6
    %v2372 = vadd.f32 %v1860, %v2370
    %v2373 = vxor.u32 %v2372, 2147483648
    %v2374 = vmul.f32 %v2373, 1.442695
    %v2375 = vpow.pop %v2374
    %v2376 = vadd.f32 %v2375, 1.0
    %v2377 = vrcp.pop %v2376
    %v2378 = vmul.f32 %v2376, %v2377
    %v2379 = vsub.f32 1.0, %v2378
    %v2380 = vmul.f32 %v2377, %v2379
    %v2381 = vadd.f32 %v2377, %v2380
    %vm2382 = vweird.f32 %v2376
    %vm2383 = vweird.f32 %v2377
    %vm2384 = vmor %vm2382, %vm2383
    %v2385 = vsel %vm2384, %v2377, %v2381
    %v2386 = vand.u32 2147483647, %v2376
    %vm2387 = vcmp.eq.f32.partialorder %v2386, 8.507059e+37
    %v2388 = vand.u32 %v2376, 2147483648
    %v2389 = vor.u32 1.1754944e-38, %v2388
    %v2390 = vsel %vm2387, %v2389, %v2385
    %v2391 = vmul.f32 1.0, %v2390
    %v2392 = vtanh.pop %v2372
    %v2394 = vrot.slane %v2314, 6
    %v2396 = vmul.f32 %v2391, %v2394
    %2398 = vrot.lane.b32.xlu0 %v2392, 96
    %v2399 = vpop.permute.xlu0 %2398
    %v2401 = vmul.f32 %v2391, %v2399
    %2403 = vrot.lane.b32.xlu0 %v2401, 16
    %v2404 = vpop.permute.xlu0 %2403
    %v2406 = vadd.f32 %v2396, %v2404
    %v2407 = vtanh.pop %v2406
    %2409 = vrot.lane.b32.xlu0 %v2407, 32
    %v2410 = vpop.permute.xlu0 %2409
    %v2412 = vmul.f32 %v2391, %v2410
    %v2413 = vld [vmem:[%s12 + $0xa0] sm:$0xff]
    %v2414 = vld [vmem:[%s12 + $0xa8] sm:$0xff]
    %v2416 = vrot.slane %v2412, 2
    %2417 = vrot.lane.b32.xlu0 %v2416, 80
    %v2418 = vpop.permute.xlu0 %2417
    %v2419 = vsel %vm444, %v2418, 0
    %2421 = vmatpush.msra.mxu0 0.0
    %2422 = vmatpush.msra.mxu0 0.0
    %2423 = vmatpush.msra.mxu0 0.0
    %2424 = vmatpush.msra.mxu0 0.0
    %2425 = vmatpush.msra.mxu0 0.0
    %2426 = vmatpush.msra.mxu0 0.0
    %2427 = vmatpush.msra.mxu0 0.0
    %2428 = vmatpush.msra.mxu0 0.0
    %2429 = vmatpush.msra.mxu0 0.0
    %2430 = vmatpush.msra.mxu0 0.0
    %2431 = vmatpush.msra.mxu0 0.0
    %2432 = vmatpush.msra.mxu0 0.0
    %2433 = vmatpush.msra.mxu0 0.0
    %2434 = vmatpush.msra.mxu0 0.0
    %2435 = vmatpush.msra.mxu0 %v2414
    %2436 = vmatpush.msra.mxu0 %v2413
    %2437 = vmatmul.f32.gmra.mxu0 %v2419
    %v2438 = vpop.f32.mrf.mxu0
    %v2439 = vadd.f32 0.0, %v2438
    %2440 = vdwg.mxu0
    %v2441 = vadd.f32 %v2348, %v2439
    %2442 = vmatpush.msra.mxu0 0.0
    %2443 = vmatpush.msra.mxu0 0.0
    %2444 = vmatpush.msra.mxu0 0.0
    %2445 = vmatpush.msra.mxu0 0.0
    %2446 = vmatpush.msra.mxu0 0.0
    %2447 = vmatpush.msra.mxu0 0.0
    %2448 = vmatpush.msra.mxu0 0.0
    %2449 = vmatpush.msra.mxu0 0.0
    %2450 = vmatpush.msra.mxu0 0.0
    %2451 = vmatpush.msra.mxu0 0.0
    %2452 = vmatpush.msra.mxu0 0.0
    %2453 = vmatpush.msra.mxu0 0.0
    %2454 = vmatpush.msra.mxu0 0.0
    %2455 = vmatpush.msra.mxu0 0.0
    %2456 = vmatpush.msra.mxu0 %v1891
    %2457 = vmatpush.msra.mxu0 %v1890
    %2458 = vmatmul.f32.gmra.mxu0 %v2419
    %v2459 = vpop.f32.mrf.mxu0
    %v2460 = vadd.f32 0.0, %v2459
    %2461 = vdwg.mxu0
    %v2463 = vrot.slane %v2460, 4
    %v2465 = vadd.f32 %v1860, %v2463
    %v2466 = vxor.u32 %v2465, 2147483648
    %v2467 = vmul.f32 %v2466, 1.442695
    %v2468 = vpow.pop %v2467
    %v2469 = vadd.f32 %v2468, 1.0
    %v2470 = vrcp.pop %v2469
    %v2471 = vmul.f32 %v2469, %v2470
    %v2472 = vsub.f32 1.0, %v2471
    %v2473 = vmul.f32 %v2470, %v2472
    %v2474 = vadd.f32 %v2470, %v2473
    %vm2475 = vweird.f32 %v2469
    %vm2476 = vweird.f32 %v2470
    %vm2477 = vmor %vm2475, %vm2476
    %v2478 = vsel %vm2477, %v2470, %v2474
    %v2479 = vand.u32 2147483647, %v2469
    %vm2480 = vcmp.eq.f32.partialorder %v2479, 8.507059e+37
    %v2481 = vand.u32 %v2469, 2147483648
    %v2482 = vor.u32 1.1754944e-38, %v2481
    %v2483 = vsel %vm2480, %v2482, %v2478
    %v2484 = vmul.f32 1.0, %v2483
    %v2485 = vtanh.pop %v2465
    %v2487 = vrot.slane %v2406, 6
    %v2489 = vmul.f32 %v2484, %v2487
    %2491 = vrot.lane.b32.xlu0 %v2485, 96
    %v2492 = vpop.permute.xlu0 %2491
    %v2494 = vmul.f32 %v2484, %v2492
    %2496 = vrot.lane.b32.xlu0 %v2494, 16
    %v2497 = vpop.permute.xlu0 %2496
    %v2499 = vadd.f32 %v2489, %v2497
    %v2500 = vtanh.pop %v2499
    %2502 = vrot.lane.b32.xlu0 %v2500, 32
    %v2503 = vpop.permute.xlu0 %2502
    %v2505 = vmul.f32 %v2484, %v2503
    %v2506 = vld [vmem:[%s12 + $0xc0] sm:$0xff]
    %v2507 = vld [vmem:[%s12 + $0xc8] sm:$0xff]
    %v2509 = vrot.slane %v2505, 4
    %2510 = vrot.lane.b32.xlu0 %v2509, 80
    %v2511 = vpop.permute.xlu0 %2510
    %v2512 = vsel %vm444, %v2511, 0
    %2514 = vmatpush.msra.mxu0 0.0
    %2515 = vmatpush.msra.mxu0 0.0
    %2516 = vmatpush.msra.mxu0 0.0
    %2517 = vmatpush.msra.mxu0 0.0
    %2518 = vmatpush.msra.mxu0 0.0
    %2519 = vmatpush.msra.mxu0 0.0
    %2520 = vmatpush.msra.mxu0 0.0
    %2521 = vmatpush.msra.mxu0 0.0
    %2522 = vmatpush.msra.mxu0 0.0
    %2523 = vmatpush.msra.mxu0 0.0
    %2524 = vmatpush.msra.mxu0 0.0
    %2525 = vmatpush.msra.mxu0 0.0
    %2526 = vmatpush.msra.mxu0 0.0
    %2527 = vmatpush.msra.mxu0 0.0
    %2528 = vmatpush.msra.mxu0 %v2507
    %2529 = vmatpush.msra.mxu0 %v2506
    %2530 = vmatmul.f32.gmra.mxu0 %v2512
    %v2531 = vpop.f32.mrf.mxu0
    %v2532 = vadd.f32 0.0, %v2531
    %2533 = vdwg.mxu0
    %v2534 = vadd.f32 %v2441, %v2532
    %2535 = vmatpush.msra.mxu0 0.0
    %2536 = vmatpush.msra.mxu0 0.0
    %2537 = vmatpush.msra.mxu0 0.0
    %2538 = vmatpush.msra.mxu0 0.0
    %2539 = vmatpush.msra.mxu0 0.0
    %2540 = vmatpush.msra.mxu0 0.0
    %2541 = vmatpush.msra.mxu0 0.0
    %2542 = vmatpush.msra.mxu0 0.0
    %2543 = vmatpush.msra.mxu0 0.0
    %2544 = vmatpush.msra.mxu0 0.0
    %2545 = vmatpush.msra.mxu0 0.0
    %2546 = vmatpush.msra.mxu0 0.0
    %2547 = vmatpush.msra.mxu0 0.0
    %2548 = vmatpush.msra.mxu0 0.0
    %2549 = vmatpush.msra.mxu0 %v1891
    %2550 = vmatpush.msra.mxu0 %v1890
    %2551 = vmatmul.f32.gmra.mxu0 %v2512
    %v2552 = vpop.f32.mrf.mxu0
    %v2553 = vadd.f32 0.0, %v2552
    %2554 = vdwg.mxu0
    %v2556 = vrot.slane %v2553, 2
    %v2558 = vadd.f32 %v1860, %v2556
    %v2559 = vxor.u32 %v2558, 2147483648
    %v2560 = vmul.f32 %v2559, 1.442695
    %v2561 = vpow.pop %v2560
    %v2562 = vadd.f32 %v2561, 1.0
    %v2563 = vrcp.pop %v2562
    %v2564 = vmul.f32 %v2562, %v2563
    %v2565 = vsub.f32 1.0, %v2564
    %v2566 = vmul.f32 %v2563, %v2565
    %v2567 = vadd.f32 %v2563, %v2566
    %vm2568 = vweird.f32 %v2562
    %vm2569 = vweird.f32 %v2563
    %vm2570 = vmor %vm2568, %vm2569
    %v2571 = vsel %vm2570, %v2563, %v2567
    %v2572 = vand.u32 2147483647, %v2562
    %vm2573 = vcmp.eq.f32.partialorder %v2572, 8.507059e+37
    %v2574 = vand.u32 %v2562, 2147483648
    %v2575 = vor.u32 1.1754944e-38, %v2574
    %v2576 = vsel %vm2573, %v2575, %v2571
    %v2577 = vmul.f32 1.0, %v2576
    %v2578 = vtanh.pop %v2558
    %v2580 = vrot.slane %v2499, 6
    %v2582 = vmul.f32 %v2577, %v2580
    %2584 = vrot.lane.b32.xlu0 %v2578, 96
    %v2585 = vpop.permute.xlu0 %2584
    %v2587 = vmul.f32 %v2577, %v2585
    %2589 = vrot.lane.b32.xlu0 %v2587, 16
    %v2590 = vpop.permute.xlu0 %2589
    %v2592 = vadd.f32 %v2582, %v2590
    %v2593 = vtanh.pop %v2592
    %2595 = vrot.lane.b32.xlu0 %v2593, 32
    %v2596 = vpop.permute.xlu0 %2595
    %v2598 = vmul.f32 %v2577, %v2596
    %v2599 = vld [vmem:[%s12 + $0xe0] sm:$0xff]
    %v2600 = vld [vmem:[%s12 + $0xe8] sm:$0xff]
    %v2602 = vrot.slane %v2598, 6
    %2603 = vrot.lane.b32.xlu0 %v2602, 80
    %v2604 = vpop.permute.xlu0 %2603
    %v2605 = vsel %vm444, %v2604, 0
    %2607 = vmatpush.msra.mxu0 0.0
    %2608 = vmatpush.msra.mxu0 0.0
    %2609 = vmatpush.msra.mxu0 0.0
    %2610 = vmatpush.msra.mxu0 0.0
    %2611 = vmatpush.msra.mxu0 0.0
    %2612 = vmatpush.msra.mxu0 0.0
    %2613 = vmatpush.msra.mxu0 0.0
    %2614 = vmatpush.msra.mxu0 0.0
    %2615 = vmatpush.msra.mxu0 0.0
    %2616 = vmatpush.msra.mxu0 0.0
    %2617 = vmatpush.msra.mxu0 0.0
    %2618 = vmatpush.msra.mxu0 0.0
    %2619 = vmatpush.msra.mxu0 0.0
    %2620 = vmatpush.msra.mxu0 0.0
    %2621 = vmatpush.msra.mxu0 %v2600
    %2622 = vmatpush.msra.mxu0 %v2599
    %2623 = vmatmul.f32.gmra.mxu0 %v2605
    %v2624 = vpop.f32.mrf.mxu0
    %v2625 = vadd.f32 0.0, %v2624
    %2626 = vdwg.mxu0
    %v2627 = vadd.f32 %v2534, %v2625
    %2628 = vmatpush.msra.mxu0 0.0
    %2629 = vmatpush.msra.mxu0 0.0
    %2630 = vmatpush.msra.mxu0 0.0
    %2631 = vmatpush.msra.mxu0 0.0
    %2632 = vmatpush.msra.mxu0 0.0
    %2633 = vmatpush.msra.mxu0 0.0
    %2634 = vmatpush.msra.mxu0 0.0
    %2635 = vmatpush.msra.mxu0 0.0
    %2636 = vmatpush.msra.mxu0 0.0
    %2637 = vmatpush.msra.mxu0 0.0
    %2638 = vmatpush.msra.mxu0 0.0
    %2639 = vmatpush.msra.mxu0 0.0
    %2640 = vmatpush.msra.mxu0 0.0
    %2641 = vmatpush.msra.mxu0 0.0
    %2642 = vmatpush.msra.mxu0 %v1893
    %2643 = vmatpush.msra.mxu0 %v1892
    %2644 = vmatmul.f32.gmra.mxu0 %v1895
    %v2645 = vpop.f32.mrf.mxu0
    %v2646 = vadd.f32 0.0, %v2645
    %2647 = vdwg.mxu0
    %v2649 = vrot.slane %v2646, 2
    %v2651 = vadd.f32 %v1888, %v2649
    %v2652 = vxor.u32 %v2651, 2147483648
    %v2653 = vmul.f32 %v2652, 1.442695
    %v2654 = vpow.pop %v2653
    %v2655 = vadd.f32 %v2654, 1.0
    %v2656 = vrcp.pop %v2655
    %v2657 = vmul.f32 %v2655, %v2656
    %v2658 = vsub.f32 1.0, %v2657
    %v2659 = vmul.f32 %v2656, %v2658
    %v2660 = vadd.f32 %v2656, %v2659
    %vm2661 = vweird.f32 %v2655
    %vm2662 = vweird.f32 %v2656
    %vm2663 = vmor %vm2661, %vm2662
    %v2664 = vsel %vm2663, %v2656, %v2660
    %v2665 = vand.u32 2147483647, %v2655
    %vm2666 = vcmp.eq.f32.partialorder %v2665, 8.507059e+37
    %v2667 = vand.u32 %v2655, 2147483648
    %v2668 = vor.u32 1.1754944e-38, %v2667
    %v2669 = vsel %vm2666, %v2668, %v2664
    %v2670 = vmul.f32 1.0, %v2669
    %v2671 = vtanh.pop %v2651
    %v2672 = vmul.f32 %v2670, 0.0
    %2674 = vrot.lane.b32.xlu0 %v2671, 96
    %v2675 = vpop.permute.xlu0 %2674
    %v2677 = vmul.f32 %v2670, %v2675
    %2679 = vrot.lane.b32.xlu0 %v2677, 16
    %v2680 = vpop.permute.xlu0 %2679
    %v2682 = vadd.f32 %v2672, %v2680
    %v2683 = vtanh.pop %v2682
    %2685 = vrot.lane.b32.xlu0 %v2683, 32
    %v2686 = vpop.permute.xlu0 %2685
    %v2688 = vmul.f32 %v2670, %v2686
    %v2689 = vld [vmem:[%s12 + $0xf0] sm:$0xff]
    %v2690 = vld [vmem:[%s12 + $0xf8] sm:$0xff]
    %v2692 = vrot.slane %v2688, 6
    %2693 = vrot.lane.b32.xlu0 %v2692, 80
    %v2694 = vpop.permute.xlu0 %2693
    %v2695 = vsel %vm444, %v2694, 0
    %2697 = vmatpush.msra.mxu0 0.0
    %2698 = vmatpush.msra.mxu0 0.0
    %2699 = vmatpush.msra.mxu0 0.0
    %2700 = vmatpush.msra.mxu0 0.0
    %2701 = vmatpush.msra.mxu0 0.0
    %2702 = vmatpush.msra.mxu0 0.0
    %2703 = vmatpush.msra.mxu0 0.0
    %2704 = vmatpush.msra.mxu0 0.0
    %2705 = vmatpush.msra.mxu0 0.0
    %2706 = vmatpush.msra.mxu0 0.0
    %2707 = vmatpush.msra.mxu0 0.0
    %2708 = vmatpush.msra.mxu0 0.0
    %2709 = vmatpush.msra.mxu0 0.0
    %2710 = vmatpush.msra.mxu0 0.0
    %2711 = vmatpush.msra.mxu0 %v2690
    %2712 = vmatpush.msra.mxu0 %v2689
    %2713 = vmatmul.f32.gmra.mxu0 %v2695
    %v2714 = vpop.f32.mrf.mxu0
    %v2715 = vadd.f32 0.0, %v2714
    %2716 = vdwg.mxu0
    %v2717 = vadd.f32 %v2627, %v2715
    %2718 = vmatpush.msra.mxu0 0.0
    %2719 = vmatpush.msra.mxu0 0.0
    %2720 = vmatpush.msra.mxu0 0.0
    %2721 = vmatpush.msra.mxu0 0.0
    %2722 = vmatpush.msra.mxu0 0.0
    %2723 = vmatpush.msra.mxu0 0.0
    %2724 = vmatpush.msra.mxu0 0.0
    %2725 = vmatpush.msra.mxu0 0.0
    %2726 = vmatpush.msra.mxu0 0.0
    %2727 = vmatpush.msra.mxu0 0.0
    %2728 = vmatpush.msra.mxu0 0.0
    %2729 = vmatpush.msra.mxu0 0.0
    %2730 = vmatpush.msra.mxu0 0.0
    %2731 = vmatpush.msra.mxu0 0.0
    %2732 = vmatpush.msra.mxu0 %v1893
    %2733 = vmatpush.msra.mxu0 %v1892
    %2734 = vmatmul.f32.gmra.mxu0 %v2695
    %v2735 = vpop.f32.mrf.mxu0
    %v2736 = vadd.f32 0.0, %v2735
    %2737 = vdwg.mxu0
    %v2739 = vrot.slane %v2736, 4
    %v2741 = vadd.f32 %v1888, %v2739
    %v2742 = vxor.u32 %v2741, 2147483648
    %v2743 = vmul.f32 %v2742, 1.442695
    %v2744 = vpow.pop %v2743
    %v2745 = vadd.f32 %v2744, 1.0
    %v2746 = vrcp.pop %v2745
    %v2747 = vmul.f32 %v2745, %v2746
    %v2748 = vsub.f32 1.0, %v2747
    %v2749 = vmul.f32 %v2746, %v2748
    %v2750 = vadd.f32 %v2746, %v2749
    %vm2751 = vweird.f32 %v2745
    %vm2752 = vweird.f32 %v2746
    %vm2753 = vmor %vm2751, %vm2752
    %v2754 = vsel %vm2753, %v2746, %v2750
    %v2755 = vand.u32 2147483647, %v2745
    %vm2756 = vcmp.eq.f32.partialorder %v2755, 8.507059e+37
    %v2757 = vand.u32 %v2745, 2147483648
    %v2758 = vor.u32 1.1754944e-38, %v2757
    %v2759 = vsel %vm2756, %v2758, %v2754
    %v2760 = vmul.f32 1.0, %v2759
    %v2761 = vtanh.pop %v2741
    %v2763 = vrot.slane %v2682, 2
    %v2765 = vmul.f32 %v2760, %v2763
    %2767 = vrot.lane.b32.xlu0 %v2761, 96
    %v2768 = vpop.permute.xlu0 %2767
    %v2770 = vmul.f32 %v2760, %v2768
    %2772 = vrot.lane.b32.xlu0 %v2770, 16
    %v2773 = vpop.permute.xlu0 %2772
    %v2775 = vadd.f32 %v2765, %v2773
    %v2776 = vtanh.pop %v2775
    %2778 = vrot.lane.b32.xlu0 %v2776, 32
    %v2779 = vpop.permute.xlu0 %2778
    %v2781 = vmul.f32 %v2760, %v2779
    %v2782 = vld [vmem:[%s12 + $0xd0] sm:$0xff]
    %v2783 = vld [vmem:[%s12 + $0xd8] sm:$0xff]
    %v2785 = vrot.slane %v2781, 4
    %2786 = vrot.lane.b32.xlu0 %v2785, 80
    %v2787 = vpop.permute.xlu0 %2786
    %v2788 = vsel %vm444, %v2787, 0
    %2790 = vmatpush.msra.mxu0 0.0
    %2791 = vmatpush.msra.mxu0 0.0
    %2792 = vmatpush.msra.mxu0 0.0
    %2793 = vmatpush.msra.mxu0 0.0
    %2794 = vmatpush.msra.mxu0 0.0
    %2795 = vmatpush.msra.mxu0 0.0
    %2796 = vmatpush.msra.mxu0 0.0
    %2797 = vmatpush.msra.mxu0 0.0
    %2798 = vmatpush.msra.mxu0 0.0
    %2799 = vmatpush.msra.mxu0 0.0
    %2800 = vmatpush.msra.mxu0 0.0
    %2801 = vmatpush.msra.mxu0 0.0
    %2802 = vmatpush.msra.mxu0 0.0
    %2803 = vmatpush.msra.mxu0 0.0
    %2804 = vmatpush.msra.mxu0 %v2783
    %2805 = vmatpush.msra.mxu0 %v2782
    %2806 = vmatmul.f32.gmra.mxu0 %v2788
    %v2807 = vpop.f32.mrf.mxu0
    %v2808 = vadd.f32 0.0, %v2807
    %2809 = vdwg.mxu0
    %v2810 = vadd.f32 %v2717, %v2808
    %2811 = vmatpush.msra.mxu0 0.0
    %2812 = vmatpush.msra.mxu0 0.0
    %2813 = vmatpush.msra.mxu0 0.0
    %2814 = vmatpush.msra.mxu0 0.0
    %2815 = vmatpush.msra.mxu0 0.0
    %2816 = vmatpush.msra.mxu0 0.0
    %2817 = vmatpush.msra.mxu0 0.0
    %2818 = vmatpush.msra.mxu0 0.0
    %2819 = vmatpush.msra.mxu0 0.0
    %2820 = vmatpush.msra.mxu0 0.0
    %2821 = vmatpush.msra.mxu0 0.0
    %2822 = vmatpush.msra.mxu0 0.0
    %2823 = vmatpush.msra.mxu0 0.0
    %2824 = vmatpush.msra.mxu0 0.0
    %2825 = vmatpush.msra.mxu0 %v1893
    %2826 = vmatpush.msra.mxu0 %v1892
    %2827 = vmatmul.f32.gmra.mxu0 %v2788
    %v2828 = vpop.f32.mrf.mxu0
    %v2829 = vadd.f32 0.0, %v2828
    %2830 = vdwg.mxu0
    %v2832 = vrot.slane %v2829, 6
    %v2834 = vadd.f32 %v1888, %v2832
    %v2835 = vxor.u32 %v2834, 2147483648
    %v2836 = vmul.f32 %v2835, 1.442695
    %v2837 = vpow.pop %v2836
    %v2838 = vadd.f32 %v2837, 1.0
    %v2839 = vrcp.pop %v2838
    %v2840 = vmul.f32 %v2838, %v2839
    %v2841 = vsub.f32 1.0, %v2840
    %v2842 = vmul.f32 %v2839, %v2841
    %v2843 = vadd.f32 %v2839, %v2842
    %vm2844 = vweird.f32 %v2838
    %vm2845 = vweird.f32 %v2839
    %vm2846 = vmor %vm2844, %vm2845
    %v2847 = vsel %vm2846, %v2839, %v2843
    %v2848 = vand.u32 2147483647, %v2838
    %vm2849 = vcmp.eq.f32.partialorder %v2848, 8.507059e+37
    %v2850 = vand.u32 %v2838, 2147483648
    %v2851 = vor.u32 1.1754944e-38, %v2850
    %v2852 = vsel %vm2849, %v2851, %v2847
    %v2853 = vmul.f32 1.0, %v2852
    %v2854 = vtanh.pop %v2834
    %v2856 = vrot.slane %v2775, 2
    %v2858 = vmul.f32 %v2853, %v2856
    %2860 = vrot.lane.b32.xlu0 %v2854, 96
    %v2861 = vpop.permute.xlu0 %2860
    %v2863 = vmul.f32 %v2853, %v2861
    %2865 = vrot.lane.b32.xlu0 %v2863, 16
    %v2866 = vpop.permute.xlu0 %2865
    %v2868 = vadd.f32 %v2858, %v2866
    %v2869 = vtanh.pop %v2868
    %2871 = vrot.lane.b32.xlu0 %v2869, 32
    %v2872 = vpop.permute.xlu0 %2871
    %v2874 = vmul.f32 %v2853, %v2872
    %v2875 = vld [vmem:[%s12 + $0xb0] sm:$0xff]
    %v2876 = vld [vmem:[%s12 + $0xb8] sm:$0xff]
    %v2878 = vrot.slane %v2874, 2
    %2879 = vrot.lane.b32.xlu0 %v2878, 80
    %v2880 = vpop.permute.xlu0 %2879
    %v2881 = vsel %vm444, %v2880, 0
    %2883 = vmatpush.msra.mxu0 0.0
    %2884 = vmatpush.msra.mxu0 0.0
    %2885 = vmatpush.msra.mxu0 0.0
    %2886 = vmatpush.msra.mxu0 0.0
    %2887 = vmatpush.msra.mxu0 0.0
    %2888 = vmatpush.msra.mxu0 0.0
    %2889 = vmatpush.msra.mxu0 0.0
    %2890 = vmatpush.msra.mxu0 0.0
    %2891 = vmatpush.msra.mxu0 0.0
    %2892 = vmatpush.msra.mxu0 0.0
    %2893 = vmatpush.msra.mxu0 0.0
    %2894 = vmatpush.msra.mxu0 0.0
    %2895 = vmatpush.msra.mxu0 0.0
    %2896 = vmatpush.msra.mxu0 0.0
    %2897 = vmatpush.msra.mxu0 %v2876
    %2898 = vmatpush.msra.mxu0 %v2875
    %2899 = vmatmul.f32.gmra.mxu0 %v2881
    %v2900 = vpop.f32.mrf.mxu0
    %v2901 = vadd.f32 0.0, %v2900
    %2902 = vdwg.mxu0
    %v2903 = vadd.f32 %v2810, %v2901
    %2904 = vmatpush.msra.mxu0 0.0
    %2905 = vmatpush.msra.mxu0 0.0
    %2906 = vmatpush.msra.mxu0 0.0
    %2907 = vmatpush.msra.mxu0 0.0
    %2908 = vmatpush.msra.mxu0 0.0
    %2909 = vmatpush.msra.mxu0 0.0
    %2910 = vmatpush.msra.mxu0 0.0
    %2911 = vmatpush.msra.mxu0 0.0
    %2912 = vmatpush.msra.mxu0 0.0
    %2913 = vmatpush.msra.mxu0 0.0
    %2914 = vmatpush.msra.mxu0 0.0
    %2915 = vmatpush.msra.mxu0 0.0
    %2916 = vmatpush.msra.mxu0 0.0
    %2917 = vmatpush.msra.mxu0 0.0
    %2918 = vmatpush.msra.mxu0 %v1893
    %2919 = vmatpush.msra.mxu0 %v1892
    %2920 = vmatmul.f32.gmra.mxu0 %v2881
    %v2921 = vpop.f32.mrf.mxu0
    %v2922 = vadd.f32 0.0, %v2921
    %2923 = vdwg.mxu0
    %v2924 = vadd.f32 %v1888, %v2922
    %v2925 = vxor.u32 %v2924, 2147483648
    %v2926 = vmul.f32 %v2925, 1.442695
    %v2927 = vpow.pop %v2926
    %v2928 = vadd.f32 %v2927, 1.0
    %v2929 = vrcp.pop %v2928
    %v2930 = vmul.f32 %v2928, %v2929
    %v2931 = vsub.f32 1.0, %v2930
    %v2932 = vmul.f32 %v2929, %v2931
    %v2933 = vadd.f32 %v2929, %v2932
    %vm2934 = vweird.f32 %v2928
    %vm2935 = vweird.f32 %v2929
    %vm2936 = vmor %vm2934, %vm2935
    %v2937 = vsel %vm2936, %v2929, %v2933
    %v2938 = vand.u32 2147483647, %v2928
    %vm2939 = vcmp.eq.f32.partialorder %v2938, 8.507059e+37
    %v2940 = vand.u32 %v2928, 2147483648
    %v2941 = vor.u32 1.1754944e-38, %v2940
    %v2942 = vsel %vm2939, %v2941, %v2937
    %v2943 = vmul.f32 1.0, %v2942
    %v2944 = vtanh.pop %v2924
    %v2946 = vrot.slane %v2868, 2
    %v2948 = vmul.f32 %v2943, %v2946
    %2950 = vrot.lane.b32.xlu0 %v2944, 96
    %v2951 = vpop.permute.xlu0 %2950
    %v2953 = vmul.f32 %v2943, %v2951
    %2955 = vrot.lane.b32.xlu0 %v2953, 16
    %v2956 = vpop.permute.xlu0 %2955
    %v2958 = vadd.f32 %v2948, %v2956
    %v2959 = vtanh.pop %v2958
    %2961 = vrot.lane.b32.xlu0 %v2959, 32
    %v2962 = vpop.permute.xlu0 %2961
    %v2964 = vmul.f32 %v2943, %v2962
    %v2965 = vld [vmem:[%s12 + $0x90] sm:$0xff]
    %v2966 = vld [vmem:[%s12 + $0x98] sm:$0xff]
    %2968 = vrot.lane.b32.xlu0 %v2964, 80
    %v2969 = vpop.permute.xlu0 %2968
    %v2970 = vsel %vm444, %v2969, 0
    %2972 = vmatpush.msra.mxu0 0.0
    %2973 = vmatpush.msra.mxu0 0.0
    %2974 = vmatpush.msra.mxu0 0.0
    %2975 = vmatpush.msra.mxu0 0.0
    %2976 = vmatpush.msra.mxu0 0.0
    %2977 = vmatpush.msra.mxu0 0.0
    %2978 = vmatpush.msra.mxu0 0.0
    %2979 = vmatpush.msra.mxu0 0.0
    %2980 = vmatpush.msra.mxu0 0.0
    %2981 = vmatpush.msra.mxu0 0.0
    %2982 = vmatpush.msra.mxu0 0.0
    %2983 = vmatpush.msra.mxu0 0.0
    %2984 = vmatpush.msra.mxu0 0.0
    %2985 = vmatpush.msra.mxu0 0.0
    %2986 = vmatpush.msra.mxu0 %v2966
    %2987 = vmatpush.msra.mxu0 %v2965
    %2988 = vmatmul.f32.gmra.mxu0 %v2970
    %v2989 = vpop.f32.mrf.mxu0
    %v2990 = vadd.f32 0.0, %v2989
    %2991 = vdwg.mxu0
    %v2992 = vadd.f32 %v2903, %v2990
    %2993 = vmatpush.msra.mxu0 0.0
    %2994 = vmatpush.msra.mxu0 0.0
    %2995 = vmatpush.msra.mxu0 0.0
    %2996 = vmatpush.msra.mxu0 0.0
    %2997 = vmatpush.msra.mxu0 0.0
    %2998 = vmatpush.msra.mxu0 0.0
    %2999 = vmatpush.msra.mxu0 0.0
    %3000 = vmatpush.msra.mxu0 0.0
    %3001 = vmatpush.msra.mxu0 0.0
    %3002 = vmatpush.msra.mxu0 0.0
    %3003 = vmatpush.msra.mxu0 0.0
    %3004 = vmatpush.msra.mxu0 0.0
    %3005 = vmatpush.msra.mxu0 0.0
    %3006 = vmatpush.msra.mxu0 0.0
    %3007 = vmatpush.msra.mxu0 %v1893
    %3008 = vmatpush.msra.mxu0 %v1892
    %3009 = vmatmul.f32.gmra.mxu0 %v2970
    %v3010 = vpop.f32.mrf.mxu0
    %v3011 = vadd.f32 0.0, %v3010
    %3012 = vdwg.mxu0
    %v3014 = vrot.slane %v3011, 2
    %v3016 = vadd.f32 %v1885, %v3014
    %v3017 = vxor.u32 %v3016, 2147483648
    %v3018 = vmul.f32 %v3017, 1.442695
    %v3019 = vpow.pop %v3018
    %v3020 = vadd.f32 %v3019, 1.0
    %v3021 = vrcp.pop %v3020
    %v3022 = vmul.f32 %v3020, %v3021
    %v3023 = vsub.f32 1.0, %v3022
    %v3024 = vmul.f32 %v3021, %v3023
    %v3025 = vadd.f32 %v3021, %v3024
    %vm3026 = vweird.f32 %v3020
    %vm3027 = vweird.f32 %v3021
    %vm3028 = vmor %vm3026, %vm3027
    %v3029 = vsel %vm3028, %v3021, %v3025
    %v3030 = vand.u32 2147483647, %v3020
    %vm3031 = vcmp.eq.f32.partialorder %v3030, 8.507059e+37
    %v3032 = vand.u32 %v3020, 2147483648
    %v3033 = vor.u32 1.1754944e-38, %v3032
    %v3034 = vsel %vm3031, %v3033, %v3029
    %v3035 = vmul.f32 1.0, %v3034
    %v3036 = vtanh.pop %v3016
    %v3038 = vrot.slane %v2958, 2
    %v3040 = vmul.f32 %v3035, %v3038
    %3042 = vrot.lane.b32.xlu0 %v3036, 96
    %v3043 = vpop.permute.xlu0 %3042
    %v3045 = vmul.f32 %v3035, %v3043
    %3047 = vrot.lane.b32.xlu0 %v3045, 16
    %v3048 = vpop.permute.xlu0 %3047
    %v3050 = vadd.f32 %v3040, %v3048
    %v3051 = vtanh.pop %v3050
    %3053 = vrot.lane.b32.xlu0 %v3051, 32
    %v3054 = vpop.permute.xlu0 %3053
    %v3056 = vmul.f32 %v3035, %v3054
    %v3057 = vld [vmem:[%s12 + $0x70] sm:$0xff]
    %v3058 = vld [vmem:[%s12 + $0x78] sm:$0xff]
    %v3060 = vrot.slane %v3056, 6
    %3061 = vrot.lane.b32.xlu0 %v3060, 80
    %v3062 = vpop.permute.xlu0 %3061
    %v3063 = vsel %vm444, %v3062, 0
    %3065 = vmatpush.msra.mxu0 0.0
    %3066 = vmatpush.msra.mxu0 0.0
    %3067 = vmatpush.msra.mxu0 0.0
    %3068 = vmatpush.msra.mxu0 0.0
    %3069 = vmatpush.msra.mxu0 0.0
    %3070 = vmatpush.msra.mxu0 0.0
    %3071 = vmatpush.msra.mxu0 0.0
    %3072 = vmatpush.msra.mxu0 0.0
    %3073 = vmatpush.msra.mxu0 0.0
    %3074 = vmatpush.msra.mxu0 0.0
    %3075 = vmatpush.msra.mxu0 0.0
    %3076 = vmatpush.msra.mxu0 0.0
    %3077 = vmatpush.msra.mxu0 0.0
    %3078 = vmatpush.msra.mxu0 0.0
    %3079 = vmatpush.msra.mxu0 %v3058
    %3080 = vmatpush.msra.mxu0 %v3057
    %3081 = vmatmul.f32.gmra.mxu0 %v3063
    %v3082 = vpop.f32.mrf.mxu0
    %v3083 = vadd.f32 0.0, %v3082
    %3084 = vdwg.mxu0
    %v3085 = vadd.f32 %v2992, %v3083
    %3086 = vmatpush.msra.mxu0 0.0
    %3087 = vmatpush.msra.mxu0 0.0
    %3088 = vmatpush.msra.mxu0 0.0
    %3089 = vmatpush.msra.mxu0 0.0
    %3090 = vmatpush.msra.mxu0 0.0
    %3091 = vmatpush.msra.mxu0 0.0
    %3092 = vmatpush.msra.mxu0 0.0
    %3093 = vmatpush.msra.mxu0 0.0
    %3094 = vmatpush.msra.mxu0 0.0
    %3095 = vmatpush.msra.mxu0 0.0
    %3096 = vmatpush.msra.mxu0 0.0
    %3097 = vmatpush.msra.mxu0 0.0
    %3098 = vmatpush.msra.mxu0 0.0
    %3099 = vmatpush.msra.mxu0 0.0
    %3100 = vmatpush.msra.mxu0 %v1893
    %3101 = vmatpush.msra.mxu0 %v1892
    %3102 = vmatmul.f32.gmra.mxu0 %v3063
    %v3103 = vpop.f32.mrf.mxu0
    %v3104 = vadd.f32 0.0, %v3103
    %3105 = vdwg.mxu0
    %v3107 = vrot.slane %v3104, 4
    %v3109 = vadd.f32 %v1885, %v3107
    %v3110 = vxor.u32 %v3109, 2147483648
    %v3111 = vmul.f32 %v3110, 1.442695
    %v3112 = vpow.pop %v3111
    %v3113 = vadd.f32 %v3112, 1.0
    %v3114 = vrcp.pop %v3113
    %v3115 = vmul.f32 %v3113, %v3114
    %v3116 = vsub.f32 1.0, %v3115
    %v3117 = vmul.f32 %v3114, %v3116
    %v3118 = vadd.f32 %v3114, %v3117
    %vm3119 = vweird.f32 %v3113
    %vm3120 = vweird.f32 %v3114
    %vm3121 = vmor %vm3119, %vm3120
    %v3122 = vsel %vm3121, %v3114, %v3118
    %v3123 = vand.u32 2147483647, %v3113
    %vm3124 = vcmp.eq.f32.partialorder %v3123, 8.507059e+37
    %v3125 = vand.u32 %v3113, 2147483648
    %v3126 = vor.u32 1.1754944e-38, %v3125
    %v3127 = vsel %vm3124, %v3126, %v3122
    %v3128 = vmul.f32 1.0, %v3127
    %v3129 = vtanh.pop %v3109
    %v3131 = vrot.slane %v3050, 2
    %v3133 = vmul.f32 %v3128, %v3131
    %3135 = vrot.lane.b32.xlu0 %v3129, 96
    %v3136 = vpop.permute.xlu0 %3135
    %v3138 = vmul.f32 %v3128, %v3136
    %3140 = vrot.lane.b32.xlu0 %v3138, 16
    %v3141 = vpop.permute.xlu0 %3140
    %v3143 = vadd.f32 %v3133, %v3141
    %v3144 = vtanh.pop %v3143
    %3146 = vrot.lane.b32.xlu0 %v3144, 32
    %v3147 = vpop.permute.xlu0 %3146
    %v3149 = vmul.f32 %v3128, %v3147
    %v3150 = vld [vmem:[%s12 + $0x50] sm:$0xff]
    %v3151 = vld [vmem:[%s12 + $0x58] sm:$0xff]
    %v3153 = vrot.slane %v3149, 4
    %3154 = vrot.lane.b32.xlu0 %v3153, 80
    %v3155 = vpop.permute.xlu0 %3154
    %v3156 = vsel %vm444, %v3155, 0
    %3158 = vmatpush.msra.mxu0 0.0
    %3159 = vmatpush.msra.mxu0 0.0
    %3160 = vmatpush.msra.mxu0 0.0
    %3161 = vmatpush.msra.mxu0 0.0
    %3162 = vmatpush.msra.mxu0 0.0
    %3163 = vmatpush.msra.mxu0 0.0
    %3164 = vmatpush.msra.mxu0 0.0
    %3165 = vmatpush.msra.mxu0 0.0
    %3166 = vmatpush.msra.mxu0 0.0
    %3167 = vmatpush.msra.mxu0 0.0
    %3168 = vmatpush.msra.mxu0 0.0
    %3169 = vmatpush.msra.mxu0 0.0
    %3170 = vmatpush.msra.mxu0 0.0
    %3171 = vmatpush.msra.mxu0 0.0
    %3172 = vmatpush.msra.mxu0 %v3151
    %3173 = vmatpush.msra.mxu0 %v3150
    %3174 = vmatmul.f32.gmra.mxu0 %v3156
    %v3175 = vpop.f32.mrf.mxu0
    %v3176 = vadd.f32 0.0, %v3175
    %3177 = vdwg.mxu0
    %v3178 = vadd.f32 %v3085, %v3176
    %3179 = vmatpush.msra.mxu0 0.0
    %3180 = vmatpush.msra.mxu0 0.0
    %3181 = vmatpush.msra.mxu0 0.0
    %3182 = vmatpush.msra.mxu0 0.0
    %3183 = vmatpush.msra.mxu0 0.0
    %3184 = vmatpush.msra.mxu0 0.0
    %3185 = vmatpush.msra.mxu0 0.0
    %3186 = vmatpush.msra.mxu0 0.0
    %3187 = vmatpush.msra.mxu0 0.0
    %3188 = vmatpush.msra.mxu0 0.0
    %3189 = vmatpush.msra.mxu0 0.0
    %3190 = vmatpush.msra.mxu0 0.0
    %3191 = vmatpush.msra.mxu0 0.0
    %3192 = vmatpush.msra.mxu0 0.0
    %3193 = vmatpush.msra.mxu0 %v1893
    %3194 = vmatpush.msra.mxu0 %v1892
    %3195 = vmatmul.f32.gmra.mxu0 %v3156
    %v3196 = vpop.f32.mrf.mxu0
    %v3197 = vadd.f32 0.0, %v3196
    %3198 = vdwg.mxu0
    %v3200 = vrot.slane %v3197, 6
    %v3202 = vadd.f32 %v1885, %v3200
    %v3203 = vxor.u32 %v3202, 2147483648
    %v3204 = vmul.f32 %v3203, 1.442695
    %v3205 = vpow.pop %v3204
    %v3206 = vadd.f32 %v3205, 1.0
    %v3207 = vrcp.pop %v3206
    %v3208 = vmul.f32 %v3206, %v3207
    %v3209 = vsub.f32 1.0, %v3208
    %v3210 = vmul.f32 %v3207, %v3209
    %v3211 = vadd.f32 %v3207, %v3210
    %vm3212 = vweird.f32 %v3206
    %vm3213 = vweird.f32 %v3207
    %vm3214 = vmor %vm3212, %vm3213
    %v3215 = vsel %vm3214, %v3207, %v3211
    %v3216 = vand.u32 2147483647, %v3206
    %vm3217 = vcmp.eq.f32.partialorder %v3216, 8.507059e+37
    %v3218 = vand.u32 %v3206, 2147483648
    %v3219 = vor.u32 1.1754944e-38, %v3218
    %v3220 = vsel %vm3217, %v3219, %v3215
    %v3221 = vmul.f32 1.0, %v3220
    %v3222 = vtanh.pop %v3202
    %v3224 = vrot.slane %v3143, 2
    %v3226 = vmul.f32 %v3221, %v3224
    %3228 = vrot.lane.b32.xlu0 %v3222, 96
    %v3229 = vpop.permute.xlu0 %3228
    %v3231 = vmul.f32 %v3221, %v3229
    %3233 = vrot.lane.b32.xlu0 %v3231, 16
    %v3234 = vpop.permute.xlu0 %3233
    %v3236 = vadd.f32 %v3226, %v3234
    %v3237 = vtanh.pop %v3236
    %3239 = vrot.lane.b32.xlu0 %v3237, 32
    %v3240 = vpop.permute.xlu0 %3239
    %v3242 = vmul.f32 %v3221, %v3240
    %v3243 = vld [vmem:[%s12 + $0x30] sm:$0xff]
    %v3244 = vld [vmem:[%s12 + $0x38] sm:$0xff]
    %v3246 = vrot.slane %v3242, 2
    %3247 = vrot.lane.b32.xlu0 %v3246, 80
    %v3248 = vpop.permute.xlu0 %3247
    %v3249 = vsel %vm444, %v3248, 0
    %3251 = vmatpush.msra.mxu0 0.0
    %3252 = vmatpush.msra.mxu0 0.0
    %3253 = vmatpush.msra.mxu0 0.0
    %3254 = vmatpush.msra.mxu0 0.0
    %3255 = vmatpush.msra.mxu0 0.0
    %3256 = vmatpush.msra.mxu0 0.0
    %3257 = vmatpush.msra.mxu0 0.0
    %3258 = vmatpush.msra.mxu0 0.0
    %3259 = vmatpush.msra.mxu0 0.0
    %3260 = vmatpush.msra.mxu0 0.0
    %3261 = vmatpush.msra.mxu0 0.0
    %3262 = vmatpush.msra.mxu0 0.0
    %3263 = vmatpush.msra.mxu0 0.0
    %3264 = vmatpush.msra.mxu0 0.0
    %3265 = vmatpush.msra.mxu0 %v3244
    %3266 = vmatpush.msra.mxu0 %v3243
    %3267 = vmatmul.f32.gmra.mxu0 %v3249
    %v3268 = vpop.f32.mrf.mxu0
    %v3269 = vadd.f32 0.0, %v3268
    %3270 = vdwg.mxu0
    %v3271 = vadd.f32 %v3178, %v3269
    %3272 = vmatpush.msra.mxu0 0.0
    %3273 = vmatpush.msra.mxu0 0.0
    %3274 = vmatpush.msra.mxu0 0.0
    %3275 = vmatpush.msra.mxu0 0.0
    %3276 = vmatpush.msra.mxu0 0.0
    %3277 = vmatpush.msra.mxu0 0.0
    %3278 = vmatpush.msra.mxu0 0.0
    %3279 = vmatpush.msra.mxu0 0.0
    %3280 = vmatpush.msra.mxu0 0.0
    %3281 = vmatpush.msra.mxu0 0.0
    %3282 = vmatpush.msra.mxu0 0.0
    %3283 = vmatpush.msra.mxu0 0.0
    %3284 = vmatpush.msra.mxu0 0.0
    %3285 = vmatpush.msra.mxu0 0.0
    %3286 = vmatpush.msra.mxu0 %v1893
    %3287 = vmatpush.msra.mxu0 %v1892
    %3288 = vmatmul.f32.gmra.mxu0 %v3249
    %v3289 = vpop.f32.mrf.mxu0
    %v3290 = vadd.f32 0.0, %v3289
    %3291 = vdwg.mxu0
    %v3292 = vadd.f32 %v1885, %v3290
    %v3293 = vxor.u32 %v3292, 2147483648
    %v3294 = vmul.f32 %v3293, 1.442695
    %v3295 = vpow.pop %v3294
    %v3296 = vadd.f32 %v3295, 1.0
    %v3297 = vrcp.pop %v3296
    %v3298 = vmul.f32 %v3296, %v3297
    %v3299 = vsub.f32 1.0, %v3298
    %v3300 = vmul.f32 %v3297, %v3299
    %v3301 = vadd.f32 %v3297, %v3300
    %vm3302 = vweird.f32 %v3296
    %vm3303 = vweird.f32 %v3297
    %vm3304 = vmor %vm3302, %vm3303
    %v3305 = vsel %vm3304, %v3297, %v3301
    %v3306 = vand.u32 2147483647, %v3296
    %vm3307 = vcmp.eq.f32.partialorder %v3306, 8.507059e+37
    %v3308 = vand.u32 %v3296, 2147483648
    %v3309 = vor.u32 1.1754944e-38, %v3308
    %v3310 = vsel %vm3307, %v3309, %v3305
    %v3311 = vmul.f32 1.0, %v3310
    %v3312 = vtanh.pop %v3292
    %v3314 = vrot.slane %v3236, 2
    %v3316 = vmul.f32 %v3311, %v3314
    %3318 = vrot.lane.b32.xlu0 %v3312, 96
    %v3319 = vpop.permute.xlu0 %3318
    %v3321 = vmul.f32 %v3311, %v3319
    %3323 = vrot.lane.b32.xlu0 %v3321, 16
    %v3324 = vpop.permute.xlu0 %3323
    %v3326 = vadd.f32 %v3316, %v3324
    %v3327 = vtanh.pop %v3326
    %3329 = vrot.lane.b32.xlu0 %v3327, 32
    %v3330 = vpop.permute.xlu0 %3329
    %v3332 = vmul.f32 %v3311, %v3330
    %v3333 = vld [vmem:[%s12 + $0x10] sm:$0xff]
    %v3334 = vld [vmem:[%s12 + $0x18] sm:$0xff]
    %3336 = vrot.lane.b32.xlu0 %v3332, 80
    %v3337 = vpop.permute.xlu0 %3336
    %v3338 = vsel %vm444, %v3337, 0
    %3340 = vmatpush.msra.mxu0 0.0
    %3341 = vmatpush.msra.mxu0 0.0
    %3342 = vmatpush.msra.mxu0 0.0
    %3343 = vmatpush.msra.mxu0 0.0
    %3344 = vmatpush.msra.mxu0 0.0
    %3345 = vmatpush.msra.mxu0 0.0
    %3346 = vmatpush.msra.mxu0 0.0
    %3347 = vmatpush.msra.mxu0 0.0
    %3348 = vmatpush.msra.mxu0 0.0
    %3349 = vmatpush.msra.mxu0 0.0
    %3350 = vmatpush.msra.mxu0 0.0
    %3351 = vmatpush.msra.mxu0 0.0
    %3352 = vmatpush.msra.mxu0 0.0
    %3353 = vmatpush.msra.mxu0 0.0
    %3354 = vmatpush.msra.mxu0 %v3334
    %3355 = vmatpush.msra.mxu0 %v3333
    %3356 = vmatmul.f32.gmra.mxu0 %v3338
    %v3357 = vpop.f32.mrf.mxu0
    %v3358 = vadd.f32 0.0, %v3357
    %3359 = vdwg.mxu0
    %v3360 = vadd.f32 %v3271, %v3358
    %v3361 = vperm.slane %v1776, 2
    %v3362 = vadd.f32 %v3360, %v3361
    %vm3363 = vcmask 312320
    %3364 = vst.msk [vmem:[#allocation2] sm:$0x3] %vm3363, %v3362
    // Predicated region
    $region58: #{custom_bert_forward.1} parent=1 // pred_check
      _
    $region59: #{custom_bert_forward.1} parent=1 // pred_check_branch
      %3366 = sbr.rel (0) target = $region61
    $region60: #{custom_bert_forward.1} parent=1 // pred_region
      %3368 = vsyncadd [#allocation3], 0
      %s3370 = sshll.u32 [#allocation2], 4
      %s3371 = int_to_ptr.vmem [resolvable:$true] %s3370
      %s3372 = sshll.u32 %s14, 4
      %s3373 = int_to_ptr.hbm [resolvable:$true] %s3372
      %3375 = dma.vmem_to_hbm [thread:$0]  %s3371, 32, %s3373, [#allocation3]
    $region61: #{custom_bert_forward.1} parent=1 // pred_fallthru
      _
    // Predicated region
    $region62: #{custom_bert_forward.1} parent=1 // pred_check
      _
    $region63: #{custom_bert_forward.1} parent=1 // pred_check_branch
      %3377 = sbr.rel (0) target = $region65
    $region64: #{custom_bert_forward.1} parent=1 // pred_region
      %3379 = dma.done [#allocation3], 32
    $region65: #{custom_bert_forward.1} parent=1 // pred_fallthru
      _
    %3380 = vsyncpa [#allocation3], 1

</llo_original>
